<compile_context>
chip_gen: v5e
topology: v5e:2x2
jax: 0.10.0
libtpu: 0.0.40
codegen_flags: <defaults>
</compile_context>

<pallas_src>
import jax
import jax.numpy as jnp
from jax import lax
from jax.experimental import pallas as pl
from jax.experimental.pallas import tpu as pltpu

SUBLANE = 8      # batch padded to a full sublane group
LANE = 128       # fc2 output padded to a full lane group (lane-dense y store)
NUM_LAYERS = 2   # fixed, as in the module


def personal_vad_kernel(lens_ref, x_ref,
                        wih0_ref, whh0_ref, b0_ref,
                        w1_ref, b1_ref,
                        fc1w_ref, fc1b_ref, fc2w_ref, fc2b_ref,
                        y_ref, hc_ref,
                        xproj_scr, lstm_out_scr):
    Bp = lens_ref.shape[0]          # padded batch (multiple of 8)
    TB, _ = x_ref.shape             # (T * Bp, D)
    T = TB // Bp
    H = whh0_ref.shape[0]           # whh0 is (H, 4H) (pre-transposed)

    whh0 = whh0_ref[...]                                   # (H, 4H)
    w1 = w1_ref[...]                                       # (2H, 4H) stacked [Wih1; Whh1]
    # hoist loop-invariant broadcasts out of the recurrence
    b1 = jnp.broadcast_to(b1_ref[...], (Bp, 4 * H))
    lens_b = jnp.broadcast_to(lens_ref[...], (Bp, H))      # (Bp, H) int32

    # layer-0 input projection hoisted out of the serial loop:
    # one large (T*Bp, D) @ (D, 4H) matmul instead of T tiny ones.
    xproj_scr[...] = (jnp.dot(x_ref[...], wih0_ref[...],
                              preferred_element_type=jnp.float32)
                      + b0_ref[...])

    def gates_to_hc(gates, c):
        # PyTorch gate order [i, f, g, o]
        i = jax.nn.sigmoid(gates[:, 0 * H:1 * H])
        f = jax.nn.sigmoid(gates[:, 1 * H:2 * H])
        g = jnp.tanh(gates[:, 2 * H:3 * H])
        o = jax.nn.sigmoid(gates[:, 3 * H:4 * H])
        c_new = f * c + i * g
        h_new = o * jnp.tanh(c_new)
        return h_new, c_new

    def step(t, carry):
        h0, c0, h1, c1 = carry
        row = pl.multiple_of(t * Bp, Bp)                    # sublane-aligned offset
        mask = t < lens_b                                   # (Bp, H) bool validity

        # layer 0: only the recurrent matmul remains on the critical path
        g0 = xproj_scr[pl.ds(row, Bp), :] + jnp.dot(
            h0, whh0, preferred_element_type=jnp.float32)
        h0n, c0n = gates_to_hc(g0, c0)

        # layer 1: one fused (Bp, 2H) @ (2H, 4H) matmul
        g1 = jnp.dot(jnp.concatenate([h0n, h1], axis=1), w1,
                     preferred_element_type=jnp.float32) + b1
        h1n, c1n = gates_to_hc(g1, c1)

        # pack_padded_sequence: freeze states of finished sequences
        h0 = jnp.where(mask, h0n, h0); c0 = jnp.where(mask, c0n, c0)
        h1 = jnp.where(mask, h1n, h1); c1 = jnp.where(mask, c1n, c1)

        # pad_packed_sequence: padded timesteps are zeros
        lstm_out_scr[pl.ds(row, Bp), :] = jnp.where(mask, h1, 0.0)
        return (h0, c0, h1, c1)

    zeros = jnp.zeros((Bp, H), jnp.float32)
    h0, c0, h1, c1 = lax.fori_loop(0, T, step, (zeros, zeros, zeros, zeros),
                                   unroll=True)

    # final states as one 2-D block: [h_n layer0; h_n layer1; c_n layer0; c_n layer1]
    hc_ref[0 * Bp:1 * Bp, :] = h0
    hc_ref[1 * Bp:2 * Bp, :] = h1
    hc_ref[2 * Bp:3 * Bp, :] = c0
    hc_ref[3 * Bp:4 * Bp, :] = c1

    # fc1 -> tanh -> fc2 on the zero-padded LSTM outputs (as PyTorch does).
    # fc2 weight/bias are lane-padded to 128, so the y store is lane-dense.
    z = jnp.tanh(jnp.dot(lstm_out_scr[...], fc1w_ref[...],
                         preferred_element_type=jnp.float32) + fc1b_ref[...])
    y_ref[...] = jnp.dot(z, fc2w_ref[...],
                         preferred_element_type=jnp.float32) + fc2b_ref[...]


def pack_params(params):
    """One-time weight prep: transpose/stack/pad so the kernel does plain
    row-major matmuls and lane-dense stores.  Call once, reuse per forward."""
    f32 = jnp.float32
    H = params["whh0"].shape[1]
    O = params["fc2w"].shape[0]
    packed = dict(
        wih0T=params["wih0"].T.astype(f32),                              # (D, 4H)
        whh0T=params["whh0"].T.astype(f32),                              # (H, 4H)
        b0=(params["bih0"] + params["bhh0"]).reshape(1, 4 * H).astype(f32),
        w1=jnp.concatenate([params["wih1"].T, params["whh1"].T], 0).astype(f32),  # (2H, 4H)
        b1=(params["bih1"] + params["bhh1"]).reshape(1, 4 * H).astype(f32),
        fc1wT=params["fc1w"].T.astype(f32),                              # (H, H)
        fc1b=params["fc1b"].reshape(1, H).astype(f32),
        fc2w=jnp.zeros((H, LANE), f32).at[:, :O].set(params["fc2w"].T),  # (H, 128)
        fc2b=jnp.zeros((1, LANE), f32).at[:, :O].set(params["fc2b"]),    # (1, 128)
    )
    return packed, H, O


def personal_vad_forward(x, x_lens, packed, hidden_dim, out_dim):
    """x: (B, T, D) float32, x_lens: (B,) int32.  Returns (y, (h_n, c_n))."""
    B, T, D = x.shape
    H, O = hidden_dim, out_dim
    L = NUM_LAYERS
    Bp = max(SUBLANE, ((B + SUBLANE - 1) // SUBLANE) * SUBLANE)
    f32 = jnp.float32

    # time-major, batch padded to sublane width, flattened to a 2-D slab
    x_tm = jnp.transpose(x, (1, 0, 2)).astype(f32)          # (T, B, D)
    x_tm = jnp.pad(x_tm, ((0, 0), (0, Bp - B), (0, 0)))     # (T, Bp, D)
    x2d = x_tm.reshape(T * Bp, D)                           # (T*Bp, D)
    # padded batch rows get length 0 -> their state stays zero, output zero
    lens = jnp.pad(x_lens.astype(jnp.int32), (0, Bp - B)).reshape(Bp, 1)

    vmem = pl.BlockSpec(memory_space=pltpu.MemorySpace.VMEM)
    out_shapes = (
        jax.ShapeDtypeStruct((T * Bp, LANE), f32),          # y slab (lane-dense)
        jax.ShapeDtypeStruct((2 * L * Bp, H), f32),         # [h0; h1; c0; c1]
    )

    y_pad, hc = pl.pallas_call(
        personal_vad_kernel,
        out_shape=out_shapes,
        in_specs=[vmem] * 11,
        out_specs=(vmem, vmem),
        scratch_shapes=[pltpu.VMEM((T * Bp, 4 * H), f32),   # hoisted x projection
                        pltpu.VMEM((T * Bp, H), f32)],      # LSTM output history
    )(lens, x2d,
      packed["wih0T"], packed["whh0T"], packed["b0"],
      packed["w1"], packed["b1"],
      packed["fc1wT"], packed["fc1b"], packed["fc2w"], packed["fc2b"])

    # TODO(synk): for realistic T/B on v7x (64 MiB VMEM), chunk over T with a
    # pipelined grid instead of keeping x / lstm_out / y fully VMEM-resident.
    y = y_pad.reshape(T, Bp, LANE)[:, :B, :O].transpose(1, 0, 2)  # (B, T, O)
    hc = hc.reshape(2 * L, Bp, H)[:, :B, :]
    h_n, c_n = hc[:L], hc[L:]
    return y, (h_n, c_n)


def init_params(key, D, H, O):
    """Deterministic init, PyTorch-style U(-1/sqrt(H), 1/sqrt(H))."""
    ks = jax.random.split(key, 12)
    s = 1.0 / float(jnp.sqrt(jnp.float32(H)))
    u = lambda k, shape: jax.random.uniform(k, shape, jnp.float32, -s, s)
    return dict(
        wih0=u(ks[0], (4 * H, D)), whh0=u(ks[1], (4 * H, H)),
        bih0=u(ks[2], (4 * H,)),   bhh0=u(ks[3], (4 * H,)),
        wih1=u(ks[4], (4 * H, H)), whh1=u(ks[5], (4 * H, H)),
        bih1=u(ks[6], (4 * H,)),   bhh1=u(ks[7], (4 * H,)),
        fc1w=u(ks[8], (H, H)),     fc1b=u(ks[9], (H,)),
        fc2w=u(ks[10], (O, H)),    fc2b=u(ks[11], (O,)),
    )


if __name__ == "__main__":
    # small shapes consistent with the module: input_dim=297, hidden_dim=64,
    # num_layers=2, out_dim=3; batch=2, seq=8.
    B, T, D, H, O = 2, 8, 297, 64, 3

    key = jax.random.PRNGKey(0)
    kx, kp = jax.random.split(key)
    x = jax.random.normal(kx, (B, T, D), jnp.float32)
    x_lens = jnp.array([T, 5], jnp.int32)   # max(x_lens) == T -> padded out is (B, T, O)
    params = init_params(kp, D, H, O)

    packed, H_, O_ = pack_params(params)
    y, (h_n, c_n) = personal_vad_forward(x, x_lens, packed, H_, O_)
    jax.block_until_ready((y, h_n, c_n))

    assert y.shape == (B, T, O)
    assert h_n.shape == (NUM_LAYERS, B, H) and c_n.shape == (NUM_LAYERS, B, H)
    print("KERNEL_OK")
</pallas_src>

<mosaic_0001>
module attributes {stable_mosaic.version = 11 : i64} {
  func.func @personal_vad_kernel(%arg0: memref<8x1xi32, #tpu.memory_space<vmem>>, %arg1: memref<64x297xf32, #tpu.memory_space<vmem>>, %arg2: memref<297x256xf32, #tpu.memory_space<vmem>>, %arg3: memref<64x256xf32, #tpu.memory_space<vmem>>, %arg4: memref<1x256xf32, #tpu.memory_space<vmem>>, %arg5: memref<128x256xf32, #tpu.memory_space<vmem>>, %arg6: memref<1x256xf32, #tpu.memory_space<vmem>>, %arg7: memref<64x64xf32, #tpu.memory_space<vmem>>, %arg8: memref<1x64xf32, #tpu.memory_space<vmem>>, %arg9: memref<64x128xf32, #tpu.memory_space<vmem>>, %arg10: memref<1x128xf32, #tpu.memory_space<vmem>>, %arg11: memref<64x128xf32, #tpu.memory_space<vmem>>, %arg12: memref<32x64xf32, #tpu.memory_space<vmem>>, %arg13: memref<64x256xf32, #tpu.memory_space<vmem>>, %arg14: memref<64x64xf32, #tpu.memory_space<vmem>>) attributes {dimension_semantics = [], scalar_prefetch = 0 : i64, scratch_operands = 2 : i64, tpu.core_type = #tpu.core_type<tc>} {
    %c0 = arith.constant 0 : index
    %c0_0 = arith.constant 0 : index
    %0 = vector.load %arg3[%c0, %c0_0] : memref<64x256xf32, #tpu.memory_space<vmem>>, vector<64x256xf32>
    %c0_1 = arith.constant 0 : index
    %c0_2 = arith.constant 0 : index
    %1 = vector.load %arg5[%c0_1, %c0_2] : memref<128x256xf32, #tpu.memory_space<vmem>>, vector<128x256xf32>
    %c0_3 = arith.constant 0 : index
    %c0_4 = arith.constant 0 : index
    %2 = vector.load %arg6[%c0_3, %c0_4] : memref<1x256xf32, #tpu.memory_space<vmem>>, vector<1x256xf32>
    %3 = vector.shape_cast %2 : vector<1x256xf32> to vector<1x256xf32>
    %4 = vector.broadcast %3 : vector<1x256xf32> to vector<8x256xf32>
    %c0_5 = arith.constant 0 : index
    %c0_6 = arith.constant 0 : index
    %5 = vector.load %arg0[%c0_5, %c0_6] : memref<8x1xi32, #tpu.memory_space<vmem>>, vector<8x1xi32>
    %6 = vector.shape_cast %5 : vector<8x1xi32> to vector<8x1xi32>
    %7 = vector.broadcast %6 : vector<8x1xi32> to vector<8x64xi32>
    %c0_7 = arith.constant 0 : index
    %c0_8 = arith.constant 0 : index
    %8 = vector.load %arg1[%c0_7, %c0_8] : memref<64x297xf32, #tpu.memory_space<vmem>>, vector<64x297xf32>
    %c0_9 = arith.constant 0 : index
    %c0_10 = arith.constant 0 : index
    %9 = vector.load %arg2[%c0_9, %c0_10] : memref<297x256xf32, #tpu.memory_space<vmem>>, vector<297x256xf32>
    %cst = arith.constant dense<0.000000e+00> : vector<64x256xf32>
    %10 = tpu.matmul %8, %9, %cst {dimension_numbers = #tpu.dot_dimension_numbers<[1], [0], [0], [1], [0, 0, 1, 1], [], []>} : vector<64x297xf32>, vector<297x256xf32>, vector<64x256xf32> -> vector<64x256xf32>
    %c0_11 = arith.constant 0 : index
    %c0_12 = arith.constant 0 : index
    %11 = vector.load %arg4[%c0_11, %c0_12] : memref<1x256xf32, #tpu.memory_space<vmem>>, vector<1x256xf32>
    %12 = vector.broadcast %11 : vector<1x256xf32> to vector<64x256xf32>
    %13 = arith.addf %10, %12 : vector<64x256xf32>
    %c0_13 = arith.constant 0 : index
    %c0_14 = arith.constant 0 : index
    %14 = vector.load %arg13[%c0_13, %c0_14] : memref<64x256xf32, #tpu.memory_space<vmem>>, vector<64x256xf32>
    tpu.vector_store %arg13[%c0_13, %c0_14], %13 {strides = array<i32>} : memref<64x256xf32, #tpu.memory_space<vmem>>, vector<64x256xf32>,
    %cst_15 = arith.constant 0.000000e+00 : f32
    %15 = vector.broadcast %cst_15 : f32 to vector<8x64xf32>
    %c0_i32 = arith.constant 0 : i32
    %c8_i32 = arith.constant 8 : i32
    %16 = arith.muli %c0_i32, %c8_i32 : i32
    %17 = tpu.assume_multiple %16, 8 : i32
    %18 = vector.broadcast %c0_i32 : i32 to vector<8x64xi32>
    %19 = arith.cmpi slt, %18, %7 : vector<8x64xi32>
    %20 = arith.index_cast %17 : i32 to index
    %c0_16 = arith.constant 0 : index
    %21 = vector.load %arg13[%20, %c0_16] : memref<64x256xf32, #tpu.memory_space<vmem>>, vector<8x256xf32>
    %cst_17 = arith.constant dense<0.000000e+00> : vector<8x256xf32>
    %22 = tpu.matmul %15, %0, %cst_17 {dimension_numbers = #tpu.dot_dimension_numbers<[1], [0], [0], [1], [0, 0, 1, 1], [], []>} : vector<8x64xf32>, vector<64x256xf32>, vector<8x256xf32> -> vector<8x256xf32>
    %23 = arith.addf %21, %22 : vector<8x256xf32>
    %24 = vector.extract_strided_slice %23 {offsets = [0, 0], sizes = [8, 64], strides = [1, 1]} : vector<8x256xf32> to vector<8x64xf32>
    %25 = arith.negf %24 : vector<8x64xf32>
    %26 = math.exp %25 : vector<8x64xf32>
    %cst_18 = arith.constant 1.000000e+00 : f32
    %27 = vector.broadcast %cst_18 : f32 to vector<8x64xf32>
    %28 = arith.addf %27, %26 : vector<8x64xf32>
    %29 = arith.divf %27, %28 : vector<8x64xf32>
    %30 = vector.extract_strided_slice %23 {offsets = [0, 64], sizes = [8, 64], strides = [1, 1]} : vector<8x256xf32> to vector<8x64xf32>
    %31 = arith.negf %30 : vector<8x64xf32>
    %32 = math.exp %31 : vector<8x64xf32>
    %cst_19 = arith.constant 1.000000e+00 : f32
    %33 = vector.broadcast %cst_19 : f32 to vector<8x64xf32>
    %34 = arith.addf %33, %32 : vector<8x64xf32>
    %35 = arith.divf %33, %34 : vector<8x64xf32>
    %36 = vector.extract_strided_slice %23 {offsets = [0, 128], sizes = [8, 64], strides = [1, 1]} : vector<8x256xf32> to vector<8x64xf32>
    %37 = math.tanh %36 : vector<8x64xf32>
    %38 = vector.extract_strided_slice %23 {offsets = [0, 192], sizes = [8, 64], strides = [1, 1]} : vector<8x256xf32> to vector<8x64xf32>
    %39 = arith.negf %38 : vector<8x64xf32>
    %40 = math.exp %39 : vector<8x64xf32>
    %cst_20 = arith.constant 1.000000e+00 : f32
    %41 = vector.broadcast %cst_20 : f32 to vector<8x64xf32>
    %42 = arith.addf %41, %40 : vector<8x64xf32>
    %43 = arith.divf %41, %42 : vector<8x64xf32>
    %44 = arith.mulf %35, %15 : vector<8x64xf32>
    %45 = arith.mulf %29, %37 : vector<8x64xf32>
    %46 = arith.addf %44, %45 : vector<8x64xf32>
    %47 = math.tanh %46 : vector<8x64xf32>
    %48 = arith.mulf %43, %47 : vector<8x64xf32>
    %49 = tpu.concatenate %48, %15 in 1 : vector<8x64xf32>, vector<8x64xf32> -> vector<8x128xf32>
    %cst_21 = arith.constant dense<0.000000e+00> : vector<8x256xf32>
    %50 = tpu.matmul %49, %1, %cst_21 {dimension_numbers = #tpu.dot_dimension_numbers<[1], [0], [0], [1], [0, 0, 1, 1], [], []>} : vector<8x128xf32>, vector<128x256xf32>, vector<8x256xf32> -> vector<8x256xf32>
    %51 = arith.addf %50, %4 : vector<8x256xf32>
    %52 = vector.extract_strided_slice %51 {offsets = [0, 0], sizes = [8, 64], strides = [1, 1]} : vector<8x256xf32> to vector<8x64xf32>
    %53 = arith.negf %52 : vector<8x64xf32>
    %54 = math.exp %53 : vector<8x64xf32>
    %cst_22 = arith.constant 1.000000e+00 : f32
    %55 = vector.broadcast %cst_22 : f32 to vector<8x64xf32>
    %56 = arith.addf %55, %54 : vector<8x64xf32>
    %57 = arith.divf %55, %56 : vector<8x64xf32>
    %58 = vector.extract_strided_slice %51 {offsets = [0, 64], sizes = [8, 64], strides = [1, 1]} : vector<8x256xf32> to vector<8x64xf32>
    %59 = arith.negf %58 : vector<8x64xf32>
    %60 = math.exp %59 : vector<8x64xf32>
    %cst_23 = arith.constant 1.000000e+00 : f32
    %61 = vector.broadcast %cst_23 : f32 to vector<8x64xf32>
    %62 = arith.addf %61, %60 : vector<8x64xf32>
    %63 = arith.divf %61, %62 : vector<8x64xf32>
    %64 = vector.extract_strided_slice %51 {offsets = [0, 128], sizes = [8, 64], strides = [1, 1]} : vector<8x256xf32> to vector<8x64xf32>
    %65 = math.tanh %64 : vector<8x64xf32>
    %66 = vector.extract_strided_slice %51 {offsets = [0, 192], sizes = [8, 64], strides = [1, 1]} : vector<8x256xf32> to vector<8x64xf32>
    %67 = arith.negf %66 : vector<8x64xf32>
    %68 = math.exp %67 : vector<8x64xf32>
    %cst_24 = arith.constant 1.000000e+00 : f32
    %69 = vector.broadcast %cst_24 : f32 to vector<8x64xf32>
    %70 = arith.addf %69, %68 : vector<8x64xf32>
    %71 = arith.divf %69, %70 : vector<8x64xf32>
    %72 = arith.mulf %63, %15 : vector<8x64xf32>
    %73 = arith.mulf %57, %65 : vector<8x64xf32>
    %74 = arith.addf %72, %73 : vector<8x64xf32>
    %75 = math.tanh %74 : vector<8x64xf32>
    %76 = arith.mulf %71, %75 : vector<8x64xf32>
    %77 = arith.select %19, %48, %15 : vector<8x64xi1>, vector<8x64xf32>
    %78 = arith.select %19, %46, %15 : vector<8x64xi1>, vector<8x64xf32>
    %79 = arith.select %19, %76, %15 : vector<8x64xi1>, vector<8x64xf32>
    %80 = arith.select %19, %74, %15 : vector<8x64xi1>, vector<8x64xf32>
    %cst_25 = arith.constant 0.000000e+00 : f32
    %81 = vector.broadcast %cst_25 : f32 to vector<8x64xf32>
    %82 = arith.select %19, %79, %81 : vector<8x64xi1>, vector<8x64xf32>
    %83 = arith.index_cast %17 : i32 to index
    %c0_26 = arith.constant 0 : index
    %84 = vector.load %arg14[%83, %c0_26] : memref<64x64xf32, #tpu.memory_space<vmem>>, vector<8x64xf32>
    tpu.vector_store %arg14[%83, %c0_26], %82 {strides = array<i32>} : memref<64x64xf32, #tpu.memory_space<vmem>>, vector<8x64xf32>,
    %c1_i32 = arith.constant 1 : i32
    %c8_i32_27 = arith.constant 8 : i32
    %85 = arith.muli %c1_i32, %c8_i32_27 : i32
    %86 = tpu.assume_multiple %85, 8 : i32
    %87 = vector.broadcast %c1_i32 : i32 to vector<8x64xi32>
    %88 = arith.cmpi slt, %87, %7 : vector<8x64xi32>
    %89 = arith.index_cast %86 : i32 to index
    %c0_28 = arith.constant 0 : index
    %90 = vector.load %arg13[%89, %c0_28] : memref<64x256xf32, #tpu.memory_space<vmem>>, vector<8x256xf32>
    %cst_29 = arith.constant dense<0.000000e+00> : vector<8x256xf32>
    %91 = tpu.matmul %77, %0, %cst_29 {dimension_numbers = #tpu.dot_dimension_numbers<[1], [0], [0], [1], [0, 0, 1, 1], [], []>} : vector<8x64xf32>, vector<64x256xf32>, vector<8x256xf32> -> vector<8x256xf32>
    %92 = arith.addf %90, %91 : vector<8x256xf32>
    %93 = vector.extract_strided_slice %92 {offsets = [0, 0], sizes = [8, 64], strides = [1, 1]} : vector<8x256xf32> to vector<8x64xf32>
    %94 = arith.negf %93 : vector<8x64xf32>
    %95 = math.exp %94 : vector<8x64xf32>
    %cst_30 = arith.constant 1.000000e+00 : f32
    %96 = vector.broadcast %cst_30 : f32 to vector<8x64xf32>
    %97 = arith.addf %96, %95 : vector<8x64xf32>
    %98 = arith.divf %96, %97 : vector<8x64xf32>
    %99 = vector.extract_strided_slice %92 {offsets = [0, 64], sizes = [8, 64], strides = [1, 1]} : vector<8x256xf32> to vector<8x64xf32>
    %100 = arith.negf %99 : vector<8x64xf32>
    %101 = math.exp %100 : vector<8x64xf32>
    %cst_31 = arith.constant 1.000000e+00 : f32
    %102 = vector.broadcast %cst_31 : f32 to vector<8x64xf32>
    %103 = arith.addf %102, %101 : vector<8x64xf32>
    %104 = arith.divf %102, %103 : vector<8x64xf32>
    %105 = vector.extract_strided_slice %92 {offsets = [0, 128], sizes = [8, 64], strides = [1, 1]} : vector<8x256xf32> to vector<8x64xf32>
    %106 = math.tanh %105 : vector<8x64xf32>
    %107 = vector.extract_strided_slice %92 {offsets = [0, 192], sizes = [8, 64], strides = [1, 1]} : vector<8x256xf32> to vector<8x64xf32>
    %108 = arith.negf %107 : vector<8x64xf32>
    %109 = math.exp %108 : vector<8x64xf32>
    %cst_32 = arith.constant 1.000000e+00 : f32
    %110 = vector.broadcast %cst_32 : f32 to vector<8x64xf32>
    %111 = arith.addf %110, %109 : vector<8x64xf32>
    %112 = arith.divf %110, %111 : vector<8x64xf32>
    %113 = arith.mulf %104, %78 : vector<8x64xf32>
    %114 = arith.mulf %98, %106 : vector<8x64xf32>
    %115 = arith.addf %113, %114 : vector<8x64xf32>
    %116 = math.tanh %115 : vector<8x64xf32>
    %117 = arith.mulf %112, %116 : vector<8x64xf32>
    %118 = tpu.concatenate %117, %79 in 1 : vector<8x64xf32>, vector<8x64xf32> -> vector<8x128xf32>
    %cst_33 = arith.constant dense<0.000000e+00> : vector<8x256xf32>
    %119 = tpu.matmul %118, %1, %cst_33 {dimension_numbers = #tpu.dot_dimension_numbers<[1], [0], [0], [1], [0, 0, 1, 1], [], []>} : vector<8x128xf32>, vector<128x256xf32>, vector<8x256xf32> -> vector<8x256xf32>
    %120 = arith.addf %119, %4 : vector<8x256xf32>
    %121 = vector.extract_strided_slice %120 {offsets = [0, 0], sizes = [8, 64], strides = [1, 1]} : vector<8x256xf32> to vector<8x64xf32>
    %122 = arith.negf %121 : vector<8x64xf32>
    %123 = math.exp %122 : vector<8x64xf32>
    %cst_34 = arith.constant 1.000000e+00 : f32
    %124 = vector.broadcast %cst_34 : f32 to vector<8x64xf32>
    %125 = arith.addf %124, %123 : vector<8x64xf32>
    %126 = arith.divf %124, %125 : vector<8x64xf32>
    %127 = vector.extract_strided_slice %120 {offsets = [0, 64], sizes = [8, 64], strides = [1, 1]} : vector<8x256xf32> to vector<8x64xf32>
    %128 = arith.negf %127 : vector<8x64xf32>
    %129 = math.exp %128 : vector<8x64xf32>
    %cst_35 = arith.constant 1.000000e+00 : f32
    %130 = vector.broadcast %cst_35 : f32 to vector<8x64xf32>
    %131 = arith.addf %130, %129 : vector<8x64xf32>
    %132 = arith.divf %130, %131 : vector<8x64xf32>
    %133 = vector.extract_strided_slice %120 {offsets = [0, 128], sizes = [8, 64], strides = [1, 1]} : vector<8x256xf32> to vector<8x64xf32>
    %134 = math.tanh %133 : vector<8x64xf32>
    %135 = vector.extract_strided_slice %120 {offsets = [0, 192], sizes = [8, 64], strides = [1, 1]} : vector<8x256xf32> to vector<8x64xf32>
    %136 = arith.negf %135 : vector<8x64xf32>
    %137 = math.exp %136 : vector<8x64xf32>
    %cst_36 = arith.constant 1.000000e+00 : f32
    %138 = vector.broadcast %cst_36 : f32 to vector<8x64xf32>
    %139 = arith.addf %138, %137 : vector<8x64xf32>
    %140 = arith.divf %138, %139 : vector<8x64xf32>
    %141 = arith.mulf %132, %80 : vector<8x64xf32>
    %142 = arith.mulf %126, %134 : vector<8x64xf32>
    %143 = arith.addf %141, %142 : vector<8x64xf32>
    %144 = math.tanh %143 : vector<8x64xf32>
    %145 = arith.mulf %140, %144 : vector<8x64xf32>
    %146 = arith.select %88, %117, %77 : vector<8x64xi1>, vector<8x64xf32>
    %147 = arith.select %88, %115, %78 : vector<8x64xi1>, vector<8x64xf32>
    %148 = arith.select %88, %145, %79 : vector<8x64xi1>, vector<8x64xf32>
    %149 = arith.select %88, %143, %80 : vector<8x64xi1>, vector<8x64xf32>
    %cst_37 = arith.constant 0.000000e+00 : f32
    %150 = vector.broadcast %cst_37 : f32 to vector<8x64xf32>
    %151 = arith.select %88, %148, %150 : vector<8x64xi1>, vector<8x64xf32>
    %152 = arith.index_cast %86 : i32 to index
    %c0_38 = arith.constant 0 : index
    %153 = vector.load %arg14[%152, %c0_38] : memref<64x64xf32, #tpu.memory_space<vmem>>, vector<8x64xf32>
    tpu.vector_store %arg14[%152, %c0_38], %151 {strides = array<i32>} : memref<64x64xf32, #tpu.memory_space<vmem>>, vector<8x64xf32>,
    %c2_i32 = arith.constant 2 : i32
    %c8_i32_39 = arith.constant 8 : i32
    %154 = arith.muli %c2_i32, %c8_i32_39 : i32
    %155 = tpu.assume_multiple %154, 8 : i32
    %156 = vector.broadcast %c2_i32 : i32 to vector<8x64xi32>
    %157 = arith.cmpi slt, %156, %7 : vector<8x64xi32>
    %158 = arith.index_cast %155 : i32 to index
    %c0_40 = arith.constant 0 : index
    %159 = vector.load %arg13[%158, %c0_40] : memref<64x256xf32, #tpu.memory_space<vmem>>, vector<8x256xf32>
    %cst_41 = arith.constant dense<0.000000e+00> : vector<8x256xf32>
    %160 = tpu.matmul %146, %0, %cst_41 {dimension_numbers = #tpu.dot_dimension_numbers<[1], [0], [0], [1], [0, 0, 1, 1], [], []>} : vector<8x64xf32>, vector<64x256xf32>, vector<8x256xf32> -> vector<8x256xf32>
    %161 = arith.addf %159, %160 : vector<8x256xf32>
    %162 = vector.extract_strided_slice %161 {offsets = [0, 0], sizes = [8, 64], strides = [1, 1]} : vector<8x256xf32> to vector<8x64xf32>
    %163 = arith.negf %162 : vector<8x64xf32>
    %164 = math.exp %163 : vector<8x64xf32>
    %cst_42 = arith.constant 1.000000e+00 : f32
    %165 = vector.broadcast %cst_42 : f32 to vector<8x64xf32>
    %166 = arith.addf %165, %164 : vector<8x64xf32>
    %167 = arith.divf %165, %166 : vector<8x64xf32>
    %168 = vector.extract_strided_slice %161 {offsets = [0, 64], sizes = [8, 64], strides = [1, 1]} : vector<8x256xf32> to vector<8x64xf32>
    %169 = arith.negf %168 : vector<8x64xf32>
    %170 = math.exp %169 : vector<8x64xf32>
    %cst_43 = arith.constant 1.000000e+00 : f32
    %171 = vector.broadcast %cst_43 : f32 to vector<8x64xf32>
    %172 = arith.addf %171, %170 : vector<8x64xf32>
    %173 = arith.divf %171, %172 : vector<8x64xf32>
    %174 = vector.extract_strided_slice %161 {offsets = [0, 128], sizes = [8, 64], strides = [1, 1]} : vector<8x256xf32> to vector<8x64xf32>
    %175 = math.tanh %174 : vector<8x64xf32>
    %176 = vector.extract_strided_slice %161 {offsets = [0, 192], sizes = [8, 64], strides = [1, 1]} : vector<8x256xf32> to vector<8x64xf32>
    %177 = arith.negf %176 : vector<8x64xf32>
    %178 = math.exp %177 : vector<8x64xf32>
    %cst_44 = arith.constant 1.000000e+00 : f32
    %179 = vector.broadcast %cst_44 : f32 to vector<8x64xf32>
    %180 = arith.addf %179, %178 : vector<8x64xf32>
    %181 = arith.divf %179, %180 : vector<8x64xf32>
    %182 = arith.mulf %173, %147 : vector<8x64xf32>
    %183 = arith.mulf %167, %175 : vector<8x64xf32>
    %184 = arith.addf %182, %183 : vector<8x64xf32>
    %185 = math.tanh %184 : vector<8x64xf32>
    %186 = arith.mulf %181, %185 : vector<8x64xf32>
    %187 = tpu.concatenate %186, %148 in 1 : vector<8x64xf32>, vector<8x64xf32> -> vector<8x128xf32>
    %cst_45 = arith.constant dense<0.000000e+00> : vector<8x256xf32>
    %188 = tpu.matmul %187, %1, %cst_45 {dimension_numbers = #tpu.dot_dimension_numbers<[1], [0], [0], [1], [0, 0, 1, 1], [], []>} : vector<8x128xf32>, vector<128x256xf32>, vector<8x256xf32> -> vector<8x256xf32>
    %189 = arith.addf %188, %4 : vector<8x256xf32>
    %190 = vector.extract_strided_slice %189 {offsets = [0, 0], sizes = [8, 64], strides = [1, 1]} : vector<8x256xf32> to vector<8x64xf32>
    %191 = arith.negf %190 : vector<8x64xf32>
    %192 = math.exp %191 : vector<8x64xf32>
    %cst_46 = arith.constant 1.000000e+00 : f32
    %193 = vector.broadcast %cst_46 : f32 to vector<8x64xf32>
    %194 = arith.addf %193, %192 : vector<8x64xf32>
    %195 = arith.divf %193, %194 : vector<8x64xf32>
    %196 = vector.extract_strided_slice %189 {offsets = [0, 64], sizes = [8, 64], strides = [1, 1]} : vector<8x256xf32> to vector<8x64xf32>
    %197 = arith.negf %196 : vector<8x64xf32>
    %198 = math.exp %197 : vector<8x64xf32>
    %cst_47 = arith.constant 1.000000e+00 : f32
    %199 = vector.broadcast %cst_47 : f32 to vector<8x64xf32>
    %200 = arith.addf %199, %198 : vector<8x64xf32>
    %201 = arith.divf %199, %200 : vector<8x64xf32>
    %202 = vector.extract_strided_slice %189 {offsets = [0, 128], sizes = [8, 64], strides = [1, 1]} : vector<8x256xf32> to vector<8x64xf32>
    %203 = math.tanh %202 : vector<8x64xf32>
    %204 = vector.extract_strided_slice %189 {offsets = [0, 192], sizes = [8, 64], strides = [1, 1]} : vector<8x256xf32> to vector<8x64xf32>
    %205 = arith.negf %204 : vector<8x64xf32>
    %206 = math.exp %205 : vector<8x64xf32>
    %cst_48 = arith.constant 1.000000e+00 : f32
    %207 = vector.broadcast %cst_48 : f32 to vector<8x64xf32>
    %208 = arith.addf %207, %206 : vector<8x64xf32>
    %209 = arith.divf %207, %208 : vector<8x64xf32>
    %210 = arith.mulf %201, %149 : vector<8x64xf32>
    %211 = arith.mulf %195, %203 : vector<8x64xf32>
    %212 = arith.addf %210, %211 : vector<8x64xf32>
    %213 = math.tanh %212 : vector<8x64xf32>
    %214 = arith.mulf %209, %213 : vector<8x64xf32>
    %215 = arith.select %157, %186, %146 : vector<8x64xi1>, vector<8x64xf32>
    %216 = arith.select %157, %184, %147 : vector<8x64xi1>, vector<8x64xf32>
    %217 = arith.select %157, %214, %148 : vector<8x64xi1>, vector<8x64xf32>
    %218 = arith.select %157, %212, %149 : vector<8x64xi1>, vector<8x64xf32>
    %cst_49 = arith.constant 0.000000e+00 : f32
    %219 = vector.broadcast %cst_49 : f32 to vector<8x64xf32>
    %220 = arith.select %157, %217, %219 : vector<8x64xi1>, vector<8x64xf32>
    %221 = arith.index_cast %155 : i32 to index
    %c0_50 = arith.constant 0 : index
    %222 = vector.load %arg14[%221, %c0_50] : memref<64x64xf32, #tpu.memory_space<vmem>>, vector<8x64xf32>
    tpu.vector_store %arg14[%221, %c0_50], %220 {strides = array<i32>} : memref<64x64xf32, #tpu.memory_space<vmem>>, vector<8x64xf32>,
    %c3_i32 = arith.constant 3 : i32
    %c8_i32_51 = arith.constant 8 : i32
    %223 = arith.muli %c3_i32, %c8_i32_51 : i32
    %224 = tpu.assume_multiple %223, 8 : i32
    %225 = vector.broadcast %c3_i32 : i32 to vector<8x64xi32>
    %226 = arith.cmpi slt, %225, %7 : vector<8x64xi32>
    %227 = arith.index_cast %224 : i32 to index
    %c0_52 = arith.constant 0 : index
    %228 = vector.load %arg13[%227, %c0_52] : memref<64x256xf32, #tpu.memory_space<vmem>>, vector<8x256xf32>
    %cst_53 = arith.constant dense<0.000000e+00> : vector<8x256xf32>
    %229 = tpu.matmul %215, %0, %cst_53 {dimension_numbers = #tpu.dot_dimension_numbers<[1], [0], [0], [1], [0, 0, 1, 1], [], []>} : vector<8x64xf32>, vector<64x256xf32>, vector<8x256xf32> -> vector<8x256xf32>
    %230 = arith.addf %228, %229 : vector<8x256xf32>
    %231 = vector.extract_strided_slice %230 {offsets = [0, 0], sizes = [8, 64], strides = [1, 1]} : vector<8x256xf32> to vector<8x64xf32>
    %232 = arith.negf %231 : vector<8x64xf32>
    %233 = math.exp %232 : vector<8x64xf32>
    %cst_54 = arith.constant 1.000000e+00 : f32
    %234 = vector.broadcast %cst_54 : f32 to vector<8x64xf32>
    %235 = arith.addf %234, %233 : vector<8x64xf32>
    %236 = arith.divf %234, %235 : vector<8x64xf32>
    %237 = vector.extract_strided_slice %230 {offsets = [0, 64], sizes = [8, 64], strides = [1, 1]} : vector<8x256xf32> to vector<8x64xf32>
    %238 = arith.negf %237 : vector<8x64xf32>
    %239 = math.exp %238 : vector<8x64xf32>
    %cst_55 = arith.constant 1.000000e+00 : f32
    %240 = vector.broadcast %cst_55 : f32 to vector<8x64xf32>
    %241 = arith.addf %240, %239 : vector<8x64xf32>
    %242 = arith.divf %240, %241 : vector<8x64xf32>
    %243 = vector.extract_strided_slice %230 {offsets = [0, 128], sizes = [8, 64], strides = [1, 1]} : vector<8x256xf32> to vector<8x64xf32>
    %244 = math.tanh %243 : vector<8x64xf32>
    %245 = vector.extract_strided_slice %230 {offsets = [0, 192], sizes = [8, 64], strides = [1, 1]} : vector<8x256xf32> to vector<8x64xf32>
    %246 = arith.negf %245 : vector<8x64xf32>
    %247 = math.exp %246 : vector<8x64xf32>
    %cst_56 = arith.constant 1.000000e+00 : f32
    %248 = vector.broadcast %cst_56 : f32 to vector<8x64xf32>
    %249 = arith.addf %248, %247 : vector<8x64xf32>
    %250 = arith.divf %248, %249 : vector<8x64xf32>
    %251 = arith.mulf %242, %216 : vector<8x64xf32>
    %252 = arith.mulf %236, %244 : vector<8x64xf32>
    %253 = arith.addf %251, %252 : vector<8x64xf32>
    %254 = math.tanh %253 : vector<8x64xf32>
    %255 = arith.mulf %250, %254 : vector<8x64xf32>
    %256 = tpu.concatenate %255, %217 in 1 : vector<8x64xf32>, vector<8x64xf32> -> vector<8x128xf32>
    %cst_57 = arith.constant dense<0.000000e+00> : vector<8x256xf32>
    %257 = tpu.matmul %256, %1, %cst_57 {dimension_numbers = #tpu.dot_dimension_numbers<[1], [0], [0], [1], [0, 0, 1, 1], [], []>} : vector<8x128xf32>, vector<128x256xf32>, vector<8x256xf32> -> vector<8x256xf32>
    %258 = arith.addf %257, %4 : vector<8x256xf32>
    %259 = vector.extract_strided_slice %258 {offsets = [0, 0], sizes = [8, 64], strides = [1, 1]} : vector<8x256xf32> to vector<8x64xf32>
    %260 = arith.negf %259 : vector<8x64xf32>
    %261 = math.exp %260 : vector<8x64xf32>
    %cst_58 = arith.constant 1.000000e+00 : f32
    %262 = vector.broadcast %cst_58 : f32 to vector<8x64xf32>
    %263 = arith.addf %262, %261 : vector<8x64xf32>
    %264 = arith.divf %262, %263 : vector<8x64xf32>
    %265 = vector.extract_strided_slice %258 {offsets = [0, 64], sizes = [8, 64], strides = [1, 1]} : vector<8x256xf32> to vector<8x64xf32>
    %266 = arith.negf %265 : vector<8x64xf32>
    %267 = math.exp %266 : vector<8x64xf32>
    %cst_59 = arith.constant 1.000000e+00 : f32
    %268 = vector.broadcast %cst_59 : f32 to vector<8x64xf32>
    %269 = arith.addf %268, %267 : vector<8x64xf32>
    %270 = arith.divf %268, %269 : vector<8x64xf32>
    %271 = vector.extract_strided_slice %258 {offsets = [0, 128], sizes = [8, 64], strides = [1, 1]} : vector<8x256xf32> to vector<8x64xf32>
    %272 = math.tanh %271 : vector<8x64xf32>
    %273 = vector.extract_strided_slice %258 {offsets = [0, 192], sizes = [8, 64], strides = [1, 1]} : vector<8x256xf32> to vector<8x64xf32>
    %274 = arith.negf %273 : vector<8x64xf32>
    %275 = math.exp %274 : vector<8x64xf32>
    %cst_60 = arith.constant 1.000000e+00 : f32
    %276 = vector.broadcast %cst_60 : f32 to vector<8x64xf32>
    %277 = arith.addf %276, %275 : vector<8x64xf32>
    %278 = arith.divf %276, %277 : vector<8x64xf32>
    %279 = arith.mulf %270, %218 : vector<8x64xf32>
    %280 = arith.mulf %264, %272 : vector<8x64xf32>
    %281 = arith.addf %279, %280 : vector<8x64xf32>
    %282 = math.tanh %281 : vector<8x64xf32>
    %283 = arith.mulf %278, %282 : vector<8x64xf32>
    %284 = arith.select %226, %255, %215 : vector<8x64xi1>, vector<8x64xf32>
    %285 = arith.select %226, %253, %216 : vector<8x64xi1>, vector<8x64xf32>
    %286 = arith.select %226, %283, %217 : vector<8x64xi1>, vector<8x64xf32>
    %287 = arith.select %226, %281, %218 : vector<8x64xi1>, vector<8x64xf32>
    %cst_61 = arith.constant 0.000000e+00 : f32
    %288 = vector.broadcast %cst_61 : f32 to vector<8x64xf32>
    %289 = arith.select %226, %286, %288 : vector<8x64xi1>, vector<8x64xf32>
    %290 = arith.index_cast %224 : i32 to index
    %c0_62 = arith.constant 0 : index
    %291 = vector.load %arg14[%290, %c0_62] : memref<64x64xf32, #tpu.memory_space<vmem>>, vector<8x64xf32>
    tpu.vector_store %arg14[%290, %c0_62], %289 {strides = array<i32>} : memref<64x64xf32, #tpu.memory_space<vmem>>, vector<8x64xf32>,
    %c4_i32 = arith.constant 4 : i32
    %c8_i32_63 = arith.constant 8 : i32
    %292 = arith.muli %c4_i32, %c8_i32_63 : i32
    %293 = tpu.assume_multiple %292, 8 : i32
    %294 = vector.broadcast %c4_i32 : i32 to vector<8x64xi32>
    %295 = arith.cmpi slt, %294, %7 : vector<8x64xi32>
    %296 = arith.index_cast %293 : i32 to index
    %c0_64 = arith.constant 0 : index
    %297 = vector.load %arg13[%296, %c0_64] : memref<64x256xf32, #tpu.memory_space<vmem>>, vector<8x256xf32>
    %cst_65 = arith.constant dense<0.000000e+00> : vector<8x256xf32>
    %298 = tpu.matmul %284, %0, %cst_65 {dimension_numbers = #tpu.dot_dimension_numbers<[1], [0], [0], [1], [0, 0, 1, 1], [], []>} : vector<8x64xf32>, vector<64x256xf32>, vector<8x256xf32> -> vector<8x256xf32>
    %299 = arith.addf %297, %298 : vector<8x256xf32>
    %300 = vector.extract_strided_slice %299 {offsets = [0, 0], sizes = [8, 64], strides = [1, 1]} : vector<8x256xf32> to vector<8x64xf32>
    %301 = arith.negf %300 : vector<8x64xf32>
    %302 = math.exp %301 : vector<8x64xf32>
    %cst_66 = arith.constant 1.000000e+00 : f32
    %303 = vector.broadcast %cst_66 : f32 to vector<8x64xf32>
    %304 = arith.addf %303, %302 : vector<8x64xf32>
    %305 = arith.divf %303, %304 : vector<8x64xf32>
    %306 = vector.extract_strided_slice %299 {offsets = [0, 64], sizes = [8, 64], strides = [1, 1]} : vector<8x256xf32> to vector<8x64xf32>
    %307 = arith.negf %306 : vector<8x64xf32>
    %308 = math.exp %307 : vector<8x64xf32>
    %cst_67 = arith.constant 1.000000e+00 : f32
    %309 = vector.broadcast %cst_67 : f32 to vector<8x64xf32>
    %310 = arith.addf %309, %308 : vector<8x64xf32>
    %311 = arith.divf %309, %310 : vector<8x64xf32>
    %312 = vector.extract_strided_slice %299 {offsets = [0, 128], sizes = [8, 64], strides = [1, 1]} : vector<8x256xf32> to vector<8x64xf32>
    %313 = math.tanh %312 : vector<8x64xf32>
    %314 = vector.extract_strided_slice %299 {offsets = [0, 192], sizes = [8, 64], strides = [1, 1]} : vector<8x256xf32> to vector<8x64xf32>
    %315 = arith.negf %314 : vector<8x64xf32>
    %316 = math.exp %315 : vector<8x64xf32>
    %cst_68 = arith.constant 1.000000e+00 : f32
    %317 = vector.broadcast %cst_68 : f32 to vector<8x64xf32>
    %318 = arith.addf %317, %316 : vector<8x64xf32>
    %319 = arith.divf %317, %318 : vector<8x64xf32>
    %320 = arith.mulf %311, %285 : vector<8x64xf32>
    %321 = arith.mulf %305, %313 : vector<8x64xf32>
    %322 = arith.addf %320, %321 : vector<8x64xf32>
    %323 = math.tanh %322 : vector<8x64xf32>
    %324 = arith.mulf %319, %323 : vector<8x64xf32>
    %325 = tpu.concatenate %324, %286 in 1 : vector<8x64xf32>, vector<8x64xf32> -> vector<8x128xf32>
    %cst_69 = arith.constant dense<0.000000e+00> : vector<8x256xf32>
    %326 = tpu.matmul %325, %1, %cst_69 {dimension_numbers = #tpu.dot_dimension_numbers<[1], [0], [0], [1], [0, 0, 1, 1], [], []>} : vector<8x128xf32>, vector<128x256xf32>, vector<8x256xf32> -> vector<8x256xf32>
    %327 = arith.addf %326, %4 : vector<8x256xf32>
    %328 = vector.extract_strided_slice %327 {offsets = [0, 0], sizes = [8, 64], strides = [1, 1]} : vector<8x256xf32> to vector<8x64xf32>
    %329 = arith.negf %328 : vector<8x64xf32>
    %330 = math.exp %329 : vector<8x64xf32>
    %cst_70 = arith.constant 1.000000e+00 : f32
    %331 = vector.broadcast %cst_70 : f32 to vector<8x64xf32>
    %332 = arith.addf %331, %330 : vector<8x64xf32>
    %333 = arith.divf %331, %332 : vector<8x64xf32>
    %334 = vector.extract_strided_slice %327 {offsets = [0, 64], sizes = [8, 64], strides = [1, 1]} : vector<8x256xf32> to vector<8x64xf32>
    %335 = arith.negf %334 : vector<8x64xf32>
    %336 = math.exp %335 : vector<8x64xf32>
    %cst_71 = arith.constant 1.000000e+00 : f32
    %337 = vector.broadcast %cst_71 : f32 to vector<8x64xf32>
    %338 = arith.addf %337, %336 : vector<8x64xf32>
    %339 = arith.divf %337, %338 : vector<8x64xf32>
    %340 = vector.extract_strided_slice %327 {offsets = [0, 128], sizes = [8, 64], strides = [1, 1]} : vector<8x256xf32> to vector<8x64xf32>
    %341 = math.tanh %340 : vector<8x64xf32>
    %342 = vector.extract_strided_slice %327 {offsets = [0, 192], sizes = [8, 64], strides = [1, 1]} : vector<8x256xf32> to vector<8x64xf32>
    %343 = arith.negf %342 : vector<8x64xf32>
    %344 = math.exp %343 : vector<8x64xf32>
    %cst_72 = arith.constant 1.000000e+00 : f32
    %345 = vector.broadcast %cst_72 : f32 to vector<8x64xf32>
    %346 = arith.addf %345, %344 : vector<8x64xf32>
    %347 = arith.divf %345, %346 : vector<8x64xf32>
    %348 = arith.mulf %339, %287 : vector<8x64xf32>
    %349 = arith.mulf %333, %341 : vector<8x64xf32>
    %350 = arith.addf %348, %349 : vector<8x64xf32>
    %351 = math.tanh %350 : vector<8x64xf32>
    %352 = arith.mulf %347, %351 : vector<8x64xf32>
    %353 = arith.select %295, %324, %284 : vector<8x64xi1>, vector<8x64xf32>
    %354 = arith.select %295, %322, %285 : vector<8x64xi1>, vector<8x64xf32>
    %355 = arith.select %295, %352, %286 : vector<8x64xi1>, vector<8x64xf32>
    %356 = arith.select %295, %350, %287 : vector<8x64xi1>, vector<8x64xf32>
    %cst_73 = arith.constant 0.000000e+00 : f32
    %357 = vector.broadcast %cst_73 : f32 to vector<8x64xf32>
    %358 = arith.select %295, %355, %357 : vector<8x64xi1>, vector<8x64xf32>
    %359 = arith.index_cast %293 : i32 to index
    %c0_74 = arith.constant 0 : index
    %360 = vector.load %arg14[%359, %c0_74] : memref<64x64xf32, #tpu.memory_space<vmem>>, vector<8x64xf32>
    tpu.vector_store %arg14[%359, %c0_74], %358 {strides = array<i32>} : memref<64x64xf32, #tpu.memory_space<vmem>>, vector<8x64xf32>,
    %c5_i32 = arith.constant 5 : i32
    %c8_i32_75 = arith.constant 8 : i32
    %361 = arith.muli %c5_i32, %c8_i32_75 : i32
    %362 = tpu.assume_multiple %361, 8 : i32
    %363 = vector.broadcast %c5_i32 : i32 to vector<8x64xi32>
    %364 = arith.cmpi slt, %363, %7 : vector<8x64xi32>
    %365 = arith.index_cast %362 : i32 to index
    %c0_76 = arith.constant 0 : index
    %366 = vector.load %arg13[%365, %c0_76] : memref<64x256xf32, #tpu.memory_space<vmem>>, vector<8x256xf32>
    %cst_77 = arith.constant dense<0.000000e+00> : vector<8x256xf32>
    %367 = tpu.matmul %353, %0, %cst_77 {dimension_numbers = #tpu.dot_dimension_numbers<[1], [0], [0], [1], [0, 0, 1, 1], [], []>} : vector<8x64xf32>, vector<64x256xf32>, vector<8x256xf32> -> vector<8x256xf32>
    %368 = arith.addf %366, %367 : vector<8x256xf32>
    %369 = vector.extract_strided_slice %368 {offsets = [0, 0], sizes = [8, 64], strides = [1, 1]} : vector<8x256xf32> to vector<8x64xf32>
    %370 = arith.negf %369 : vector<8x64xf32>
    %371 = math.exp %370 : vector<8x64xf32>
    %cst_78 = arith.constant 1.000000e+00 : f32
    %372 = vector.broadcast %cst_78 : f32 to vector<8x64xf32>
    %373 = arith.addf %372, %371 : vector<8x64xf32>
    %374 = arith.divf %372, %373 : vector<8x64xf32>
    %375 = vector.extract_strided_slice %368 {offsets = [0, 64], sizes = [8, 64], strides = [1, 1]} : vector<8x256xf32> to vector<8x64xf32>
    %376 = arith.negf %375 : vector<8x64xf32>
    %377 = math.exp %376 : vector<8x64xf32>
    %cst_79 = arith.constant 1.000000e+00 : f32
    %378 = vector.broadcast %cst_79 : f32 to vector<8x64xf32>
    %379 = arith.addf %378, %377 : vector<8x64xf32>
    %380 = arith.divf %378, %379 : vector<8x64xf32>
    %381 = vector.extract_strided_slice %368 {offsets = [0, 128], sizes = [8, 64], strides = [1, 1]} : vector<8x256xf32> to vector<8x64xf32>
    %382 = math.tanh %381 : vector<8x64xf32>
    %383 = vector.extract_strided_slice %368 {offsets = [0, 192], sizes = [8, 64], strides = [1, 1]} : vector<8x256xf32> to vector<8x64xf32>
    %384 = arith.negf %383 : vector<8x64xf32>
    %385 = math.exp %384 : vector<8x64xf32>
    %cst_80 = arith.constant 1.000000e+00 : f32
    %386 = vector.broadcast %cst_80 : f32 to vector<8x64xf32>
    %387 = arith.addf %386, %385 : vector<8x64xf32>
    %388 = arith.divf %386, %387 : vector<8x64xf32>
    %389 = arith.mulf %380, %354 : vector<8x64xf32>
    %390 = arith.mulf %374, %382 : vector<8x64xf32>
    %391 = arith.addf %389, %390 : vector<8x64xf32>
    %392 = math.tanh %391 : vector<8x64xf32>
    %393 = arith.mulf %388, %392 : vector<8x64xf32>
    %394 = tpu.concatenate %393, %355 in 1 : vector<8x64xf32>, vector<8x64xf32> -> vector<8x128xf32>
    %cst_81 = arith.constant dense<0.000000e+00> : vector<8x256xf32>
    %395 = tpu.matmul %394, %1, %cst_81 {dimension_numbers = #tpu.dot_dimension_numbers<[1], [0], [0], [1], [0, 0, 1, 1], [], []>} : vector<8x128xf32>, vector<128x256xf32>, vector<8x256xf32> -> vector<8x256xf32>
    %396 = arith.addf %395, %4 : vector<8x256xf32>
    %397 = vector.extract_strided_slice %396 {offsets = [0, 0], sizes = [8, 64], strides = [1, 1]} : vector<8x256xf32> to vector<8x64xf32>
    %398 = arith.negf %397 : vector<8x64xf32>
    %399 = math.exp %398 : vector<8x64xf32>
    %cst_82 = arith.constant 1.000000e+00 : f32
    %400 = vector.broadcast %cst_82 : f32 to vector<8x64xf32>
    %401 = arith.addf %400, %399 : vector<8x64xf32>
    %402 = arith.divf %400, %401 : vector<8x64xf32>
    %403 = vector.extract_strided_slice %396 {offsets = [0, 64], sizes = [8, 64], strides = [1, 1]} : vector<8x256xf32> to vector<8x64xf32>
    %404 = arith.negf %403 : vector<8x64xf32>
    %405 = math.exp %404 : vector<8x64xf32>
    %cst_83 = arith.constant 1.000000e+00 : f32
    %406 = vector.broadcast %cst_83 : f32 to vector<8x64xf32>
    %407 = arith.addf %406, %405 : vector<8x64xf32>
    %408 = arith.divf %406, %407 : vector<8x64xf32>
    %409 = vector.extract_strided_slice %396 {offsets = [0, 128], sizes = [8, 64], strides = [1, 1]} : vector<8x256xf32> to vector<8x64xf32>
    %410 = math.tanh %409 : vector<8x64xf32>
    %411 = vector.extract_strided_slice %396 {offsets = [0, 192], sizes = [8, 64], strides = [1, 1]} : vector<8x256xf32> to vector<8x64xf32>
    %412 = arith.negf %411 : vector<8x64xf32>
    %413 = math.exp %412 : vector<8x64xf32>
    %cst_84 = arith.constant 1.000000e+00 : f32
    %414 = vector.broadcast %cst_84 : f32 to vector<8x64xf32>
    %415 = arith.addf %414, %413 : vector<8x64xf32>
    %416 = arith.divf %414, %415 : vector<8x64xf32>
    %417 = arith.mulf %408, %356 : vector<8x64xf32>
    %418 = arith.mulf %402, %410 : vector<8x64xf32>
    %419 = arith.addf %417, %418 : vector<8x64xf32>
    %420 = math.tanh %419 : vector<8x64xf32>
    %421 = arith.mulf %416, %420 : vector<8x64xf32>
    %422 = arith.select %364, %393, %353 : vector<8x64xi1>, vector<8x64xf32>
    %423 = arith.select %364, %391, %354 : vector<8x64xi1>, vector<8x64xf32>
    %424 = arith.select %364, %421, %355 : vector<8x64xi1>, vector<8x64xf32>
    %425 = arith.select %364, %419, %356 : vector<8x64xi1>, vector<8x64xf32>
    %cst_85 = arith.constant 0.000000e+00 : f32
    %426 = vector.broadcast %cst_85 : f32 to vector<8x64xf32>
    %427 = arith.select %364, %424, %426 : vector<8x64xi1>, vector<8x64xf32>
    %428 = arith.index_cast %362 : i32 to index
    %c0_86 = arith.constant 0 : index
    %429 = vector.load %arg14[%428, %c0_86] : memref<64x64xf32, #tpu.memory_space<vmem>>, vector<8x64xf32>
    tpu.vector_store %arg14[%428, %c0_86], %427 {strides = array<i32>} : memref<64x64xf32, #tpu.memory_space<vmem>>, vector<8x64xf32>,
    %c6_i32 = arith.constant 6 : i32
    %c8_i32_87 = arith.constant 8 : i32
    %430 = arith.muli %c6_i32, %c8_i32_87 : i32
    %431 = tpu.assume_multiple %430, 8 : i32
    %432 = vector.broadcast %c6_i32 : i32 to vector<8x64xi32>
    %433 = arith.cmpi slt, %432, %7 : vector<8x64xi32>
    %434 = arith.index_cast %431 : i32 to index
    %c0_88 = arith.constant 0 : index
    %435 = vector.load %arg13[%434, %c0_88] : memref<64x256xf32, #tpu.memory_space<vmem>>, vector<8x256xf32>
    %cst_89 = arith.constant dense<0.000000e+00> : vector<8x256xf32>
    %436 = tpu.matmul %422, %0, %cst_89 {dimension_numbers = #tpu.dot_dimension_numbers<[1], [0], [0], [1], [0, 0, 1, 1], [], []>} : vector<8x64xf32>, vector<64x256xf32>, vector<8x256xf32> -> vector<8x256xf32>
    %437 = arith.addf %435, %436 : vector<8x256xf32>
    %438 = vector.extract_strided_slice %437 {offsets = [0, 0], sizes = [8, 64], strides = [1, 1]} : vector<8x256xf32> to vector<8x64xf32>
    %439 = arith.negf %438 : vector<8x64xf32>
    %440 = math.exp %439 : vector<8x64xf32>
    %cst_90 = arith.constant 1.000000e+00 : f32
    %441 = vector.broadcast %cst_90 : f32 to vector<8x64xf32>
    %442 = arith.addf %441, %440 : vector<8x64xf32>
    %443 = arith.divf %441, %442 : vector<8x64xf32>
    %444 = vector.extract_strided_slice %437 {offsets = [0, 64], sizes = [8, 64], strides = [1, 1]} : vector<8x256xf32> to vector<8x64xf32>
    %445 = arith.negf %444 : vector<8x64xf32>
    %446 = math.exp %445 : vector<8x64xf32>
    %cst_91 = arith.constant 1.000000e+00 : f32
    %447 = vector.broadcast %cst_91 : f32 to vector<8x64xf32>
    %448 = arith.addf %447, %446 : vector<8x64xf32>
    %449 = arith.divf %447, %448 : vector<8x64xf32>
    %450 = vector.extract_strided_slice %437 {offsets = [0, 128], sizes = [8, 64], strides = [1, 1]} : vector<8x256xf32> to vector<8x64xf32>
    %451 = math.tanh %450 : vector<8x64xf32>
    %452 = vector.extract_strided_slice %437 {offsets = [0, 192], sizes = [8, 64], strides = [1, 1]} : vector<8x256xf32> to vector<8x64xf32>
    %453 = arith.negf %452 : vector<8x64xf32>
    %454 = math.exp %453 : vector<8x64xf32>
    %cst_92 = arith.constant 1.000000e+00 : f32
    %455 = vector.broadcast %cst_92 : f32 to vector<8x64xf32>
    %456 = arith.addf %455, %454 : vector<8x64xf32>
    %457 = arith.divf %455, %456 : vector<8x64xf32>
    %458 = arith.mulf %449, %423 : vector<8x64xf32>
    %459 = arith.mulf %443, %451 : vector<8x64xf32>
    %460 = arith.addf %458, %459 : vector<8x64xf32>
    %461 = math.tanh %460 : vector<8x64xf32>
    %462 = arith.mulf %457, %461 : vector<8x64xf32>
    %463 = tpu.concatenate %462, %424 in 1 : vector<8x64xf32>, vector<8x64xf32> -> vector<8x128xf32>
    %cst_93 = arith.constant dense<0.000000e+00> : vector<8x256xf32>
    %464 = tpu.matmul %463, %1, %cst_93 {dimension_numbers = #tpu.dot_dimension_numbers<[1], [0], [0], [1], [0, 0, 1, 1], [], []>} : vector<8x128xf32>, vector<128x256xf32>, vector<8x256xf32> -> vector<8x256xf32>
    %465 = arith.addf %464, %4 : vector<8x256xf32>
    %466 = vector.extract_strided_slice %465 {offsets = [0, 0], sizes = [8, 64], strides = [1, 1]} : vector<8x256xf32> to vector<8x64xf32>
    %467 = arith.negf %466 : vector<8x64xf32>
    %468 = math.exp %467 : vector<8x64xf32>
    %cst_94 = arith.constant 1.000000e+00 : f32
    %469 = vector.broadcast %cst_94 : f32 to vector<8x64xf32>
    %470 = arith.addf %469, %468 : vector<8x64xf32>
    %471 = arith.divf %469, %470 : vector<8x64xf32>
    %472 = vector.extract_strided_slice %465 {offsets = [0, 64], sizes = [8, 64], strides = [1, 1]} : vector<8x256xf32> to vector<8x64xf32>
    %473 = arith.negf %472 : vector<8x64xf32>
    %474 = math.exp %473 : vector<8x64xf32>
    %cst_95 = arith.constant 1.000000e+00 : f32
    %475 = vector.broadcast %cst_95 : f32 to vector<8x64xf32>
    %476 = arith.addf %475, %474 : vector<8x64xf32>
    %477 = arith.divf %475, %476 : vector<8x64xf32>
    %478 = vector.extract_strided_slice %465 {offsets = [0, 128], sizes = [8, 64], strides = [1, 1]} : vector<8x256xf32> to vector<8x64xf32>
    %479 = math.tanh %478 : vector<8x64xf32>
    %480 = vector.extract_strided_slice %465 {offsets = [0, 192], sizes = [8, 64], strides = [1, 1]} : vector<8x256xf32> to vector<8x64xf32>
    %481 = arith.negf %480 : vector<8x64xf32>
    %482 = math.exp %481 : vector<8x64xf32>
    %cst_96 = arith.constant 1.000000e+00 : f32
    %483 = vector.broadcast %cst_96 : f32 to vector<8x64xf32>
    %484 = arith.addf %483, %482 : vector<8x64xf32>
    %485 = arith.divf %483, %484 : vector<8x64xf32>
    %486 = arith.mulf %477, %425 : vector<8x64xf32>
    %487 = arith.mulf %471, %479 : vector<8x64xf32>
    %488 = arith.addf %486, %487 : vector<8x64xf32>
    %489 = math.tanh %488 : vector<8x64xf32>
    %490 = arith.mulf %485, %489 : vector<8x64xf32>
    %491 = arith.select %433, %462, %422 : vector<8x64xi1>, vector<8x64xf32>
    %492 = arith.select %433, %460, %423 : vector<8x64xi1>, vector<8x64xf32>
    %493 = arith.select %433, %490, %424 : vector<8x64xi1>, vector<8x64xf32>
    %494 = arith.select %433, %488, %425 : vector<8x64xi1>, vector<8x64xf32>
    %cst_97 = arith.constant 0.000000e+00 : f32
    %495 = vector.broadcast %cst_97 : f32 to vector<8x64xf32>
    %496 = arith.select %433, %493, %495 : vector<8x64xi1>, vector<8x64xf32>
    %497 = arith.index_cast %431 : i32 to index
    %c0_98 = arith.constant 0 : index
    %498 = vector.load %arg14[%497, %c0_98] : memref<64x64xf32, #tpu.memory_space<vmem>>, vector<8x64xf32>
    tpu.vector_store %arg14[%497, %c0_98], %496 {strides = array<i32>} : memref<64x64xf32, #tpu.memory_space<vmem>>, vector<8x64xf32>,
    %c7_i32 = arith.constant 7 : i32
    %c8_i32_99 = arith.constant 8 : i32
    %499 = arith.muli %c7_i32, %c8_i32_99 : i32
    %500 = tpu.assume_multiple %499, 8 : i32
    %501 = vector.broadcast %c7_i32 : i32 to vector<8x64xi32>
    %502 = arith.cmpi slt, %501, %7 : vector<8x64xi32>
    %503 = arith.index_cast %500 : i32 to index
    %c0_100 = arith.constant 0 : index
    %504 = vector.load %arg13[%503, %c0_100] : memref<64x256xf32, #tpu.memory_space<vmem>>, vector<8x256xf32>
    %cst_101 = arith.constant dense<0.000000e+00> : vector<8x256xf32>
    %505 = tpu.matmul %491, %0, %cst_101 {dimension_numbers = #tpu.dot_dimension_numbers<[1], [0], [0], [1], [0, 0, 1, 1], [], []>} : vector<8x64xf32>, vector<64x256xf32>, vector<8x256xf32> -> vector<8x256xf32>
    %506 = arith.addf %504, %505 : vector<8x256xf32>
    %507 = vector.extract_strided_slice %506 {offsets = [0, 0], sizes = [8, 64], strides = [1, 1]} : vector<8x256xf32> to vector<8x64xf32>
    %508 = arith.negf %507 : vector<8x64xf32>
    %509 = math.exp %508 : vector<8x64xf32>
    %cst_102 = arith.constant 1.000000e+00 : f32
    %510 = vector.broadcast %cst_102 : f32 to vector<8x64xf32>
    %511 = arith.addf %510, %509 : vector<8x64xf32>
    %512 = arith.divf %510, %511 : vector<8x64xf32>
    %513 = vector.extract_strided_slice %506 {offsets = [0, 64], sizes = [8, 64], strides = [1, 1]} : vector<8x256xf32> to vector<8x64xf32>
    %514 = arith.negf %513 : vector<8x64xf32>
    %515 = math.exp %514 : vector<8x64xf32>
    %cst_103 = arith.constant 1.000000e+00 : f32
    %516 = vector.broadcast %cst_103 : f32 to vector<8x64xf32>
    %517 = arith.addf %516, %515 : vector<8x64xf32>
    %518 = arith.divf %516, %517 : vector<8x64xf32>
    %519 = vector.extract_strided_slice %506 {offsets = [0, 128], sizes = [8, 64], strides = [1, 1]} : vector<8x256xf32> to vector<8x64xf32>
    %520 = math.tanh %519 : vector<8x64xf32>
    %521 = vector.extract_strided_slice %506 {offsets = [0, 192], sizes = [8, 64], strides = [1, 1]} : vector<8x256xf32> to vector<8x64xf32>
    %522 = arith.negf %521 : vector<8x64xf32>
    %523 = math.exp %522 : vector<8x64xf32>
    %cst_104 = arith.constant 1.000000e+00 : f32
    %524 = vector.broadcast %cst_104 : f32 to vector<8x64xf32>
    %525 = arith.addf %524, %523 : vector<8x64xf32>
    %526 = arith.divf %524, %525 : vector<8x64xf32>
    %527 = arith.mulf %518, %492 : vector<8x64xf32>
    %528 = arith.mulf %512, %520 : vector<8x64xf32>
    %529 = arith.addf %527, %528 : vector<8x64xf32>
    %530 = math.tanh %529 : vector<8x64xf32>
    %531 = arith.mulf %526, %530 : vector<8x64xf32>
    %532 = tpu.concatenate %531, %493 in 1 : vector<8x64xf32>, vector<8x64xf32> -> vector<8x128xf32>
    %cst_105 = arith.constant dense<0.000000e+00> : vector<8x256xf32>
    %533 = tpu.matmul %532, %1, %cst_105 {dimension_numbers = #tpu.dot_dimension_numbers<[1], [0], [0], [1], [0, 0, 1, 1], [], []>} : vector<8x128xf32>, vector<128x256xf32>, vector<8x256xf32> -> vector<8x256xf32>
    %534 = arith.addf %533, %4 : vector<8x256xf32>
    %535 = vector.extract_strided_slice %534 {offsets = [0, 0], sizes = [8, 64], strides = [1, 1]} : vector<8x256xf32> to vector<8x64xf32>
    %536 = arith.negf %535 : vector<8x64xf32>
    %537 = math.exp %536 : vector<8x64xf32>
    %cst_106 = arith.constant 1.000000e+00 : f32
    %538 = vector.broadcast %cst_106 : f32 to vector<8x64xf32>
    %539 = arith.addf %538, %537 : vector<8x64xf32>
    %540 = arith.divf %538, %539 : vector<8x64xf32>
    %541 = vector.extract_strided_slice %534 {offsets = [0, 64], sizes = [8, 64], strides = [1, 1]} : vector<8x256xf32> to vector<8x64xf32>
    %542 = arith.negf %541 : vector<8x64xf32>
    %543 = math.exp %542 : vector<8x64xf32>
    %cst_107 = arith.constant 1.000000e+00 : f32
    %544 = vector.broadcast %cst_107 : f32 to vector<8x64xf32>
    %545 = arith.addf %544, %543 : vector<8x64xf32>
    %546 = arith.divf %544, %545 : vector<8x64xf32>
    %547 = vector.extract_strided_slice %534 {offsets = [0, 128], sizes = [8, 64], strides = [1, 1]} : vector<8x256xf32> to vector<8x64xf32>
    %548 = math.tanh %547 : vector<8x64xf32>
    %549 = vector.extract_strided_slice %534 {offsets = [0, 192], sizes = [8, 64], strides = [1, 1]} : vector<8x256xf32> to vector<8x64xf32>
    %550 = arith.negf %549 : vector<8x64xf32>
    %551 = math.exp %550 : vector<8x64xf32>
    %cst_108 = arith.constant 1.000000e+00 : f32
    %552 = vector.broadcast %cst_108 : f32 to vector<8x64xf32>
    %553 = arith.addf %552, %551 : vector<8x64xf32>
    %554 = arith.divf %552, %553 : vector<8x64xf32>
    %555 = arith.mulf %546, %494 : vector<8x64xf32>
    %556 = arith.mulf %540, %548 : vector<8x64xf32>
    %557 = arith.addf %555, %556 : vector<8x64xf32>
    %558 = math.tanh %557 : vector<8x64xf32>
    %559 = arith.mulf %554, %558 : vector<8x64xf32>
    %560 = arith.select %502, %531, %491 : vector<8x64xi1>, vector<8x64xf32>
    %561 = arith.select %502, %529, %492 : vector<8x64xi1>, vector<8x64xf32>
    %562 = arith.select %502, %559, %493 : vector<8x64xi1>, vector<8x64xf32>
    %563 = arith.select %502, %557, %494 : vector<8x64xi1>, vector<8x64xf32>
    %cst_109 = arith.constant 0.000000e+00 : f32
    %564 = vector.broadcast %cst_109 : f32 to vector<8x64xf32>
    %565 = arith.select %502, %562, %564 : vector<8x64xi1>, vector<8x64xf32>
    %566 = arith.index_cast %500 : i32 to index
    %c0_110 = arith.constant 0 : index
    %567 = vector.load %arg14[%566, %c0_110] : memref<64x64xf32, #tpu.memory_space<vmem>>, vector<8x64xf32>
    tpu.vector_store %arg14[%566, %c0_110], %565 {strides = array<i32>} : memref<64x64xf32, #tpu.memory_space<vmem>>, vector<8x64xf32>,
    %c8_i32_111 = arith.constant 8 : i32
    %c0_112 = arith.constant 0 : index
    %c0_113 = arith.constant 0 : index
    %568 = vector.load %arg12[%c0_112, %c0_113] : memref<32x64xf32, #tpu.memory_space<vmem>>, vector<8x64xf32>
    tpu.vector_store %arg12[%c0_112, %c0_113], %560 {strides = array<i32>} : memref<32x64xf32, #tpu.memory_space<vmem>>, vector<8x64xf32>,
    %c8 = arith.constant 8 : index
    %c0_114 = arith.constant 0 : index
    %569 = vector.load %arg12[%c8, %c0_114] : memref<32x64xf32, #tpu.memory_space<vmem>>, vector<8x64xf32>
    tpu.vector_store %arg12[%c8, %c0_114], %562 {strides = array<i32>} : memref<32x64xf32, #tpu.memory_space<vmem>>, vector<8x64xf32>,
    %c16 = arith.constant 16 : index
    %c0_115 = arith.constant 0 : index
    %570 = vector.load %arg12[%c16, %c0_115] : memref<32x64xf32, #tpu.memory_space<vmem>>, vector<8x64xf32>
    tpu.vector_store %arg12[%c16, %c0_115], %561 {strides = array<i32>} : memref<32x64xf32, #tpu.memory_space<vmem>>, vector<8x64xf32>,
    %c24 = arith.constant 24 : index
    %c0_116 = arith.constant 0 : index
    %571 = vector.load %arg12[%c24, %c0_116] : memref<32x64xf32, #tpu.memory_space<vmem>>, vector<8x64xf32>
    tpu.vector_store %arg12[%c24, %c0_116], %563 {strides = array<i32>} : memref<32x64xf32, #tpu.memory_space<vmem>>, vector<8x64xf32>,
    %c0_117 = arith.constant 0 : index
    %c0_118 = arith.constant 0 : index
    %572 = vector.load %arg14[%c0_117, %c0_118] : memref<64x64xf32, #tpu.memory_space<vmem>>, vector<64x64xf32>
    %c0_119 = arith.constant 0 : index
    %c0_120 = arith.constant 0 : index
    %573 = vector.load %arg7[%c0_119, %c0_120] : memref<64x64xf32, #tpu.memory_space<vmem>>, vector<64x64xf32>
    %cst_121 = arith.constant dense<0.000000e+00> : vector<64x64xf32>
    %574 = tpu.matmul %572, %573, %cst_121 {dimension_numbers = #tpu.dot_dimension_numbers<[1], [0], [0], [1], [0, 0, 1, 1], [], []>} : vector<64x64xf32>, vector<64x64xf32>, vector<64x64xf32> -> vector<64x64xf32>
    %c0_122 = arith.constant 0 : index
    %c0_123 = arith.constant 0 : index
    %575 = vector.load %arg8[%c0_122, %c0_123] : memref<1x64xf32, #tpu.memory_space<vmem>>, vector<1x64xf32>
    %576 = vector.broadcast %575 : vector<1x64xf32> to vector<64x64xf32>
    %577 = arith.addf %574, %576 : vector<64x64xf32>
    %578 = math.tanh %577 : vector<64x64xf32>
    %c0_124 = arith.constant 0 : index
    %c0_125 = arith.constant 0 : index
    %579 = vector.load %arg9[%c0_124, %c0_125] : memref<64x128xf32, #tpu.memory_space<vmem>>, vector<64x128xf32>
    %cst_126 = arith.constant dense<0.000000e+00> : vector<64x128xf32>
    %580 = tpu.matmul %578, %579, %cst_126 {dimension_numbers = #tpu.dot_dimension_numbers<[1], [0], [0], [1], [0, 0, 1, 1], [], []>} : vector<64x64xf32>, vector<64x128xf32>, vector<64x128xf32> -> vector<64x128xf32>
    %c0_127 = arith.constant 0 : index
    %c0_128 = arith.constant 0 : index
    %581 = vector.load %arg10[%c0_127, %c0_128] : memref<1x128xf32, #tpu.memory_space<vmem>>, vector<1x128xf32>
    %582 = vector.broadcast %581 : vector<1x128xf32> to vector<64x128xf32>
    %583 = arith.addf %580, %582 : vector<64x128xf32>
    %c0_129 = arith.constant 0 : index
    %c0_130 = arith.constant 0 : index
    %584 = vector.load %arg11[%c0_129, %c0_130] : memref<64x128xf32, #tpu.memory_space<vmem>>, vector<64x128xf32>
    tpu.vector_store %arg11[%c0_129, %c0_130], %583 {strides = array<i32>} : memref<64x128xf32, #tpu.memory_space<vmem>>, vector<64x128xf32>,
    return
  }
}

</mosaic_0001>

<llo_original>
// kernel: tpu_custom_call.1
$region0: #{tpu_custom_call.1}
  #allocation0 [shape = 'u32[]', space=smem, size = 0x4, offset = 0x4, fixed_abs, tag = 'smem constant byte address 0x4 - core index']
  #allocation1 [shape = 'u32[72,128]{1,0:T(1,128)}', space=vmem, size = 0x9000, scoped, tag = 'internal scratch']
  #allocation2 [shape = 'f32[64,256]{1,0:T(8,128)}', space=vmem, size = 0x10000, scoped, tag = 'scratch operand']
  #allocation3 [shape = 'f32[64,64]{1,0:T(8,128)}', space=vmem, size = 0x8000, scoped, tag = 'scratch operand']
  %s0 = inlined_call_operand.vmem [shape: s32[8,1], index: 0, kind: input, shape index: {}]
  %s1 = inlined_call_operand.hbm [shape: f32[64,297], index: 1, kind: input, shape index: {}]
  %s2 = inlined_call_operand.hbm [shape: f32[297,256], index: 2, kind: input, shape index: {}]
  %s3 = inlined_call_operand.hbm [shape: f32[64,256], index: 3, kind: input, shape index: {}]
  %s4 = inlined_call_operand.vmem [shape: f32[1,256], index: 4, kind: input, shape index: {}]
  %s5 = inlined_call_operand.hbm [shape: f32[128,256], index: 5, kind: input, shape index: {}]
  %s6 = inlined_call_operand.vmem [shape: f32[1,256], index: 6, kind: input, shape index: {}]
  %s7 = inlined_call_operand.hbm [shape: f32[64,64], index: 7, kind: input, shape index: {}]
  %s8 = inlined_call_operand.vmem [shape: f32[1,64], index: 8, kind: input, shape index: {}]
  %s9 = inlined_call_operand.hbm [shape: f32[64,128], index: 9, kind: input, shape index: {}]
  %s10 = inlined_call_operand.vmem [shape: f32[1,128], index: 10, kind: input, shape index: {}]
  %s11 = inlined_call_operand.hbm [shape: f32[64,128], index: 11, kind: output, shape index: {0}]
  %s12 = inlined_call_operand.hbm [shape: f32[32,64], index: 12, kind: output, shape index: {1}]
  %13 = xla_tuple %s11, %s12
  %s14 = sld [smem:[#allocation0]]
  $region86: #{tpu_custom_call.1} parent=0
    _
  %s16 = ssub.s32 1, %s14
  %s17 = scalar_select 0, %s16, %s14
  $region1: #{tpu_custom_call.1} parent=0
    #allocation4 [shape = 'u8[98304]{0}', space=vmem, size = 0x18000, scoped, tag = 'input window, operand 1, single buffered']
    #allocation5 [shape = 's32[1]{0}', space=sflag, size = 0x4, scoped, tag = 'scoped memory for tpu_custom_call.1']
    #allocation6 [shape = 's32[1]{0}', space=sflag, size = 0x4, scoped, tag = 'scoped memory for tpu_custom_call.1']
    #allocation7 [shape = 'u8[311296]{0}', space=vmem, size = 0x4c000, scoped, tag = 'input window, operand 2, single buffered']
    #allocation8 [shape = 's32[1]{0}', space=sflag, size = 0x4, scoped, tag = 'scoped memory for tpu_custom_call.1']
    #allocation9 [shape = 'u8[65536]{0}', space=vmem, size = 0x10000, scoped, tag = 'input window, operand 3, single buffered']
    #allocation10 [shape = 'u8[131072]{0}', space=vmem, size = 0x20000, scoped, tag = 'input window, operand 5, single buffered']
    #allocation11 [shape = 's32[1]{0}', space=sflag, size = 0x4, scoped, tag = 'scoped memory for tpu_custom_call.1']
    #allocation12 [shape = 'u8[32768]{0}', space=vmem, size = 0x8000, scoped, tag = 'input window, operand 7, single buffered']
    #allocation13 [shape = 'u8[32768]{0}', space=vmem, size = 0x8000, scoped, tag = 'input window, operand 9, single buffered']
    #allocation14 [shape = 's32[1]{0}', space=sflag, size = 0x4, scoped, tag = 'scoped memory for tpu_custom_call.1']
    #allocation15 [shape = 'u8[32768]{0}', space=vmem, size = 0x8000, scoped, tag = 'output window, operand 0, single buffered']
    #allocation16 [shape = 'u8[16384]{0}', space=vmem, size = 0x4000, scoped, tag = 'output window, operand 1, single buffered']
    #allocation17 [shape = 's32[1]{0}', space=sflag, size = 0x4, scoped, tag = 'scoped memory for tpu_custom_call.1']
    %18 = vsyncpa [#allocation5], 0
    %19 = vsyncpa [#allocation8], 0
    %20 = vsyncpa [#allocation11], 0
    %21 = vsyncpa [#allocation14], 0
    %22 = vsyncpa [#allocation6], 0
    %23 = vsyncpa [#allocation17], 0
    // Predicated region
    $region2: #{tpu_custom_call.1} parent=1 // pred_check
      _
    $region3: #{tpu_custom_call.1} parent=1 // pred_check_branch
      %25 = sbr.rel (0) target = $region5
    $region4: #{tpu_custom_call.1} parent=1 // pred_region
      _
    $region5: #{tpu_custom_call.1} parent=1 // pred_fallthru
      _
    // Predicated region
    $region6: #{tpu_custom_call.1} parent=1 // pred_check
      _
    $region7: #{tpu_custom_call.1} parent=1 // pred_check_branch
      %27 = sbr.rel (0) target = $region9
    $region8: #{tpu_custom_call.1} parent=1 // pred_region
      %29 = vsyncadd [#allocation5], 0
      %s30 = sshll.u32 %s1, 4
      %s31 = int_to_ptr.hbm [resolvable:$true] %s30
      %s32 = sshll.u32 [#allocation4], 4
      %s33 = int_to_ptr.vmem [resolvable:$true] %s32
      %38 = dma.hbm_to_vmem [thread:$0]  %s31, 3072, %s33, [#allocation5], 384, 384, 24
    $region9: #{tpu_custom_call.1} parent=1 // pred_fallthru
      _
    // Predicated region
    $region10: #{tpu_custom_call.1} parent=1 // pred_check
      _
    $region11: #{tpu_custom_call.1} parent=1 // pred_check_branch
      %40 = sbr.rel (0) target = $region13
    $region12: #{tpu_custom_call.1} parent=1 // pred_region
      %42 = vsyncadd [#allocation8], 0
      %s43 = sshll.u32 %s2, 4
      %s44 = int_to_ptr.hbm [resolvable:$true] %s43
      %s45 = sshll.u32 [#allocation7], 4
      %s46 = int_to_ptr.vmem [resolvable:$true] %s45
      %51 = dma.hbm_to_vmem [thread:$0]  %s44, 9728, %s46, [#allocation8], 256, 256, 16
    $region13: #{tpu_custom_call.1} parent=1 // pred_fallthru
      _
    // Predicated region
    $region14: #{tpu_custom_call.1} parent=1 // pred_check
      _
    $region15: #{tpu_custom_call.1} parent=1 // pred_check_branch
      %53 = sbr.rel (0) target = $region17
    $region16: #{tpu_custom_call.1} parent=1 // pred_region
      %55 = vsyncadd [#allocation8], 0
      %s56 = sshll.u32 %s3, 4
      %s57 = int_to_ptr.hbm [resolvable:$true] %s56
      %s58 = sshll.u32 [#allocation9], 4
      %s59 = int_to_ptr.vmem [resolvable:$true] %s58
      %64 = dma.hbm_to_vmem [thread:$0]  %s57, 2048, %s59, [#allocation8], 256, 256, 16
    $region17: #{tpu_custom_call.1} parent=1 // pred_fallthru
      _
    // Predicated region
    $region18: #{tpu_custom_call.1} parent=1 // pred_check
      _
    $region19: #{tpu_custom_call.1} parent=1 // pred_check_branch
      %66 = sbr.rel (0) target = $region21
    $region20: #{tpu_custom_call.1} parent=1 // pred_region
      _
    $region21: #{tpu_custom_call.1} parent=1 // pred_fallthru
      _
    // Predicated region
    $region22: #{tpu_custom_call.1} parent=1 // pred_check
      _
    $region23: #{tpu_custom_call.1} parent=1 // pred_check_branch
      %68 = sbr.rel (0) target = $region25
    $region24: #{tpu_custom_call.1} parent=1 // pred_region
      %70 = vsyncadd [#allocation11], 0
      %s71 = sshll.u32 %s5, 4
      %s72 = int_to_ptr.hbm [resolvable:$true] %s71
      %s73 = sshll.u32 [#allocation10], 4
      %s74 = int_to_ptr.vmem [resolvable:$true] %s73
      %79 = dma.hbm_to_vmem [thread:$0]  %s72, 4096, %s74, [#allocation11], 256, 256, 16
    $region25: #{tpu_custom_call.1} parent=1 // pred_fallthru
      _
    // Predicated region
    $region26: #{tpu_custom_call.1} parent=1 // pred_check
      _
    $region27: #{tpu_custom_call.1} parent=1 // pred_check_branch
      %81 = sbr.rel (0) target = $region29
    $region28: #{tpu_custom_call.1} parent=1 // pred_region
      _
    $region29: #{tpu_custom_call.1} parent=1 // pred_fallthru
      _
    // Predicated region
    $region30: #{tpu_custom_call.1} parent=1 // pred_check
      _
    $region31: #{tpu_custom_call.1} parent=1 // pred_check_branch
      %83 = sbr.rel (0) target = $region33
    $region32: #{tpu_custom_call.1} parent=1 // pred_region
      %85 = vsyncadd [#allocation11], 0
      %s86 = sshll.u32 %s7, 4
      %s87 = int_to_ptr.hbm [resolvable:$true] %s86
      %s88 = sshll.u32 [#allocation12], 4
      %s89 = int_to_ptr.vmem [resolvable:$true] %s88
      %94 = dma.hbm_to_vmem [thread:$0]  %s87, 1024, %s89, [#allocation11], 128, 128, 8
    $region33: #{tpu_custom_call.1} parent=1 // pred_fallthru
      _
    // Predicated region
    $region34: #{tpu_custom_call.1} parent=1 // pred_check
      _
    $region35: #{tpu_custom_call.1} parent=1 // pred_check_branch
      %96 = sbr.rel (0) target = $region37
    $region36: #{tpu_custom_call.1} parent=1 // pred_region
      _
    $region37: #{tpu_custom_call.1} parent=1 // pred_fallthru
      _
    // Predicated region
    $region38: #{tpu_custom_call.1} parent=1 // pred_check
      _
    $region39: #{tpu_custom_call.1} parent=1 // pred_check_branch
      %98 = sbr.rel (0) target = $region41
    $region40: #{tpu_custom_call.1} parent=1 // pred_region
      %100 = vsyncadd [#allocation14], 0
      %s101 = sshll.u32 %s9, 4
      %s102 = int_to_ptr.hbm [resolvable:$true] %s101
      %s103 = sshll.u32 [#allocation13], 4
      %s104 = int_to_ptr.vmem [resolvable:$true] %s103
      %109 = dma.hbm_to_vmem [thread:$0]  %s102, 1024, %s104, [#allocation14], 128, 128, 8
    $region41: #{tpu_custom_call.1} parent=1 // pred_fallthru
      _
    // Predicated region
    $region42: #{tpu_custom_call.1} parent=1 // pred_check
      _
    $region43: #{tpu_custom_call.1} parent=1 // pred_check_branch
      %111 = sbr.rel (0) target = $region45
    $region44: #{tpu_custom_call.1} parent=1 // pred_region
      _
    $region45: #{tpu_custom_call.1} parent=1 // pred_fallthru
      _
    // Predicated region
    $region46: #{tpu_custom_call.1} parent=1 // pred_check
      _
    $region47: #{tpu_custom_call.1} parent=1 // pred_check_branch
      %113 = sbr.rel (0) target = $region49
    $region48: #{tpu_custom_call.1} parent=1 // pred_region
      %115 = dma.done [#allocation5], 3072
    $region49: #{tpu_custom_call.1} parent=1 // pred_fallthru
      _
    // Predicated region
    $region50: #{tpu_custom_call.1} parent=1 // pred_check
      _
    $region51: #{tpu_custom_call.1} parent=1 // pred_check_branch
      %117 = sbr.rel (0) target = $region53
    $region52: #{tpu_custom_call.1} parent=1 // pred_region
      %119 = dma.done [#allocation8], 9728
    $region53: #{tpu_custom_call.1} parent=1 // pred_fallthru
      _
    // Predicated region
    $region54: #{tpu_custom_call.1} parent=1 // pred_check
      _
    $region55: #{tpu_custom_call.1} parent=1 // pred_check_branch
      %121 = sbr.rel (0) target = $region57
    $region56: #{tpu_custom_call.1} parent=1 // pred_region
      %123 = dma.done [#allocation8], 2048
    $region57: #{tpu_custom_call.1} parent=1 // pred_fallthru
      _
    // Predicated region
    $region58: #{tpu_custom_call.1} parent=1 // pred_check
      _
    $region59: #{tpu_custom_call.1} parent=1 // pred_check_branch
      %125 = sbr.rel (0) target = $region61
    $region60: #{tpu_custom_call.1} parent=1 // pred_region
      %127 = dma.done [#allocation11], 4096
    $region61: #{tpu_custom_call.1} parent=1 // pred_fallthru
      _
    // Predicated region
    $region62: #{tpu_custom_call.1} parent=1 // pred_check
      _
    $region63: #{tpu_custom_call.1} parent=1 // pred_check_branch
      %129 = sbr.rel (0) target = $region65
    $region64: #{tpu_custom_call.1} parent=1 // pred_region
      %131 = dma.done [#allocation11], 1024
    $region65: #{tpu_custom_call.1} parent=1 // pred_fallthru
      _
    // Predicated region
    $region66: #{tpu_custom_call.1} parent=1 // pred_check
      _
    $region67: #{tpu_custom_call.1} parent=1 // pred_check_branch
      %133 = sbr.rel (0) target = $region69
    $region68: #{tpu_custom_call.1} parent=1 // pred_region
      %135 = dma.done [#allocation14], 1024
    $region69: #{tpu_custom_call.1} parent=1 // pred_fallthru
      _
    %v136 = vld [vmem:[#allocation9] sm:$0xff]
    %v137 = vld [vmem:[#allocation9 + $0x8] sm:$0xff]
    %v138 = vld [vmem:[#allocation9 + $0x10] sm:$0xff]
    %v139 = vld [vmem:[#allocation9 + $0x18] sm:$0xff]
    %v140 = vld [vmem:[#allocation9 + $0x20] sm:$0xff]
    %v141 = vld [vmem:[#allocation9 + $0x28] sm:$0xff]
    %v142 = vld [vmem:[#allocation9 + $0x30] sm:$0xff]
    %v143 = vld [vmem:[#allocation9 + $0x38] sm:$0xff]
    %v144 = vld [vmem:[#allocation9 + $0x40] sm:$0xff]
    %v145 = vld [vmem:[#allocation9 + $0x48] sm:$0xff]
    %v146 = vld [vmem:[#allocation9 + $0x50] sm:$0xff]
    %v147 = vld [vmem:[#allocation9 + $0x58] sm:$0xff]
    %v148 = vld [vmem:[#allocation9 + $0x60] sm:$0xff]
    %v149 = vld [vmem:[#allocation9 + $0x68] sm:$0xff]
    %v150 = vld [vmem:[#allocation9 + $0x70] sm:$0xff]
    %v151 = vld [vmem:[#allocation9 + $0x78] sm:$0xff]
    %v152 = vld [vmem:[#allocation10] sm:$0xff]
    %v153 = vld [vmem:[#allocation10 + $0x8] sm:$0xff]
    %v154 = vld [vmem:[#allocation10 + $0x10] sm:$0xff]
    %v155 = vld [vmem:[#allocation10 + $0x18] sm:$0xff]
    %v156 = vld [vmem:[#allocation10 + $0x20] sm:$0xff]
    %v157 = vld [vmem:[#allocation10 + $0x28] sm:$0xff]
    %v158 = vld [vmem:[#allocation10 + $0x30] sm:$0xff]
    %v159 = vld [vmem:[#allocation10 + $0x38] sm:$0xff]
    %v160 = vld [vmem:[#allocation10 + $0x40] sm:$0xff]
    %v161 = vld [vmem:[#allocation10 + $0x48] sm:$0xff]
    %v162 = vld [vmem:[#allocation10 + $0x50] sm:$0xff]
    %v163 = vld [vmem:[#allocation10 + $0x58] sm:$0xff]
    %v164 = vld [vmem:[#allocation10 + $0x60] sm:$0xff]
    %v165 = vld [vmem:[#allocation10 + $0x68] sm:$0xff]
    %v166 = vld [vmem:[#allocation10 + $0x70] sm:$0xff]
    %v167 = vld [vmem:[#allocation10 + $0x78] sm:$0xff]
    %v168 = vld [vmem:[#allocation10 + $0x80] sm:$0xff]
    %v169 = vld [vmem:[#allocation10 + $0x88] sm:$0xff]
    %v170 = vld [vmem:[#allocation10 + $0x90] sm:$0xff]
    %v171 = vld [vmem:[#allocation10 + $0x98] sm:$0xff]
    %v172 = vld [vmem:[#allocation10 + $0xa0] sm:$0xff]
    %v173 = vld [vmem:[#allocation10 + $0xa8] sm:$0xff]
    %v174 = vld [vmem:[#allocation10 + $0xb0] sm:$0xff]
    %v175 = vld [vmem:[#allocation10 + $0xb8] sm:$0xff]
    %v176 = vld [vmem:[#allocation10 + $0xc0] sm:$0xff]
    %v177 = vld [vmem:[#allocation10 + $0xc8] sm:$0xff]
    %v178 = vld [vmem:[#allocation10 + $0xd0] sm:$0xff]
    %v179 = vld [vmem:[#allocation10 + $0xd8] sm:$0xff]
    %v180 = vld [vmem:[#allocation10 + $0xe0] sm:$0xff]
    %v181 = vld [vmem:[#allocation10 + $0xe8] sm:$0xff]
    %v182 = vld [vmem:[#allocation10 + $0xf0] sm:$0xff]
    %v183 = vld [vmem:[#allocation10 + $0xf8] sm:$0xff]
    %v184 = vld [vmem:[%s6] sm:$0x3]
    %v186 = vperm.slane %v184, 0
    %v187 = vperm.slane %v184, 1
    %v190 = vld [vmem:[%s0] sm:$0xff]
    %191 = vset.pattern.permute.xlu0 0
    %192 = vperm.xlu0 %191, %v190
    %v193 = vpop.permute.xlu0 %192
    %v194 = vld [vmem:[#allocation4] sm:$0xff]
    %v195 = vld [vmem:[#allocation4 + $0x8] sm:$0xff]
    %v196 = vld [vmem:[#allocation4 + $0x10] sm:$0xff]
    %v197 = vld [vmem:[#allocation4 + $0x18] sm:$0xff]
    %v198 = vld [vmem:[#allocation4 + $0x20] sm:$0xff]
    %v199 = vld [vmem:[#allocation4 + $0x28] sm:$0xff]
    %v200 = vld [vmem:[#allocation4 + $0x30] sm:$0xff]
    %v201 = vld [vmem:[#allocation4 + $0x38] sm:$0xff]
    %v202 = vld [vmem:[#allocation4 + $0x40] sm:$0xff]
    %v203 = vld [vmem:[#allocation4 + $0x48] sm:$0xff]
    %v204 = vld [vmem:[#allocation4 + $0x50] sm:$0xff]
    %v205 = vld [vmem:[#allocation4 + $0x58] sm:$0xff]
    %v206 = vld [vmem:[#allocation4 + $0x60] sm:$0xff]
    %v207 = vld [vmem:[#allocation4 + $0x68] sm:$0xff]
    %v208 = vld [vmem:[#allocation4 + $0x70] sm:$0xff]
    %v209 = vld [vmem:[#allocation4 + $0x78] sm:$0xff]
    %v210 = vld [vmem:[#allocation4 + $0x80] sm:$0xff]
    %v211 = vld [vmem:[#allocation4 + $0x88] sm:$0xff]
    %v212 = vld [vmem:[#allocation4 + $0x90] sm:$0xff]
    %v213 = vld [vmem:[#allocation4 + $0x98] sm:$0xff]
    %v214 = vld [vmem:[#allocation4 + $0xa0] sm:$0xff]
    %v215 = vld [vmem:[#allocation4 + $0xa8] sm:$0xff]
    %v216 = vld [vmem:[#allocation4 + $0xb0] sm:$0xff]
    %v217 = vld [vmem:[#allocation4 + $0xb8] sm:$0xff]
    %v218 = vld [vmem:[#allocation7] sm:$0xff]
    %v219 = vld [vmem:[#allocation7 + $0x8] sm:$0xff]
    %v220 = vld [vmem:[#allocation7 + $0x10] sm:$0xff]
    %v221 = vld [vmem:[#allocation7 + $0x18] sm:$0xff]
    %v222 = vld [vmem:[#allocation7 + $0x20] sm:$0xff]
    %v223 = vld [vmem:[#allocation7 + $0x28] sm:$0xff]
    %v224 = vld [vmem:[#allocation7 + $0x30] sm:$0xff]
    %v225 = vld [vmem:[#allocation7 + $0x38] sm:$0xff]
    %v226 = vld [vmem:[#allocation7 + $0x40] sm:$0xff]
    %v227 = vld [vmem:[#allocation7 + $0x48] sm:$0xff]
    %v228 = vld [vmem:[#allocation7 + $0x50] sm:$0xff]
    %v229 = vld [vmem:[#allocation7 + $0x58] sm:$0xff]
    %v230 = vld [vmem:[#allocation7 + $0x60] sm:$0xff]
    %v231 = vld [vmem:[#allocation7 + $0x68] sm:$0xff]
    %v232 = vld [vmem:[#allocation7 + $0x70] sm:$0xff]
    %v233 = vld [vmem:[#allocation7 + $0x78] sm:$0xff]
    %v234 = vld [vmem:[#allocation7 + $0x80] sm:$0xff]
    %v235 = vld [vmem:[#allocation7 + $0x88] sm:$0xff]
    %v236 = vld [vmem:[#allocation7 + $0x90] sm:$0xff]
    %v237 = vld [vmem:[#allocation7 + $0x98] sm:$0xff]
    %v238 = vld [vmem:[#allocation7 + $0xa0] sm:$0xff]
    %v239 = vld [vmem:[#allocation7 + $0xa8] sm:$0xff]
    %v240 = vld [vmem:[#allocation7 + $0xb0] sm:$0xff]
    %v241 = vld [vmem:[#allocation7 + $0xb8] sm:$0xff]
    %v242 = vld [vmem:[#allocation7 + $0xc0] sm:$0xff]
    %v243 = vld [vmem:[#allocation7 + $0xc8] sm:$0xff]
    %v244 = vld [vmem:[#allocation7 + $0xd0] sm:$0xff]
    %v245 = vld [vmem:[#allocation7 + $0xd8] sm:$0xff]
    %v246 = vld [vmem:[#allocation7 + $0xe0] sm:$0xff]
    %v247 = vld [vmem:[#allocation7 + $0xe8] sm:$0xff]
    %v248 = vld [vmem:[#allocation7 + $0xf0] sm:$0xff]
    %v249 = vld [vmem:[#allocation7 + $0xf8] sm:$0xff]
    %v250 = vld [vmem:[#allocation7 + $0x100] sm:$0xff]
    %v251 = vld [vmem:[#allocation7 + $0x108] sm:$0xff]
    %v252 = vld [vmem:[#allocation7 + $0x110] sm:$0xff]
    %v253 = vld [vmem:[#allocation7 + $0x118] sm:$0xff]
    %v254 = vld [vmem:[#allocation7 + $0x120] sm:$0xff]
    %v255 = vld [vmem:[#allocation7 + $0x128] sm:$0xff]
    %v256 = vld [vmem:[#allocation7 + $0x130] sm:$0xff]
    %v257 = vld [vmem:[#allocation7 + $0x138] sm:$0xff]
    %v258 = vld [vmem:[#allocation7 + $0x140] sm:$0xff]
    %v259 = vld [vmem:[#allocation7 + $0x148] sm:$0xff]
    %v260 = vld [vmem:[#allocation7 + $0x150] sm:$0xff]
    %v261 = vld [vmem:[#allocation7 + $0x158] sm:$0xff]
    %v262 = vld [vmem:[#allocation7 + $0x160] sm:$0xff]
    %v263 = vld [vmem:[#allocation7 + $0x168] sm:$0xff]
    %v264 = vld [vmem:[#allocation7 + $0x170] sm:$0xff]
    %v265 = vld [vmem:[#allocation7 + $0x178] sm:$0xff]
    %v266 = vld [vmem:[#allocation7 + $0x180] sm:$0xff]
    %v267 = vld [vmem:[#allocation7 + $0x188] sm:$0xff]
    %v268 = vld [vmem:[#allocation7 + $0x190] sm:$0xff]
    %v269 = vld [vmem:[#allocation7 + $0x198] sm:$0xff]
    %v270 = vld [vmem:[#allocation7 + $0x1a0] sm:$0xff]
    %v271 = vld [vmem:[#allocation7 + $0x1a8] sm:$0xff]
    %v272 = vld [vmem:[#allocation7 + $0x1b0] sm:$0xff]
    %v273 = vld [vmem:[#allocation7 + $0x1b8] sm:$0xff]
    %v274 = vld [vmem:[#allocation7 + $0x1c0] sm:$0xff]
    %v275 = vld [vmem:[#allocation7 + $0x1c8] sm:$0xff]
    %v276 = vld [vmem:[#allocation7 + $0x1d0] sm:$0xff]
    %v277 = vld [vmem:[#allocation7 + $0x1d8] sm:$0xff]
    %v278 = vld [vmem:[#allocation7 + $0x1e0] sm:$0xff]
    %v279 = vld [vmem:[#allocation7 + $0x1e8] sm:$0xff]
    %v280 = vld [vmem:[#allocation7 + $0x1f0] sm:$0xff]
    %v281 = vld [vmem:[#allocation7 + $0x1f8] sm:$0xff]
    %v282 = vld [vmem:[#allocation7 + $0x200] sm:$0xff]
    %v283 = vld [vmem:[#allocation7 + $0x208] sm:$0xff]
    %v284 = vld [vmem:[#allocation7 + $0x210] sm:$0xff]
    %v285 = vld [vmem:[#allocation7 + $0x218] sm:$0xff]
    %v286 = vld [vmem:[#allocation7 + $0x220] sm:$0xff]
    %v287 = vld [vmem:[#allocation7 + $0x228] sm:$0xff]
    %v288 = vld [vmem:[#allocation7 + $0x230] sm:$0xff]
    %v289 = vld [vmem:[#allocation7 + $0x238] sm:$0xff]
    %v290 = vld [vmem:[#allocation7 + $0x240] sm:$0xff]
    %v291 = vld [vmem:[#allocation7 + $0x248] sm:$0xff]
    %v292 = vld [vmem:[#allocation7 + $0x250] sm:$0x1]
    %v293 = vld [vmem:[#allocation7 + $0x258] sm:$0x1]
    %v294 = vld [vmem:[%s4] sm:$0x3]
    %v296 = vperm.slane %v294, 0
    %v297 = vperm.slane %v294, 1
    %vm300 = vcmask 334848
    %v302 = vsel %vm300, %v196, 0
    %v305 = vsel %vm300, %v199, 0
    %v308 = vsel %vm300, %v202, 0
    %v311 = vsel %vm300, %v205, 0
    %v314 = vsel %vm300, %v208, 0
    %v317 = vsel %vm300, %v211, 0
    %v320 = vsel %vm300, %v214, 0
    %v323 = vsel %vm300, %v217, 0
    %vm325 = vcmask 1040384
    %v327 = vsel %vm325, %v292, 0
    %v330 = vsel %vm325, %v293, 0
    %332 = vmatpush.msra.mxu0 %v248
    %333 = vmatpush.msra.mxu0 %v246
    %334 = vmatpush.msra.mxu0 %v244
    %335 = vmatpush.msra.mxu0 %v242
    %336 = vmatpush.msra.mxu0 %v240
    %337 = vmatpush.msra.mxu0 %v238
    %338 = vmatpush.msra.mxu0 %v236
    %339 = vmatpush.msra.mxu0 %v234
    %340 = vmatpush.msra.mxu0 %v232
    %341 = vmatpush.msra.mxu0 %v230
    %342 = vmatpush.msra.mxu0 %v228
    %343 = vmatpush.msra.mxu0 %v226
    %344 = vmatpush.msra.mxu0 %v224
    %345 = vmatpush.msra.mxu0 %v222
    %346 = vmatpush.msra.mxu0 %v220
    %347 = vmatpush.msra.mxu0 %v218
    %348 = vmatmul.f32.gmra.mxu0 %v194
    %v349 = vpop.f32.mrf.mxu0
    %v350 = vadd.f32 %v296, %v349
    %351 = vmatmul.f32.gmra.mxu0 %v197
    %v352 = vpop.f32.mrf.mxu0
    %v353 = vadd.f32 %v296, %v352
    %354 = vmatmul.f32.gmra.mxu0 %v200
    %v355 = vpop.f32.mrf.mxu0
    %v356 = vadd.f32 %v296, %v355
    %357 = vmatmul.f32.gmra.mxu0 %v203
    %v358 = vpop.f32.mrf.mxu0
    %v359 = vadd.f32 %v296, %v358
    %360 = vmatmul.f32.gmra.mxu0 %v206
    %v361 = vpop.f32.mrf.mxu0
    %v362 = vadd.f32 %v296, %v361
    %363 = vmatmul.f32.gmra.mxu0 %v209
    %v364 = vpop.f32.mrf.mxu0
    %v365 = vadd.f32 %v296, %v364
    %366 = vmatmul.f32.gmra.mxu0 %v212
    %v367 = vpop.f32.mrf.mxu0
    %v368 = vadd.f32 %v296, %v367
    %369 = vmatmul.f32.gmra.mxu0 %v215
    %v370 = vpop.f32.mrf.mxu0
    %v371 = vadd.f32 %v296, %v370
    %372 = vdwg.mxu0
    %373 = vmatpush.msra.mxu0 %v280
    %374 = vmatpush.msra.mxu0 %v278
    %375 = vmatpush.msra.mxu0 %v276
    %376 = vmatpush.msra.mxu0 %v274
    %377 = vmatpush.msra.mxu0 %v272
    %378 = vmatpush.msra.mxu0 %v270
    %379 = vmatpush.msra.mxu0 %v268
    %380 = vmatpush.msra.mxu0 %v266
    %381 = vmatpush.msra.mxu0 %v264
    %382 = vmatpush.msra.mxu0 %v262
    %383 = vmatpush.msra.mxu0 %v260
    %384 = vmatpush.msra.mxu0 %v258
    %385 = vmatpush.msra.mxu0 %v256
    %386 = vmatpush.msra.mxu0 %v254
    %387 = vmatpush.msra.mxu0 %v252
    %388 = vmatpush.msra.mxu0 %v250
    %389 = vmatmul.f32.gmra.mxu0 %v195
    %v390 = vpop.f32.mrf.mxu0
    %v391 = vadd.f32 %v350, %v390
    %392 = vmatmul.f32.gmra.mxu0 %v198
    %v393 = vpop.f32.mrf.mxu0
    %v394 = vadd.f32 %v353, %v393
    %395 = vmatmul.f32.gmra.mxu0 %v201
    %v396 = vpop.f32.mrf.mxu0
    %v397 = vadd.f32 %v356, %v396
    %398 = vmatmul.f32.gmra.mxu0 %v204
    %v399 = vpop.f32.mrf.mxu0
    %v400 = vadd.f32 %v359, %v399
    %401 = vmatmul.f32.gmra.mxu0 %v207
    %v402 = vpop.f32.mrf.mxu0
    %v403 = vadd.f32 %v362, %v402
    %404 = vmatmul.f32.gmra.mxu0 %v210
    %v405 = vpop.f32.mrf.mxu0
    %v406 = vadd.f32 %v365, %v405
    %407 = vmatmul.f32.gmra.mxu0 %v213
    %v408 = vpop.f32.mrf.mxu0
    %v409 = vadd.f32 %v368, %v408
    %410 = vmatmul.f32.gmra.mxu0 %v216
    %v411 = vpop.f32.mrf.mxu0
    %v412 = vadd.f32 %v371, %v411
    %413 = vdwg.mxu0
    %414 = vmatpush.msra.mxu0 0.0
    %415 = vmatpush.msra.mxu0 0.0
    %416 = vmatpush.msra.mxu0 0.0
    %417 = vmatpush.msra.mxu0 0.0
    %418 = vmatpush.msra.mxu0 0.0
    %419 = vmatpush.msra.mxu0 0.0
    %420 = vmatpush.msra.mxu0 0.0
    %421 = vmatpush.msra.mxu0 0.0
    %422 = vmatpush.msra.mxu0 0.0
    %423 = vmatpush.msra.mxu0 0.0
    %424 = vmatpush.msra.mxu0 %v327
    %425 = vmatpush.msra.mxu0 %v290
    %426 = vmatpush.msra.mxu0 %v288
    %427 = vmatpush.msra.mxu0 %v286
    %428 = vmatpush.msra.mxu0 %v284
    %429 = vmatpush.msra.mxu0 %v282
    %430 = vmatmul.f32.gmra.mxu0 %v302
    %v431 = vpop.f32.mrf.mxu0
    %v432 = vadd.f32 %v391, %v431
    %433 = vmatmul.f32.gmra.mxu0 %v305
    %v434 = vpop.f32.mrf.mxu0
    %v435 = vadd.f32 %v394, %v434
    %436 = vmatmul.f32.gmra.mxu0 %v308
    %v437 = vpop.f32.mrf.mxu0
    %v438 = vadd.f32 %v397, %v437
    %439 = vmatmul.f32.gmra.mxu0 %v311
    %v440 = vpop.f32.mrf.mxu0
    %v441 = vadd.f32 %v400, %v440
    %442 = vmatmul.f32.gmra.mxu0 %v314
    %v443 = vpop.f32.mrf.mxu0
    %v444 = vadd.f32 %v403, %v443
    %445 = vmatmul.f32.gmra.mxu0 %v317
    %v446 = vpop.f32.mrf.mxu0
    %v447 = vadd.f32 %v406, %v446
    %448 = vmatmul.f32.gmra.mxu0 %v320
    %v449 = vpop.f32.mrf.mxu0
    %v450 = vadd.f32 %v409, %v449
    %451 = vmatmul.f32.gmra.mxu0 %v323
    %v452 = vpop.f32.mrf.mxu0
    %v453 = vadd.f32 %v412, %v452
    %454 = vdwg.mxu0
    %455 = vmatpush.msra.mxu0 %v249
    %456 = vmatpush.msra.mxu0 %v247
    %457 = vmatpush.msra.mxu0 %v245
    %458 = vmatpush.msra.mxu0 %v243
    %459 = vmatpush.msra.mxu0 %v241
    %460 = vmatpush.msra.mxu0 %v239
    %461 = vmatpush.msra.mxu0 %v237
    %462 = vmatpush.msra.mxu0 %v235
    %463 = vmatpush.msra.mxu0 %v233
    %464 = vmatpush.msra.mxu0 %v231
    %465 = vmatpush.msra.mxu0 %v229
    %466 = vmatpush.msra.mxu0 %v227
    %467 = vmatpush.msra.mxu0 %v225
    %468 = vmatpush.msra.mxu0 %v223
    %469 = vmatpush.msra.mxu0 %v221
    %470 = vmatpush.msra.mxu0 %v219
    %471 = vmatmul.f32.gmra.mxu0 %v194
    %v472 = vpop.f32.mrf.mxu0
    %v473 = vadd.f32 %v297, %v472
    %474 = vmatmul.f32.gmra.mxu0 %v197
    %v475 = vpop.f32.mrf.mxu0
    %v476 = vadd.f32 %v297, %v475
    %477 = vmatmul.f32.gmra.mxu0 %v200
    %v478 = vpop.f32.mrf.mxu0
    %v479 = vadd.f32 %v297, %v478
    %480 = vmatmul.f32.gmra.mxu0 %v203
    %v481 = vpop.f32.mrf.mxu0
    %v482 = vadd.f32 %v297, %v481
    %483 = vmatmul.f32.gmra.mxu0 %v206
    %v484 = vpop.f32.mrf.mxu0
    %v485 = vadd.f32 %v297, %v484
    %486 = vmatmul.f32.gmra.mxu0 %v209
    %v487 = vpop.f32.mrf.mxu0
    %v488 = vadd.f32 %v297, %v487
    %489 = vmatmul.f32.gmra.mxu0 %v212
    %v490 = vpop.f32.mrf.mxu0
    %v491 = vadd.f32 %v297, %v490
    %492 = vmatmul.f32.gmra.mxu0 %v215
    %v493 = vpop.f32.mrf.mxu0
    %v494 = vadd.f32 %v297, %v493
    %495 = vdwg.mxu0
    %496 = vmatpush.msra.mxu0 %v281
    %497 = vmatpush.msra.mxu0 %v279
    %498 = vmatpush.msra.mxu0 %v277
    %499 = vmatpush.msra.mxu0 %v275
    %500 = vmatpush.msra.mxu0 %v273
    %501 = vmatpush.msra.mxu0 %v271
    %502 = vmatpush.msra.mxu0 %v269
    %503 = vmatpush.msra.mxu0 %v267
    %504 = vmatpush.msra.mxu0 %v265
    %505 = vmatpush.msra.mxu0 %v263
    %506 = vmatpush.msra.mxu0 %v261
    %507 = vmatpush.msra.mxu0 %v259
    %508 = vmatpush.msra.mxu0 %v257
    %509 = vmatpush.msra.mxu0 %v255
    %510 = vmatpush.msra.mxu0 %v253
    %511 = vmatpush.msra.mxu0 %v251
    %512 = vmatmul.f32.gmra.mxu0 %v195
    %v513 = vpop.f32.mrf.mxu0
    %v514 = vadd.f32 %v473, %v513
    %515 = vmatmul.f32.gmra.mxu0 %v198
    %v516 = vpop.f32.mrf.mxu0
    %v517 = vadd.f32 %v476, %v516
    %518 = vmatmul.f32.gmra.mxu0 %v201
    %v519 = vpop.f32.mrf.mxu0
    %v520 = vadd.f32 %v479, %v519
    %521 = vmatmul.f32.gmra.mxu0 %v204
    %v522 = vpop.f32.mrf.mxu0
    %v523 = vadd.f32 %v482, %v522
    %524 = vmatmul.f32.gmra.mxu0 %v207
    %v525 = vpop.f32.mrf.mxu0
    %v526 = vadd.f32 %v485, %v525
    %527 = vmatmul.f32.gmra.mxu0 %v210
    %v528 = vpop.f32.mrf.mxu0
    %v529 = vadd.f32 %v488, %v528
    %530 = vmatmul.f32.gmra.mxu0 %v213
    %v531 = vpop.f32.mrf.mxu0
    %v532 = vadd.f32 %v491, %v531
    %533 = vmatmul.f32.gmra.mxu0 %v216
    %v534 = vpop.f32.mrf.mxu0
    %v535 = vadd.f32 %v494, %v534
    %536 = vdwg.mxu0
    %537 = vmatpush.msra.mxu0 0.0
    %538 = vmatpush.msra.mxu0 0.0
    %539 = vmatpush.msra.mxu0 0.0
    %540 = vmatpush.msra.mxu0 0.0
    %541 = vmatpush.msra.mxu0 0.0
    %542 = vmatpush.msra.mxu0 0.0
    %543 = vmatpush.msra.mxu0 0.0
    %544 = vmatpush.msra.mxu0 0.0
    %545 = vmatpush.msra.mxu0 0.0
    %546 = vmatpush.msra.mxu0 0.0
    %547 = vmatpush.msra.mxu0 %v330
    %548 = vmatpush.msra.mxu0 %v291
    %549 = vmatpush.msra.mxu0 %v289
    %550 = vmatpush.msra.mxu0 %v287
    %551 = vmatpush.msra.mxu0 %v285
    %552 = vmatpush.msra.mxu0 %v283
    %553 = vmatmul.f32.gmra.mxu0 %v302
    %v554 = vpop.f32.mrf.mxu0
    %v555 = vadd.f32 %v514, %v554
    %556 = vmatmul.f32.gmra.mxu0 %v305
    %v557 = vpop.f32.mrf.mxu0
    %v558 = vadd.f32 %v517, %v557
    %559 = vmatmul.f32.gmra.mxu0 %v308
    %v560 = vpop.f32.mrf.mxu0
    %v561 = vadd.f32 %v520, %v560
    %562 = vmatmul.f32.gmra.mxu0 %v311
    %v563 = vpop.f32.mrf.mxu0
    %v564 = vadd.f32 %v523, %v563
    %565 = vmatmul.f32.gmra.mxu0 %v314
    %v566 = vpop.f32.mrf.mxu0
    %v567 = vadd.f32 %v526, %v566
    %568 = vmatmul.f32.gmra.mxu0 %v317
    %v569 = vpop.f32.mrf.mxu0
    %v570 = vadd.f32 %v529, %v569
    %571 = vmatmul.f32.gmra.mxu0 %v320
    %v572 = vpop.f32.mrf.mxu0
    %v573 = vadd.f32 %v532, %v572
    %574 = vmatmul.f32.gmra.mxu0 %v323
    %v575 = vpop.f32.mrf.mxu0
    %v576 = vadd.f32 %v535, %v575
    %577 = vdwg.mxu0
    %578 = vst [vmem:[#allocation2] sm:$0xff] %v432
    %579 = vst [vmem:[#allocation2 + $0x8] sm:$0xff] %v555
    %580 = vst [vmem:[#allocation2 + $0x10] sm:$0xff] %v435
    %581 = vst [vmem:[#allocation2 + $0x18] sm:$0xff] %v558
    %582 = vst [vmem:[#allocation2 + $0x20] sm:$0xff] %v438
    %583 = vst [vmem:[#allocation2 + $0x28] sm:$0xff] %v561
    %584 = vst [vmem:[#allocation2 + $0x30] sm:$0xff] %v441
    %585 = vst [vmem:[#allocation2 + $0x38] sm:$0xff] %v564
    %586 = vst [vmem:[#allocation2 + $0x40] sm:$0xff] %v444
    %587 = vst [vmem:[#allocation2 + $0x48] sm:$0xff] %v567
    %588 = vst [vmem:[#allocation2 + $0x50] sm:$0xff] %v447
    %589 = vst [vmem:[#allocation2 + $0x58] sm:$0xff] %v570
    %590 = vst [vmem:[#allocation2 + $0x60] sm:$0xff] %v450
    %591 = vst [vmem:[#allocation2 + $0x68] sm:$0xff] %v573
    %592 = vst [vmem:[#allocation2 + $0x70] sm:$0xff] %v453
    %593 = vst [vmem:[#allocation2 + $0x78] sm:$0xff] %v576
    %vm594 = vcmp.gt.s32.totalorder %v193, 0
    %s595 = smul.u32 0, 2
    %s596 = smul.addr %s595, 8
    %s597 = scalar_lea.vmem [#allocation2], %s596
    %v598 = vld [vmem:[%s597] sm:$0xff]
    %v599 = vld [vmem:[%s597 + $0x8] sm:$0xff]
    %vm600 = vcmask 523264
    %v602 = vsel %vm600, 0.0, 0
    %604 = vmatpush.msra.mxu0 0.0
    %605 = vmatpush.msra.mxu0 0.0
    %606 = vmatpush.msra.mxu0 0.0
    %607 = vmatpush.msra.mxu0 0.0
    %608 = vmatpush.msra.mxu0 0.0
    %609 = vmatpush.msra.mxu0 0.0
    %610 = vmatpush.msra.mxu0 0.0
    %611 = vmatpush.msra.mxu0 0.0
    %612 = vmatpush.msra.mxu0 %v150
    %613 = vmatpush.msra.mxu0 %v148
    %614 = vmatpush.msra.mxu0 %v146
    %615 = vmatpush.msra.mxu0 %v144
    %616 = vmatpush.msra.mxu0 %v142
    %617 = vmatpush.msra.mxu0 %v140
    %618 = vmatpush.msra.mxu0 %v138
    %619 = vmatpush.msra.mxu0 %v136
    %620 = vmatmul.f32.gmra.mxu0 %v602
    %v621 = vpop.f32.mrf.mxu0
    %v622 = vadd.f32 0.0, %v621
    %623 = vdwg.mxu0
    %624 = vmatpush.msra.mxu0 0.0
    %625 = vmatpush.msra.mxu0 0.0
    %626 = vmatpush.msra.mxu0 0.0
    %627 = vmatpush.msra.mxu0 0.0
    %628 = vmatpush.msra.mxu0 0.0
    %629 = vmatpush.msra.mxu0 0.0
    %630 = vmatpush.msra.mxu0 0.0
    %631 = vmatpush.msra.mxu0 0.0
    %632 = vmatpush.msra.mxu0 %v151
    %633 = vmatpush.msra.mxu0 %v149
    %634 = vmatpush.msra.mxu0 %v147
    %635 = vmatpush.msra.mxu0 %v145
    %636 = vmatpush.msra.mxu0 %v143
    %637 = vmatpush.msra.mxu0 %v141
    %638 = vmatpush.msra.mxu0 %v139
    %639 = vmatpush.msra.mxu0 %v137
    %640 = vmatmul.f32.gmra.mxu0 %v602
    %v641 = vpop.f32.mrf.mxu0
    %v642 = vadd.f32 0.0, %v641
    %643 = vdwg.mxu0
    %v644 = vadd.f32 %v598, %v622
    %v645 = vadd.f32 %v599, %v642
    %v646 = vxor.u32 %v644, 2147483648
    %v647 = vmul.f32 %v646, 1.442695
    %v648 = vpow.pop %v647
    %v649 = vadd.f32 %v648, 1.0
    %v650 = vrcp.pop %v649
    %v651 = vmul.f32 %v649, %v650
    %v652 = vsub.f32 1.0, %v651
    %v653 = vmul.f32 %v650, %v652
    %v654 = vadd.f32 %v650, %v653
    %vm655 = vweird.f32 %v649
    %vm656 = vweird.f32 %v650
    %vm657 = vmor %vm655, %vm656
    %v658 = vsel %vm657, %v650, %v654
    %v659 = vand.u32 2147483647, %v649
    %vm660 = vcmp.eq.f32.partialorder %v659, 8.507059e+37
    %v661 = vand.u32 %v649, 2147483648
    %v662 = vor.u32 1.1754944e-38, %v661
    %v663 = vsel %vm660, %v662, %v658
    %v664 = vmul.f32 1.0, %v663
    %v665 = vtanh.pop %v645
    %v666 = vxor.u32 %v645, 2147483648
    %v667 = vmul.f32 %v666, 1.442695
    %v668 = vpow.pop %v667
    %v669 = vadd.f32 %v668, 1.0
    %v670 = vrcp.pop %v669
    %v671 = vmul.f32 %v669, %v670
    %v672 = vsub.f32 1.0, %v671
    %v673 = vmul.f32 %v670, %v672
    %v674 = vadd.f32 %v670, %v673
    %vm675 = vweird.f32 %v669
    %vm676 = vweird.f32 %v670
    %vm677 = vmor %vm675, %vm676
    %v678 = vsel %vm677, %v670, %v674
    %v679 = vand.u32 2147483647, %v669
    %vm680 = vcmp.eq.f32.partialorder %v679, 8.507059e+37
    %v681 = vand.u32 %v669, 2147483648
    %v682 = vor.u32 1.1754944e-38, %v681
    %v683 = vsel %vm680, %v682, %v678
    %v684 = vmul.f32 1.0, %v683
    %v685 = vmul.f32 %v664, 0.0
    %v686 = vmul.f32 %v664, %v665
    %688 = vrot.lane.b32.xlu0 %v686, 64
    %v689 = vpop.permute.xlu0 %688
    %v691 = vadd.f32 %v685, %v689
    %v692 = vtanh.pop %v691
    %v693 = vmul.f32 %v684, %v692
    %695 = vrot.lane.b32.xlu0 %v693, 64
    %v696 = vpop.permute.xlu0 %695
    %v698 = vsel %vm600, %v696, 0.0
    %699 = vmatpush.msra.mxu0 %v182
    %700 = vmatpush.msra.mxu0 %v180
    %701 = vmatpush.msra.mxu0 %v178
    %702 = vmatpush.msra.mxu0 %v176
    %703 = vmatpush.msra.mxu0 %v174
    %704 = vmatpush.msra.mxu0 %v172
    %705 = vmatpush.msra.mxu0 %v170
    %706 = vmatpush.msra.mxu0 %v168
    %707 = vmatpush.msra.mxu0 %v166
    %708 = vmatpush.msra.mxu0 %v164
    %709 = vmatpush.msra.mxu0 %v162
    %710 = vmatpush.msra.mxu0 %v160
    %711 = vmatpush.msra.mxu0 %v158
    %712 = vmatpush.msra.mxu0 %v156
    %713 = vmatpush.msra.mxu0 %v154
    %714 = vmatpush.msra.mxu0 %v152
    %715 = vmatmul.f32.gmra.mxu0 %v698
    %v716 = vpop.f32.mrf.mxu0
    %v717 = vadd.f32 %v186, %v716
    %718 = vdwg.mxu0
    %719 = vmatpush.msra.mxu0 %v183
    %720 = vmatpush.msra.mxu0 %v181
    %721 = vmatpush.msra.mxu0 %v179
    %722 = vmatpush.msra.mxu0 %v177
    %723 = vmatpush.msra.mxu0 %v175
    %724 = vmatpush.msra.mxu0 %v173
    %725 = vmatpush.msra.mxu0 %v171
    %726 = vmatpush.msra.mxu0 %v169
    %727 = vmatpush.msra.mxu0 %v167
    %728 = vmatpush.msra.mxu0 %v165
    %729 = vmatpush.msra.mxu0 %v163
    %730 = vmatpush.msra.mxu0 %v161
    %731 = vmatpush.msra.mxu0 %v159
    %732 = vmatpush.msra.mxu0 %v157
    %733 = vmatpush.msra.mxu0 %v155
    %734 = vmatpush.msra.mxu0 %v153
    %735 = vmatmul.f32.gmra.mxu0 %v698
    %v736 = vpop.f32.mrf.mxu0
    %v737 = vadd.f32 %v187, %v736
    %738 = vdwg.mxu0
    %v739 = vxor.u32 %v717, 2147483648
    %v740 = vmul.f32 %v739, 1.442695
    %v741 = vpow.pop %v740
    %v742 = vadd.f32 %v741, 1.0
    %v743 = vrcp.pop %v742
    %v744 = vmul.f32 %v742, %v743
    %v745 = vsub.f32 1.0, %v744
    %v746 = vmul.f32 %v743, %v745
    %v747 = vadd.f32 %v743, %v746
    %vm748 = vweird.f32 %v742
    %vm749 = vweird.f32 %v743
    %vm750 = vmor %vm748, %vm749
    %v751 = vsel %vm750, %v743, %v747
    %v752 = vand.u32 2147483647, %v742
    %vm753 = vcmp.eq.f32.partialorder %v752, 8.507059e+37
    %v754 = vand.u32 %v742, 2147483648
    %v755 = vor.u32 1.1754944e-38, %v754
    %v756 = vsel %vm753, %v755, %v751
    %v757 = vmul.f32 1.0, %v756
    %v758 = vtanh.pop %v737
    %v759 = vxor.u32 %v737, 2147483648
    %v760 = vmul.f32 %v759, 1.442695
    %v761 = vpow.pop %v760
    %v762 = vadd.f32 %v761, 1.0
    %v763 = vrcp.pop %v762
    %v764 = vmul.f32 %v762, %v763
    %v765 = vsub.f32 1.0, %v764
    %v766 = vmul.f32 %v763, %v765
    %v767 = vadd.f32 %v763, %v766
    %vm768 = vweird.f32 %v762
    %vm769 = vweird.f32 %v763
    %vm770 = vmor %vm768, %vm769
    %v771 = vsel %vm770, %v763, %v767
    %v772 = vand.u32 2147483647, %v762
    %vm773 = vcmp.eq.f32.partialorder %v772, 8.507059e+37
    %v774 = vand.u32 %v762, 2147483648
    %v775 = vor.u32 1.1754944e-38, %v774
    %v776 = vsel %vm773, %v775, %v771
    %v777 = vmul.f32 1.0, %v776
    %v778 = vmul.f32 %v757, 0.0
    %v779 = vmul.f32 %v757, %v758
    %781 = vrot.lane.b32.xlu0 %v779, 64
    %v782 = vpop.permute.xlu0 %781
    %v784 = vadd.f32 %v778, %v782
    %v785 = vtanh.pop %v784
    %v786 = vmul.f32 %v777, %v785
    %v787 = vsel %vm594, %v693, 0.0
    %v788 = vsel %vm594, %v691, 0.0
    %v789 = vsel %vm594, %v786, 0.0
    %v790 = vsel %vm594, %v784, 0.0
    %792 = vrot.lane.b32.xlu0 %v789, 64
    %v793 = vpop.permute.xlu0 %792
    %795 = vst.msk [vmem:[#allocation3] sm:$0xff] %vm600, %v793
    %vm796 = vcmp.gt.s32.totalorder %v193, 1
    %s797 = smul.u32 1, 2
    %s798 = smul.addr %s797, 8
    %s799 = scalar_lea.vmem [#allocation2], %s798
    %v800 = vld [vmem:[%s799] sm:$0xff]
    %v801 = vld [vmem:[%s799 + $0x8] sm:$0xff]
    %803 = vrot.lane.b32.xlu0 %v787, 64
    %v804 = vpop.permute.xlu0 %803
    %v805 = vsel %vm600, %v804, 0
    %807 = vmatpush.msra.mxu0 0.0
    %808 = vmatpush.msra.mxu0 0.0
    %809 = vmatpush.msra.mxu0 0.0
    %810 = vmatpush.msra.mxu0 0.0
    %811 = vmatpush.msra.mxu0 0.0
    %812 = vmatpush.msra.mxu0 0.0
    %813 = vmatpush.msra.mxu0 0.0
    %814 = vmatpush.msra.mxu0 0.0
    %815 = vmatpush.msra.mxu0 %v150
    %816 = vmatpush.msra.mxu0 %v148
    %817 = vmatpush.msra.mxu0 %v146
    %818 = vmatpush.msra.mxu0 %v144
    %819 = vmatpush.msra.mxu0 %v142
    %820 = vmatpush.msra.mxu0 %v140
    %821 = vmatpush.msra.mxu0 %v138
    %822 = vmatpush.msra.mxu0 %v136
    %823 = vmatmul.f32.gmra.mxu0 %v805
    %v824 = vpop.f32.mrf.mxu0
    %v825 = vadd.f32 0.0, %v824
    %826 = vdwg.mxu0
    %827 = vmatpush.msra.mxu0 0.0
    %828 = vmatpush.msra.mxu0 0.0
    %829 = vmatpush.msra.mxu0 0.0
    %830 = vmatpush.msra.mxu0 0.0
    %831 = vmatpush.msra.mxu0 0.0
    %832 = vmatpush.msra.mxu0 0.0
    %833 = vmatpush.msra.mxu0 0.0
    %834 = vmatpush.msra.mxu0 0.0
    %835 = vmatpush.msra.mxu0 %v151
    %836 = vmatpush.msra.mxu0 %v149
    %837 = vmatpush.msra.mxu0 %v147
    %838 = vmatpush.msra.mxu0 %v145
    %839 = vmatpush.msra.mxu0 %v143
    %840 = vmatpush.msra.mxu0 %v141
    %841 = vmatpush.msra.mxu0 %v139
    %842 = vmatpush.msra.mxu0 %v137
    %843 = vmatmul.f32.gmra.mxu0 %v805
    %v844 = vpop.f32.mrf.mxu0
    %v845 = vadd.f32 0.0, %v844
    %846 = vdwg.mxu0
    %v847 = vadd.f32 %v800, %v825
    %v848 = vadd.f32 %v801, %v845
    %v849 = vxor.u32 %v847, 2147483648
    %v850 = vmul.f32 %v849, 1.442695
    %v851 = vpow.pop %v850
    %v852 = vadd.f32 %v851, 1.0
    %v853 = vrcp.pop %v852
    %v854 = vmul.f32 %v852, %v853
    %v855 = vsub.f32 1.0, %v854
    %v856 = vmul.f32 %v853, %v855
    %v857 = vadd.f32 %v853, %v856
    %vm858 = vweird.f32 %v852
    %vm859 = vweird.f32 %v853
    %vm860 = vmor %vm858, %vm859
    %v861 = vsel %vm860, %v853, %v857
    %v862 = vand.u32 2147483647, %v852
    %vm863 = vcmp.eq.f32.partialorder %v862, 8.507059e+37
    %v864 = vand.u32 %v852, 2147483648
    %v865 = vor.u32 1.1754944e-38, %v864
    %v866 = vsel %vm863, %v865, %v861
    %v867 = vmul.f32 1.0, %v866
    %v868 = vtanh.pop %v848
    %v869 = vxor.u32 %v848, 2147483648
    %v870 = vmul.f32 %v869, 1.442695
    %v871 = vpow.pop %v870
    %v872 = vadd.f32 %v871, 1.0
    %v873 = vrcp.pop %v872
    %v874 = vmul.f32 %v872, %v873
    %v875 = vsub.f32 1.0, %v874
    %v876 = vmul.f32 %v873, %v875
    %v877 = vadd.f32 %v873, %v876
    %vm878 = vweird.f32 %v872
    %vm879 = vweird.f32 %v873
    %vm880 = vmor %vm878, %vm879
    %v881 = vsel %vm880, %v873, %v877
    %v882 = vand.u32 2147483647, %v872
    %vm883 = vcmp.eq.f32.partialorder %v882, 8.507059e+37
    %v884 = vand.u32 %v872, 2147483648
    %v885 = vor.u32 1.1754944e-38, %v884
    %v886 = vsel %vm883, %v885, %v881
    %v887 = vmul.f32 1.0, %v886
    %v888 = vmul.f32 %v867, %v788
    %v889 = vmul.f32 %v867, %v868
    %891 = vrot.lane.b32.xlu0 %v889, 64
    %v892 = vpop.permute.xlu0 %891
    %v894 = vadd.f32 %v888, %v892
    %v895 = vtanh.pop %v894
    %v896 = vmul.f32 %v887, %v895
    %898 = vrot.lane.b32.xlu0 %v896, 64
    %v899 = vpop.permute.xlu0 %898
    %v901 = vsel %vm600, %v899, %v789
    %902 = vmatpush.msra.mxu0 %v182
    %903 = vmatpush.msra.mxu0 %v180
    %904 = vmatpush.msra.mxu0 %v178
    %905 = vmatpush.msra.mxu0 %v176
    %906 = vmatpush.msra.mxu0 %v174
    %907 = vmatpush.msra.mxu0 %v172
    %908 = vmatpush.msra.mxu0 %v170
    %909 = vmatpush.msra.mxu0 %v168
    %910 = vmatpush.msra.mxu0 %v166
    %911 = vmatpush.msra.mxu0 %v164
    %912 = vmatpush.msra.mxu0 %v162
    %913 = vmatpush.msra.mxu0 %v160
    %914 = vmatpush.msra.mxu0 %v158
    %915 = vmatpush.msra.mxu0 %v156
    %916 = vmatpush.msra.mxu0 %v154
    %917 = vmatpush.msra.mxu0 %v152
    %918 = vmatmul.f32.gmra.mxu0 %v901
    %v919 = vpop.f32.mrf.mxu0
    %v920 = vadd.f32 %v186, %v919
    %921 = vdwg.mxu0
    %922 = vmatpush.msra.mxu0 %v183
    %923 = vmatpush.msra.mxu0 %v181
    %924 = vmatpush.msra.mxu0 %v179
    %925 = vmatpush.msra.mxu0 %v177
    %926 = vmatpush.msra.mxu0 %v175
    %927 = vmatpush.msra.mxu0 %v173
    %928 = vmatpush.msra.mxu0 %v171
    %929 = vmatpush.msra.mxu0 %v169
    %930 = vmatpush.msra.mxu0 %v167
    %931 = vmatpush.msra.mxu0 %v165
    %932 = vmatpush.msra.mxu0 %v163
    %933 = vmatpush.msra.mxu0 %v161
    %934 = vmatpush.msra.mxu0 %v159
    %935 = vmatpush.msra.mxu0 %v157
    %936 = vmatpush.msra.mxu0 %v155
    %937 = vmatpush.msra.mxu0 %v153
    %938 = vmatmul.f32.gmra.mxu0 %v901
    %v939 = vpop.f32.mrf.mxu0
    %v940 = vadd.f32 %v187, %v939
    %941 = vdwg.mxu0
    %v942 = vxor.u32 %v920, 2147483648
    %v943 = vmul.f32 %v942, 1.442695
    %v944 = vpow.pop %v943
    %v945 = vadd.f32 %v944, 1.0
    %v946 = vrcp.pop %v945
    %v947 = vmul.f32 %v945, %v946
    %v948 = vsub.f32 1.0, %v947
    %v949 = vmul.f32 %v946, %v948
    %v950 = vadd.f32 %v946, %v949
    %vm951 = vweird.f32 %v945
    %vm952 = vweird.f32 %v946
    %vm953 = vmor %vm951, %vm952
    %v954 = vsel %vm953, %v946, %v950
    %v955 = vand.u32 2147483647, %v945
    %vm956 = vcmp.eq.f32.partialorder %v955, 8.507059e+37
    %v957 = vand.u32 %v945, 2147483648
    %v958 = vor.u32 1.1754944e-38, %v957
    %v959 = vsel %vm956, %v958, %v954
    %v960 = vmul.f32 1.0, %v959
    %v961 = vtanh.pop %v940
    %v962 = vxor.u32 %v940, 2147483648
    %v963 = vmul.f32 %v962, 1.442695
    %v964 = vpow.pop %v963
    %v965 = vadd.f32 %v964, 1.0
    %v966 = vrcp.pop %v965
    %v967 = vmul.f32 %v965, %v966
    %v968 = vsub.f32 1.0, %v967
    %v969 = vmul.f32 %v966, %v968
    %v970 = vadd.f32 %v966, %v969
    %vm971 = vweird.f32 %v965
    %vm972 = vweird.f32 %v966
    %vm973 = vmor %vm971, %vm972
    %v974 = vsel %vm973, %v966, %v970
    %v975 = vand.u32 2147483647, %v965
    %vm976 = vcmp.eq.f32.partialorder %v975, 8.507059e+37
    %v977 = vand.u32 %v965, 2147483648
    %v978 = vor.u32 1.1754944e-38, %v977
    %v979 = vsel %vm976, %v978, %v974
    %v980 = vmul.f32 1.0, %v979
    %v981 = vmul.f32 %v960, %v790
    %v982 = vmul.f32 %v960, %v961
    %984 = vrot.lane.b32.xlu0 %v982, 64
    %v985 = vpop.permute.xlu0 %984
    %v987 = vadd.f32 %v981, %v985
    %v988 = vtanh.pop %v987
    %v989 = vmul.f32 %v980, %v988
    %v990 = vsel %vm796, %v896, %v787
    %v991 = vsel %vm796, %v894, %v788
    %v992 = vsel %vm796, %v989, %v789
    %v993 = vsel %vm796, %v987, %v790
    %v994 = vsel %vm796, %v989, 0.0
    %996 = vrot.lane.b32.xlu0 %v994, 64
    %v997 = vpop.permute.xlu0 %996
    %s999 = scalar_lea.vmem [#allocation3], 8
    %1000 = vst.msk [vmem:[%s999] sm:$0xff] %vm600, %v997
    %vm1001 = vcmp.gt.s32.totalorder %v193, 2
    %s1002 = smul.u32 2, 2
    %s1003 = smul.addr %s1002, 8
    %s1004 = scalar_lea.vmem [#allocation2], %s1003
    %v1005 = vld [vmem:[%s1004] sm:$0xff]
    %v1006 = vld [vmem:[%s1004 + $0x8] sm:$0xff]
    %1008 = vrot.lane.b32.xlu0 %v990, 64
    %v1009 = vpop.permute.xlu0 %1008
    %v1010 = vsel %vm600, %v1009, 0
    %1012 = vmatpush.msra.mxu0 0.0
    %1013 = vmatpush.msra.mxu0 0.0
    %1014 = vmatpush.msra.mxu0 0.0
    %1015 = vmatpush.msra.mxu0 0.0
    %1016 = vmatpush.msra.mxu0 0.0
    %1017 = vmatpush.msra.mxu0 0.0
    %1018 = vmatpush.msra.mxu0 0.0
    %1019 = vmatpush.msra.mxu0 0.0
    %1020 = vmatpush.msra.mxu0 %v150
    %1021 = vmatpush.msra.mxu0 %v148
    %1022 = vmatpush.msra.mxu0 %v146
    %1023 = vmatpush.msra.mxu0 %v144
    %1024 = vmatpush.msra.mxu0 %v142
    %1025 = vmatpush.msra.mxu0 %v140
    %1026 = vmatpush.msra.mxu0 %v138
    %1027 = vmatpush.msra.mxu0 %v136
    %1028 = vmatmul.f32.gmra.mxu0 %v1010
    %v1029 = vpop.f32.mrf.mxu0
    %v1030 = vadd.f32 0.0, %v1029
    %1031 = vdwg.mxu0
    %1032 = vmatpush.msra.mxu0 0.0
    %1033 = vmatpush.msra.mxu0 0.0
    %1034 = vmatpush.msra.mxu0 0.0
    %1035 = vmatpush.msra.mxu0 0.0
    %1036 = vmatpush.msra.mxu0 0.0
    %1037 = vmatpush.msra.mxu0 0.0
    %1038 = vmatpush.msra.mxu0 0.0
    %1039 = vmatpush.msra.mxu0 0.0
    %1040 = vmatpush.msra.mxu0 %v151
    %1041 = vmatpush.msra.mxu0 %v149
    %1042 = vmatpush.msra.mxu0 %v147
    %1043 = vmatpush.msra.mxu0 %v145
    %1044 = vmatpush.msra.mxu0 %v143
    %1045 = vmatpush.msra.mxu0 %v141
    %1046 = vmatpush.msra.mxu0 %v139
    %1047 = vmatpush.msra.mxu0 %v137
    %1048 = vmatmul.f32.gmra.mxu0 %v1010
    %v1049 = vpop.f32.mrf.mxu0
    %v1050 = vadd.f32 0.0, %v1049
    %1051 = vdwg.mxu0
    %v1052 = vadd.f32 %v1005, %v1030
    %v1053 = vadd.f32 %v1006, %v1050
    %v1054 = vxor.u32 %v1052, 2147483648
    %v1055 = vmul.f32 %v1054, 1.442695
    %v1056 = vpow.pop %v1055
    %v1057 = vadd.f32 %v1056, 1.0
    %v1058 = vrcp.pop %v1057
    %v1059 = vmul.f32 %v1057, %v1058
    %v1060 = vsub.f32 1.0, %v1059
    %v1061 = vmul.f32 %v1058, %v1060
    %v1062 = vadd.f32 %v1058, %v1061
    %vm1063 = vweird.f32 %v1057
    %vm1064 = vweird.f32 %v1058
    %vm1065 = vmor %vm1063, %vm1064
    %v1066 = vsel %vm1065, %v1058, %v1062
    %v1067 = vand.u32 2147483647, %v1057
    %vm1068 = vcmp.eq.f32.partialorder %v1067, 8.507059e+37
    %v1069 = vand.u32 %v1057, 2147483648
    %v1070 = vor.u32 1.1754944e-38, %v1069
    %v1071 = vsel %vm1068, %v1070, %v1066
    %v1072 = vmul.f32 1.0, %v1071
    %v1073 = vtanh.pop %v1053
    %v1074 = vxor.u32 %v1053, 2147483648
    %v1075 = vmul.f32 %v1074, 1.442695
    %v1076 = vpow.pop %v1075
    %v1077 = vadd.f32 %v1076, 1.0
    %v1078 = vrcp.pop %v1077
    %v1079 = vmul.f32 %v1077, %v1078
    %v1080 = vsub.f32 1.0, %v1079
    %v1081 = vmul.f32 %v1078, %v1080
    %v1082 = vadd.f32 %v1078, %v1081
    %vm1083 = vweird.f32 %v1077
    %vm1084 = vweird.f32 %v1078
    %vm1085 = vmor %vm1083, %vm1084
    %v1086 = vsel %vm1085, %v1078, %v1082
    %v1087 = vand.u32 2147483647, %v1077
    %vm1088 = vcmp.eq.f32.partialorder %v1087, 8.507059e+37
    %v1089 = vand.u32 %v1077, 2147483648
    %v1090 = vor.u32 1.1754944e-38, %v1089
    %v1091 = vsel %vm1088, %v1090, %v1086
    %v1092 = vmul.f32 1.0, %v1091
    %v1093 = vmul.f32 %v1072, %v991
    %v1094 = vmul.f32 %v1072, %v1073
    %1096 = vrot.lane.b32.xlu0 %v1094, 64
    %v1097 = vpop.permute.xlu0 %1096
    %v1099 = vadd.f32 %v1093, %v1097
    %v1100 = vtanh.pop %v1099
    %v1101 = vmul.f32 %v1092, %v1100
    %1103 = vrot.lane.b32.xlu0 %v1101, 64
    %v1104 = vpop.permute.xlu0 %1103
    %v1106 = vsel %vm600, %v1104, %v992
    %1107 = vmatpush.msra.mxu0 %v182
    %1108 = vmatpush.msra.mxu0 %v180
    %1109 = vmatpush.msra.mxu0 %v178
    %1110 = vmatpush.msra.mxu0 %v176
    %1111 = vmatpush.msra.mxu0 %v174
    %1112 = vmatpush.msra.mxu0 %v172
    %1113 = vmatpush.msra.mxu0 %v170
    %1114 = vmatpush.msra.mxu0 %v168
    %1115 = vmatpush.msra.mxu0 %v166
    %1116 = vmatpush.msra.mxu0 %v164
    %1117 = vmatpush.msra.mxu0 %v162
    %1118 = vmatpush.msra.mxu0 %v160
    %1119 = vmatpush.msra.mxu0 %v158
    %1120 = vmatpush.msra.mxu0 %v156
    %1121 = vmatpush.msra.mxu0 %v154
    %1122 = vmatpush.msra.mxu0 %v152
    %1123 = vmatmul.f32.gmra.mxu0 %v1106
    %v1124 = vpop.f32.mrf.mxu0
    %v1125 = vadd.f32 %v186, %v1124
    %1126 = vdwg.mxu0
    %1127 = vmatpush.msra.mxu0 %v183
    %1128 = vmatpush.msra.mxu0 %v181
    %1129 = vmatpush.msra.mxu0 %v179
    %1130 = vmatpush.msra.mxu0 %v177
    %1131 = vmatpush.msra.mxu0 %v175
    %1132 = vmatpush.msra.mxu0 %v173
    %1133 = vmatpush.msra.mxu0 %v171
    %1134 = vmatpush.msra.mxu0 %v169
    %1135 = vmatpush.msra.mxu0 %v167
    %1136 = vmatpush.msra.mxu0 %v165
    %1137 = vmatpush.msra.mxu0 %v163
    %1138 = vmatpush.msra.mxu0 %v161
    %1139 = vmatpush.msra.mxu0 %v159
    %1140 = vmatpush.msra.mxu0 %v157
    %1141 = vmatpush.msra.mxu0 %v155
    %1142 = vmatpush.msra.mxu0 %v153
    %1143 = vmatmul.f32.gmra.mxu0 %v1106
    %v1144 = vpop.f32.mrf.mxu0
    %v1145 = vadd.f32 %v187, %v1144
    %1146 = vdwg.mxu0
    %v1147 = vxor.u32 %v1125, 2147483648
    %v1148 = vmul.f32 %v1147, 1.442695
    %v1149 = vpow.pop %v1148
    %v1150 = vadd.f32 %v1149, 1.0
    %v1151 = vrcp.pop %v1150
    %v1152 = vmul.f32 %v1150, %v1151
    %v1153 = vsub.f32 1.0, %v1152
    %v1154 = vmul.f32 %v1151, %v1153
    %v1155 = vadd.f32 %v1151, %v1154
    %vm1156 = vweird.f32 %v1150
    %vm1157 = vweird.f32 %v1151
    %vm1158 = vmor %vm1156, %vm1157
    %v1159 = vsel %vm1158, %v1151, %v1155
    %v1160 = vand.u32 2147483647, %v1150
    %vm1161 = vcmp.eq.f32.partialorder %v1160, 8.507059e+37
    %v1162 = vand.u32 %v1150, 2147483648
    %v1163 = vor.u32 1.1754944e-38, %v1162
    %v1164 = vsel %vm1161, %v1163, %v1159
    %v1165 = vmul.f32 1.0, %v1164
    %v1166 = vtanh.pop %v1145
    %v1167 = vxor.u32 %v1145, 2147483648
    %v1168 = vmul.f32 %v1167, 1.442695
    %v1169 = vpow.pop %v1168
    %v1170 = vadd.f32 %v1169, 1.0
    %v1171 = vrcp.pop %v1170
    %v1172 = vmul.f32 %v1170, %v1171
    %v1173 = vsub.f32 1.0, %v1172
    %v1174 = vmul.f32 %v1171, %v1173
    %v1175 = vadd.f32 %v1171, %v1174
    %vm1176 = vweird.f32 %v1170
    %vm1177 = vweird.f32 %v1171
    %vm1178 = vmor %vm1176, %vm1177
    %v1179 = vsel %vm1178, %v1171, %v1175
    %v1180 = vand.u32 2147483647, %v1170
    %vm1181 = vcmp.eq.f32.partialorder %v1180, 8.507059e+37
    %v1182 = vand.u32 %v1170, 2147483648
    %v1183 = vor.u32 1.1754944e-38, %v1182
    %v1184 = vsel %vm1181, %v1183, %v1179
    %v1185 = vmul.f32 1.0, %v1184
    %v1186 = vmul.f32 %v1165, %v993
    %v1187 = vmul.f32 %v1165, %v1166
    %1189 = vrot.lane.b32.xlu0 %v1187, 64
    %v1190 = vpop.permute.xlu0 %1189
    %v1192 = vadd.f32 %v1186, %v1190
    %v1193 = vtanh.pop %v1192
    %v1194 = vmul.f32 %v1185, %v1193
    %v1195 = vsel %vm1001, %v1101, %v990
    %v1196 = vsel %vm1001, %v1099, %v991
    %v1197 = vsel %vm1001, %v1194, %v992
    %v1198 = vsel %vm1001, %v1192, %v993
    %v1199 = vsel %vm1001, %v1194, 0.0
    %1201 = vrot.lane.b32.xlu0 %v1199, 64
    %v1202 = vpop.permute.xlu0 %1201
    %s1204 = scalar_lea.vmem [#allocation3], 16
    %1205 = vst.msk [vmem:[%s1204] sm:$0xff] %vm600, %v1202
    %vm1206 = vcmp.gt.s32.totalorder %v193, 3
    %s1207 = smul.u32 3, 2
    %s1208 = smul.addr %s1207, 8
    %s1209 = scalar_lea.vmem [#allocation2], %s1208
    %v1210 = vld [vmem:[%s1209] sm:$0xff]
    %v1211 = vld [vmem:[%s1209 + $0x8] sm:$0xff]
    %1213 = vrot.lane.b32.xlu0 %v1195, 64
    %v1214 = vpop.permute.xlu0 %1213
    %v1215 = vsel %vm600, %v1214, 0
    %1217 = vmatpush.msra.mxu0 0.0
    %1218 = vmatpush.msra.mxu0 0.0
    %1219 = vmatpush.msra.mxu0 0.0
    %1220 = vmatpush.msra.mxu0 0.0
    %1221 = vmatpush.msra.mxu0 0.0
    %1222 = vmatpush.msra.mxu0 0.0
    %1223 = vmatpush.msra.mxu0 0.0
    %1224 = vmatpush.msra.mxu0 0.0
    %1225 = vmatpush.msra.mxu0 %v150
    %1226 = vmatpush.msra.mxu0 %v148
    %1227 = vmatpush.msra.mxu0 %v146
    %1228 = vmatpush.msra.mxu0 %v144
    %1229 = vmatpush.msra.mxu0 %v142
    %1230 = vmatpush.msra.mxu0 %v140
    %1231 = vmatpush.msra.mxu0 %v138
    %1232 = vmatpush.msra.mxu0 %v136
    %1233 = vmatmul.f32.gmra.mxu0 %v1215
    %v1234 = vpop.f32.mrf.mxu0
    %v1235 = vadd.f32 0.0, %v1234
    %1236 = vdwg.mxu0
    %1237 = vmatpush.msra.mxu0 0.0
    %1238 = vmatpush.msra.mxu0 0.0
    %1239 = vmatpush.msra.mxu0 0.0
    %1240 = vmatpush.msra.mxu0 0.0
    %1241 = vmatpush.msra.mxu0 0.0
    %1242 = vmatpush.msra.mxu0 0.0
    %1243 = vmatpush.msra.mxu0 0.0
    %1244 = vmatpush.msra.mxu0 0.0
    %1245 = vmatpush.msra.mxu0 %v151
    %1246 = vmatpush.msra.mxu0 %v149
    %1247 = vmatpush.msra.mxu0 %v147
    %1248 = vmatpush.msra.mxu0 %v145
    %1249 = vmatpush.msra.mxu0 %v143
    %1250 = vmatpush.msra.mxu0 %v141
    %1251 = vmatpush.msra.mxu0 %v139
    %1252 = vmatpush.msra.mxu0 %v137
    %1253 = vmatmul.f32.gmra.mxu0 %v1215
    %v1254 = vpop.f32.mrf.mxu0
    %v1255 = vadd.f32 0.0, %v1254
    %1256 = vdwg.mxu0
    %v1257 = vadd.f32 %v1210, %v1235
    %v1258 = vadd.f32 %v1211, %v1255
    %v1259 = vxor.u32 %v1257, 2147483648
    %v1260 = vmul.f32 %v1259, 1.442695
    %v1261 = vpow.pop %v1260
    %v1262 = vadd.f32 %v1261, 1.0
    %v1263 = vrcp.pop %v1262
    %v1264 = vmul.f32 %v1262, %v1263
    %v1265 = vsub.f32 1.0, %v1264
    %v1266 = vmul.f32 %v1263, %v1265
    %v1267 = vadd.f32 %v1263, %v1266
    %vm1268 = vweird.f32 %v1262
    %vm1269 = vweird.f32 %v1263
    %vm1270 = vmor %vm1268, %vm1269
    %v1271 = vsel %vm1270, %v1263, %v1267
    %v1272 = vand.u32 2147483647, %v1262
    %vm1273 = vcmp.eq.f32.partialorder %v1272, 8.507059e+37
    %v1274 = vand.u32 %v1262, 2147483648
    %v1275 = vor.u32 1.1754944e-38, %v1274
    %v1276 = vsel %vm1273, %v1275, %v1271
    %v1277 = vmul.f32 1.0, %v1276
    %v1278 = vtanh.pop %v1258
    %v1279 = vxor.u32 %v1258, 2147483648
    %v1280 = vmul.f32 %v1279, 1.442695
    %v1281 = vpow.pop %v1280
    %v1282 = vadd.f32 %v1281, 1.0
    %v1283 = vrcp.pop %v1282
    %v1284 = vmul.f32 %v1282, %v1283
    %v1285 = vsub.f32 1.0, %v1284
    %v1286 = vmul.f32 %v1283, %v1285
    %v1287 = vadd.f32 %v1283, %v1286
    %vm1288 = vweird.f32 %v1282
    %vm1289 = vweird.f32 %v1283
    %vm1290 = vmor %vm1288, %vm1289
    %v1291 = vsel %vm1290, %v1283, %v1287
    %v1292 = vand.u32 2147483647, %v1282
    %vm1293 = vcmp.eq.f32.partialorder %v1292, 8.507059e+37
    %v1294 = vand.u32 %v1282, 2147483648
    %v1295 = vor.u32 1.1754944e-38, %v1294
    %v1296 = vsel %vm1293, %v1295, %v1291
    %v1297 = vmul.f32 1.0, %v1296
    %v1298 = vmul.f32 %v1277, %v1196
    %v1299 = vmul.f32 %v1277, %v1278
    %1301 = vrot.lane.b32.xlu0 %v1299, 64
    %v1302 = vpop.permute.xlu0 %1301
    %v1304 = vadd.f32 %v1298, %v1302
    %v1305 = vtanh.pop %v1304
    %v1306 = vmul.f32 %v1297, %v1305
    %1308 = vrot.lane.b32.xlu0 %v1306, 64
    %v1309 = vpop.permute.xlu0 %1308
    %v1311 = vsel %vm600, %v1309, %v1197
    %1312 = vmatpush.msra.mxu0 %v182
    %1313 = vmatpush.msra.mxu0 %v180
    %1314 = vmatpush.msra.mxu0 %v178
    %1315 = vmatpush.msra.mxu0 %v176
    %1316 = vmatpush.msra.mxu0 %v174
    %1317 = vmatpush.msra.mxu0 %v172
    %1318 = vmatpush.msra.mxu0 %v170
    %1319 = vmatpush.msra.mxu0 %v168
    %1320 = vmatpush.msra.mxu0 %v166
    %1321 = vmatpush.msra.mxu0 %v164
    %1322 = vmatpush.msra.mxu0 %v162
    %1323 = vmatpush.msra.mxu0 %v160
    %1324 = vmatpush.msra.mxu0 %v158
    %1325 = vmatpush.msra.mxu0 %v156
    %1326 = vmatpush.msra.mxu0 %v154
    %1327 = vmatpush.msra.mxu0 %v152
    %1328 = vmatmul.f32.gmra.mxu0 %v1311
    %v1329 = vpop.f32.mrf.mxu0
    %v1330 = vadd.f32 %v186, %v1329
    %1331 = vdwg.mxu0
    %1332 = vmatpush.msra.mxu0 %v183
    %1333 = vmatpush.msra.mxu0 %v181
    %1334 = vmatpush.msra.mxu0 %v179
    %1335 = vmatpush.msra.mxu0 %v177
    %1336 = vmatpush.msra.mxu0 %v175
    %1337 = vmatpush.msra.mxu0 %v173
    %1338 = vmatpush.msra.mxu0 %v171
    %1339 = vmatpush.msra.mxu0 %v169
    %1340 = vmatpush.msra.mxu0 %v167
    %1341 = vmatpush.msra.mxu0 %v165
    %1342 = vmatpush.msra.mxu0 %v163
    %1343 = vmatpush.msra.mxu0 %v161
    %1344 = vmatpush.msra.mxu0 %v159
    %1345 = vmatpush.msra.mxu0 %v157
    %1346 = vmatpush.msra.mxu0 %v155
    %1347 = vmatpush.msra.mxu0 %v153
    %1348 = vmatmul.f32.gmra.mxu0 %v1311
    %v1349 = vpop.f32.mrf.mxu0
    %v1350 = vadd.f32 %v187, %v1349
    %1351 = vdwg.mxu0
    %v1352 = vxor.u32 %v1330, 2147483648
    %v1353 = vmul.f32 %v1352, 1.442695
    %v1354 = vpow.pop %v1353
    %v1355 = vadd.f32 %v1354, 1.0
    %v1356 = vrcp.pop %v1355
    %v1357 = vmul.f32 %v1355, %v1356
    %v1358 = vsub.f32 1.0, %v1357
    %v1359 = vmul.f32 %v1356, %v1358
    %v1360 = vadd.f32 %v1356, %v1359
    %vm1361 = vweird.f32 %v1355
    %vm1362 = vweird.f32 %v1356
    %vm1363 = vmor %vm1361, %vm1362
    %v1364 = vsel %vm1363, %v1356, %v1360
    %v1365 = vand.u32 2147483647, %v1355
    %vm1366 = vcmp.eq.f32.partialorder %v1365, 8.507059e+37
    %v1367 = vand.u32 %v1355, 2147483648
    %v1368 = vor.u32 1.1754944e-38, %v1367
    %v1369 = vsel %vm1366, %v1368, %v1364
    %v1370 = vmul.f32 1.0, %v1369
    %v1371 = vtanh.pop %v1350
    %v1372 = vxor.u32 %v1350, 2147483648
    %v1373 = vmul.f32 %v1372, 1.442695
    %v1374 = vpow.pop %v1373
    %v1375 = vadd.f32 %v1374, 1.0
    %v1376 = vrcp.pop %v1375
    %v1377 = vmul.f32 %v1375, %v1376
    %v1378 = vsub.f32 1.0, %v1377
    %v1379 = vmul.f32 %v1376, %v1378
    %v1380 = vadd.f32 %v1376, %v1379
    %vm1381 = vweird.f32 %v1375
    %vm1382 = vweird.f32 %v1376
    %vm1383 = vmor %vm1381, %vm1382
    %v1384 = vsel %vm1383, %v1376, %v1380
    %v1385 = vand.u32 2147483647, %v1375
    %vm1386 = vcmp.eq.f32.partialorder %v1385, 8.507059e+37
    %v1387 = vand.u32 %v1375, 2147483648
    %v1388 = vor.u32 1.1754944e-38, %v1387
    %v1389 = vsel %vm1386, %v1388, %v1384
    %v1390 = vmul.f32 1.0, %v1389
    %v1391 = vmul.f32 %v1370, %v1198
    %v1392 = vmul.f32 %v1370, %v1371
    %1394 = vrot.lane.b32.xlu0 %v1392, 64
    %v1395 = vpop.permute.xlu0 %1394
    %v1397 = vadd.f32 %v1391, %v1395
    %v1398 = vtanh.pop %v1397
    %v1399 = vmul.f32 %v1390, %v1398
    %v1400 = vsel %vm1206, %v1306, %v1195
    %v1401 = vsel %vm1206, %v1304, %v1196
    %v1402 = vsel %vm1206, %v1399, %v1197
    %v1403 = vsel %vm1206, %v1397, %v1198
    %v1404 = vsel %vm1206, %v1399, 0.0
    %1406 = vrot.lane.b32.xlu0 %v1404, 64
    %v1407 = vpop.permute.xlu0 %1406
    %s1409 = scalar_lea.vmem [#allocation3], 24
    %1410 = vst.msk [vmem:[%s1409] sm:$0xff] %vm600, %v1407
    %vm1411 = vcmp.gt.s32.totalorder %v193, 4
    %s1412 = smul.u32 4, 2
    %s1413 = smul.addr %s1412, 8
    %s1414 = scalar_lea.vmem [#allocation2], %s1413
    %v1415 = vld [vmem:[%s1414] sm:$0xff]
    %v1416 = vld [vmem:[%s1414 + $0x8] sm:$0xff]
    %1418 = vrot.lane.b32.xlu0 %v1400, 64
    %v1419 = vpop.permute.xlu0 %1418
    %v1420 = vsel %vm600, %v1419, 0
    %1422 = vmatpush.msra.mxu0 0.0
    %1423 = vmatpush.msra.mxu0 0.0
    %1424 = vmatpush.msra.mxu0 0.0
    %1425 = vmatpush.msra.mxu0 0.0
    %1426 = vmatpush.msra.mxu0 0.0
    %1427 = vmatpush.msra.mxu0 0.0
    %1428 = vmatpush.msra.mxu0 0.0
    %1429 = vmatpush.msra.mxu0 0.0
    %1430 = vmatpush.msra.mxu0 %v150
    %1431 = vmatpush.msra.mxu0 %v148
    %1432 = vmatpush.msra.mxu0 %v146
    %1433 = vmatpush.msra.mxu0 %v144
    %1434 = vmatpush.msra.mxu0 %v142
    %1435 = vmatpush.msra.mxu0 %v140
    %1436 = vmatpush.msra.mxu0 %v138
    %1437 = vmatpush.msra.mxu0 %v136
    %1438 = vmatmul.f32.gmra.mxu0 %v1420
    %v1439 = vpop.f32.mrf.mxu0
    %v1440 = vadd.f32 0.0, %v1439
    %1441 = vdwg.mxu0
    %1442 = vmatpush.msra.mxu0 0.0
    %1443 = vmatpush.msra.mxu0 0.0
    %1444 = vmatpush.msra.mxu0 0.0
    %1445 = vmatpush.msra.mxu0 0.0
    %1446 = vmatpush.msra.mxu0 0.0
    %1447 = vmatpush.msra.mxu0 0.0
    %1448 = vmatpush.msra.mxu0 0.0
    %1449 = vmatpush.msra.mxu0 0.0
    %1450 = vmatpush.msra.mxu0 %v151
    %1451 = vmatpush.msra.mxu0 %v149
    %1452 = vmatpush.msra.mxu0 %v147
    %1453 = vmatpush.msra.mxu0 %v145
    %1454 = vmatpush.msra.mxu0 %v143
    %1455 = vmatpush.msra.mxu0 %v141
    %1456 = vmatpush.msra.mxu0 %v139
    %1457 = vmatpush.msra.mxu0 %v137
    %1458 = vmatmul.f32.gmra.mxu0 %v1420
    %v1459 = vpop.f32.mrf.mxu0
    %v1460 = vadd.f32 0.0, %v1459
    %1461 = vdwg.mxu0
    %v1462 = vadd.f32 %v1415, %v1440
    %v1463 = vadd.f32 %v1416, %v1460
    %v1464 = vxor.u32 %v1462, 2147483648
    %v1465 = vmul.f32 %v1464, 1.442695
    %v1466 = vpow.pop %v1465
    %v1467 = vadd.f32 %v1466, 1.0
    %v1468 = vrcp.pop %v1467
    %v1469 = vmul.f32 %v1467, %v1468
    %v1470 = vsub.f32 1.0, %v1469
    %v1471 = vmul.f32 %v1468, %v1470
    %v1472 = vadd.f32 %v1468, %v1471
    %vm1473 = vweird.f32 %v1467
    %vm1474 = vweird.f32 %v1468
    %vm1475 = vmor %vm1473, %vm1474
    %v1476 = vsel %vm1475, %v1468, %v1472
    %v1477 = vand.u32 2147483647, %v1467
    %vm1478 = vcmp.eq.f32.partialorder %v1477, 8.507059e+37
    %v1479 = vand.u32 %v1467, 2147483648
    %v1480 = vor.u32 1.1754944e-38, %v1479
    %v1481 = vsel %vm1478, %v1480, %v1476
    %v1482 = vmul.f32 1.0, %v1481
    %v1483 = vtanh.pop %v1463
    %v1484 = vxor.u32 %v1463, 2147483648
    %v1485 = vmul.f32 %v1484, 1.442695
    %v1486 = vpow.pop %v1485
    %v1487 = vadd.f32 %v1486, 1.0
    %v1488 = vrcp.pop %v1487
    %v1489 = vmul.f32 %v1487, %v1488
    %v1490 = vsub.f32 1.0, %v1489
    %v1491 = vmul.f32 %v1488, %v1490
    %v1492 = vadd.f32 %v1488, %v1491
    %vm1493 = vweird.f32 %v1487
    %vm1494 = vweird.f32 %v1488
    %vm1495 = vmor %vm1493, %vm1494
    %v1496 = vsel %vm1495, %v1488, %v1492
    %v1497 = vand.u32 2147483647, %v1487
    %vm1498 = vcmp.eq.f32.partialorder %v1497, 8.507059e+37
    %v1499 = vand.u32 %v1487, 2147483648
    %v1500 = vor.u32 1.1754944e-38, %v1499
    %v1501 = vsel %vm1498, %v1500, %v1496
    %v1502 = vmul.f32 1.0, %v1501
    %v1503 = vmul.f32 %v1482, %v1401
    %v1504 = vmul.f32 %v1482, %v1483
    %1506 = vrot.lane.b32.xlu0 %v1504, 64
    %v1507 = vpop.permute.xlu0 %1506
    %v1509 = vadd.f32 %v1503, %v1507
    %v1510 = vtanh.pop %v1509
    %v1511 = vmul.f32 %v1502, %v1510
    %1513 = vrot.lane.b32.xlu0 %v1511, 64
    %v1514 = vpop.permute.xlu0 %1513
    %v1516 = vsel %vm600, %v1514, %v1402
    %1517 = vmatpush.msra.mxu0 %v182
    %1518 = vmatpush.msra.mxu0 %v180
    %1519 = vmatpush.msra.mxu0 %v178
    %1520 = vmatpush.msra.mxu0 %v176
    %1521 = vmatpush.msra.mxu0 %v174
    %1522 = vmatpush.msra.mxu0 %v172
    %1523 = vmatpush.msra.mxu0 %v170
    %1524 = vmatpush.msra.mxu0 %v168
    %1525 = vmatpush.msra.mxu0 %v166
    %1526 = vmatpush.msra.mxu0 %v164
    %1527 = vmatpush.msra.mxu0 %v162
    %1528 = vmatpush.msra.mxu0 %v160
    %1529 = vmatpush.msra.mxu0 %v158
    %1530 = vmatpush.msra.mxu0 %v156
    %1531 = vmatpush.msra.mxu0 %v154
    %1532 = vmatpush.msra.mxu0 %v152
    %1533 = vmatmul.f32.gmra.mxu0 %v1516
    %v1534 = vpop.f32.mrf.mxu0
    %v1535 = vadd.f32 %v186, %v1534
    %1536 = vdwg.mxu0
    %1537 = vmatpush.msra.mxu0 %v183
    %1538 = vmatpush.msra.mxu0 %v181
    %1539 = vmatpush.msra.mxu0 %v179
    %1540 = vmatpush.msra.mxu0 %v177
    %1541 = vmatpush.msra.mxu0 %v175
    %1542 = vmatpush.msra.mxu0 %v173
    %1543 = vmatpush.msra.mxu0 %v171
    %1544 = vmatpush.msra.mxu0 %v169
    %1545 = vmatpush.msra.mxu0 %v167
    %1546 = vmatpush.msra.mxu0 %v165
    %1547 = vmatpush.msra.mxu0 %v163
    %1548 = vmatpush.msra.mxu0 %v161
    %1549 = vmatpush.msra.mxu0 %v159
    %1550 = vmatpush.msra.mxu0 %v157
    %1551 = vmatpush.msra.mxu0 %v155
    %1552 = vmatpush.msra.mxu0 %v153
    %1553 = vmatmul.f32.gmra.mxu0 %v1516
    %v1554 = vpop.f32.mrf.mxu0
    %v1555 = vadd.f32 %v187, %v1554
    %1556 = vdwg.mxu0
    %v1557 = vxor.u32 %v1535, 2147483648
    %v1558 = vmul.f32 %v1557, 1.442695
    %v1559 = vpow.pop %v1558
    %v1560 = vadd.f32 %v1559, 1.0
    %v1561 = vrcp.pop %v1560
    %v1562 = vmul.f32 %v1560, %v1561
    %v1563 = vsub.f32 1.0, %v1562
    %v1564 = vmul.f32 %v1561, %v1563
    %v1565 = vadd.f32 %v1561, %v1564
    %vm1566 = vweird.f32 %v1560
    %vm1567 = vweird.f32 %v1561
    %vm1568 = vmor %vm1566, %vm1567
    %v1569 = vsel %vm1568, %v1561, %v1565
    %v1570 = vand.u32 2147483647, %v1560
    %vm1571 = vcmp.eq.f32.partialorder %v1570, 8.507059e+37
    %v1572 = vand.u32 %v1560, 2147483648
    %v1573 = vor.u32 1.1754944e-38, %v1572
    %v1574 = vsel %vm1571, %v1573, %v1569
    %v1575 = vmul.f32 1.0, %v1574
    %v1576 = vtanh.pop %v1555
    %v1577 = vxor.u32 %v1555, 2147483648
    %v1578 = vmul.f32 %v1577, 1.442695
    %v1579 = vpow.pop %v1578
    %v1580 = vadd.f32 %v1579, 1.0
    %v1581 = vrcp.pop %v1580
    %v1582 = vmul.f32 %v1580, %v1581
    %v1583 = vsub.f32 1.0, %v1582
    %v1584 = vmul.f32 %v1581, %v1583
    %v1585 = vadd.f32 %v1581, %v1584
    %vm1586 = vweird.f32 %v1580
    %vm1587 = vweird.f32 %v1581
    %vm1588 = vmor %vm1586, %vm1587
    %v1589 = vsel %vm1588, %v1581, %v1585
    %v1590 = vand.u32 2147483647, %v1580
    %vm1591 = vcmp.eq.f32.partialorder %v1590, 8.507059e+37
    %v1592 = vand.u32 %v1580, 2147483648
    %v1593 = vor.u32 1.1754944e-38, %v1592
    %v1594 = vsel %vm1591, %v1593, %v1589
    %v1595 = vmul.f32 1.0, %v1594
    %v1596 = vmul.f32 %v1575, %v1403
    %v1597 = vmul.f32 %v1575, %v1576
    %1599 = vrot.lane.b32.xlu0 %v1597, 64
    %v1600 = vpop.permute.xlu0 %1599
    %v1602 = vadd.f32 %v1596, %v1600
    %v1603 = vtanh.pop %v1602
    %v1604 = vmul.f32 %v1595, %v1603
    %v1605 = vsel %vm1411, %v1511, %v1400
    %v1606 = vsel %vm1411, %v1509, %v1401
    %v1607 = vsel %vm1411, %v1604, %v1402
    %v1608 = vsel %vm1411, %v1602, %v1403
    %v1609 = vsel %vm1411, %v1604, 0.0
    %1611 = vrot.lane.b32.xlu0 %v1609, 64
    %v1612 = vpop.permute.xlu0 %1611
    %s1614 = scalar_lea.vmem [#allocation3], 32
    %1615 = vst.msk [vmem:[%s1614] sm:$0xff] %vm600, %v1612
    %vm1616 = vcmp.gt.s32.totalorder %v193, 5
    %s1617 = smul.u32 5, 2
    %s1618 = smul.addr %s1617, 8
    %s1619 = scalar_lea.vmem [#allocation2], %s1618
    %v1620 = vld [vmem:[%s1619] sm:$0xff]
    %v1621 = vld [vmem:[%s1619 + $0x8] sm:$0xff]
    %1623 = vrot.lane.b32.xlu0 %v1605, 64
    %v1624 = vpop.permute.xlu0 %1623
    %v1625 = vsel %vm600, %v1624, 0
    %1627 = vmatpush.msra.mxu0 0.0
    %1628 = vmatpush.msra.mxu0 0.0
    %1629 = vmatpush.msra.mxu0 0.0
    %1630 = vmatpush.msra.mxu0 0.0
    %1631 = vmatpush.msra.mxu0 0.0
    %1632 = vmatpush.msra.mxu0 0.0
    %1633 = vmatpush.msra.mxu0 0.0
    %1634 = vmatpush.msra.mxu0 0.0
    %1635 = vmatpush.msra.mxu0 %v150
    %1636 = vmatpush.msra.mxu0 %v148
    %1637 = vmatpush.msra.mxu0 %v146
    %1638 = vmatpush.msra.mxu0 %v144
    %1639 = vmatpush.msra.mxu0 %v142
    %1640 = vmatpush.msra.mxu0 %v140
    %1641 = vmatpush.msra.mxu0 %v138
    %1642 = vmatpush.msra.mxu0 %v136
    %1643 = vmatmul.f32.gmra.mxu0 %v1625
    %v1644 = vpop.f32.mrf.mxu0
    %v1645 = vadd.f32 0.0, %v1644
    %1646 = vdwg.mxu0
    %1647 = vmatpush.msra.mxu0 0.0
    %1648 = vmatpush.msra.mxu0 0.0
    %1649 = vmatpush.msra.mxu0 0.0
    %1650 = vmatpush.msra.mxu0 0.0
    %1651 = vmatpush.msra.mxu0 0.0
    %1652 = vmatpush.msra.mxu0 0.0
    %1653 = vmatpush.msra.mxu0 0.0
    %1654 = vmatpush.msra.mxu0 0.0
    %1655 = vmatpush.msra.mxu0 %v151
    %1656 = vmatpush.msra.mxu0 %v149
    %1657 = vmatpush.msra.mxu0 %v147
    %1658 = vmatpush.msra.mxu0 %v145
    %1659 = vmatpush.msra.mxu0 %v143
    %1660 = vmatpush.msra.mxu0 %v141
    %1661 = vmatpush.msra.mxu0 %v139
    %1662 = vmatpush.msra.mxu0 %v137
    %1663 = vmatmul.f32.gmra.mxu0 %v1625
    %v1664 = vpop.f32.mrf.mxu0
    %v1665 = vadd.f32 0.0, %v1664
    %1666 = vdwg.mxu0
    %v1667 = vadd.f32 %v1620, %v1645
    %v1668 = vadd.f32 %v1621, %v1665
    %v1669 = vxor.u32 %v1667, 2147483648
    %v1670 = vmul.f32 %v1669, 1.442695
    %v1671 = vpow.pop %v1670
    %v1672 = vadd.f32 %v1671, 1.0
    %v1673 = vrcp.pop %v1672
    %v1674 = vmul.f32 %v1672, %v1673
    %v1675 = vsub.f32 1.0, %v1674
    %v1676 = vmul.f32 %v1673, %v1675
    %v1677 = vadd.f32 %v1673, %v1676
    %vm1678 = vweird.f32 %v1672
    %vm1679 = vweird.f32 %v1673
    %vm1680 = vmor %vm1678, %vm1679
    %v1681 = vsel %vm1680, %v1673, %v1677
    %v1682 = vand.u32 2147483647, %v1672
    %vm1683 = vcmp.eq.f32.partialorder %v1682, 8.507059e+37
    %v1684 = vand.u32 %v1672, 2147483648
    %v1685 = vor.u32 1.1754944e-38, %v1684
    %v1686 = vsel %vm1683, %v1685, %v1681
    %v1687 = vmul.f32 1.0, %v1686
    %v1688 = vtanh.pop %v1668
    %v1689 = vxor.u32 %v1668, 2147483648
    %v1690 = vmul.f32 %v1689, 1.442695
    %v1691 = vpow.pop %v1690
    %v1692 = vadd.f32 %v1691, 1.0
    %v1693 = vrcp.pop %v1692
    %v1694 = vmul.f32 %v1692, %v1693
    %v1695 = vsub.f32 1.0, %v1694
    %v1696 = vmul.f32 %v1693, %v1695
    %v1697 = vadd.f32 %v1693, %v1696
    %vm1698 = vweird.f32 %v1692
    %vm1699 = vweird.f32 %v1693
    %vm1700 = vmor %vm1698, %vm1699
    %v1701 = vsel %vm1700, %v1693, %v1697
    %v1702 = vand.u32 2147483647, %v1692
    %vm1703 = vcmp.eq.f32.partialorder %v1702, 8.507059e+37
    %v1704 = vand.u32 %v1692, 2147483648
    %v1705 = vor.u32 1.1754944e-38, %v1704
    %v1706 = vsel %vm1703, %v1705, %v1701
    %v1707 = vmul.f32 1.0, %v1706
    %v1708 = vmul.f32 %v1687, %v1606
    %v1709 = vmul.f32 %v1687, %v1688
    %1711 = vrot.lane.b32.xlu0 %v1709, 64
    %v1712 = vpop.permute.xlu0 %1711
    %v1714 = vadd.f32 %v1708, %v1712
    %v1715 = vtanh.pop %v1714
    %v1716 = vmul.f32 %v1707, %v1715
    %1718 = vrot.lane.b32.xlu0 %v1716, 64
    %v1719 = vpop.permute.xlu0 %1718
    %v1721 = vsel %vm600, %v1719, %v1607
    %1722 = vmatpush.msra.mxu0 %v182
    %1723 = vmatpush.msra.mxu0 %v180
    %1724 = vmatpush.msra.mxu0 %v178
    %1725 = vmatpush.msra.mxu0 %v176
    %1726 = vmatpush.msra.mxu0 %v174
    %1727 = vmatpush.msra.mxu0 %v172
    %1728 = vmatpush.msra.mxu0 %v170
    %1729 = vmatpush.msra.mxu0 %v168
    %1730 = vmatpush.msra.mxu0 %v166
    %1731 = vmatpush.msra.mxu0 %v164
    %1732 = vmatpush.msra.mxu0 %v162
    %1733 = vmatpush.msra.mxu0 %v160
    %1734 = vmatpush.msra.mxu0 %v158
    %1735 = vmatpush.msra.mxu0 %v156
    %1736 = vmatpush.msra.mxu0 %v154
    %1737 = vmatpush.msra.mxu0 %v152
    %1738 = vmatmul.f32.gmra.mxu0 %v1721
    %v1739 = vpop.f32.mrf.mxu0
    %v1740 = vadd.f32 %v186, %v1739
    %1741 = vdwg.mxu0
    %1742 = vmatpush.msra.mxu0 %v183
    %1743 = vmatpush.msra.mxu0 %v181
    %1744 = vmatpush.msra.mxu0 %v179
    %1745 = vmatpush.msra.mxu0 %v177
    %1746 = vmatpush.msra.mxu0 %v175
    %1747 = vmatpush.msra.mxu0 %v173
    %1748 = vmatpush.msra.mxu0 %v171
    %1749 = vmatpush.msra.mxu0 %v169
    %1750 = vmatpush.msra.mxu0 %v167
    %1751 = vmatpush.msra.mxu0 %v165
    %1752 = vmatpush.msra.mxu0 %v163
    %1753 = vmatpush.msra.mxu0 %v161
    %1754 = vmatpush.msra.mxu0 %v159
    %1755 = vmatpush.msra.mxu0 %v157
    %1756 = vmatpush.msra.mxu0 %v155
    %1757 = vmatpush.msra.mxu0 %v153
    %1758 = vmatmul.f32.gmra.mxu0 %v1721
    %v1759 = vpop.f32.mrf.mxu0
    %v1760 = vadd.f32 %v187, %v1759
    %1761 = vdwg.mxu0
    %v1762 = vxor.u32 %v1740, 2147483648
    %v1763 = vmul.f32 %v1762, 1.442695
    %v1764 = vpow.pop %v1763
    %v1765 = vadd.f32 %v1764, 1.0
    %v1766 = vrcp.pop %v1765
    %v1767 = vmul.f32 %v1765, %v1766
    %v1768 = vsub.f32 1.0, %v1767
    %v1769 = vmul.f32 %v1766, %v1768
    %v1770 = vadd.f32 %v1766, %v1769
    %vm1771 = vweird.f32 %v1765
    %vm1772 = vweird.f32 %v1766
    %vm1773 = vmor %vm1771, %vm1772
    %v1774 = vsel %vm1773, %v1766, %v1770
    %v1775 = vand.u32 2147483647, %v1765
    %vm1776 = vcmp.eq.f32.partialorder %v1775, 8.507059e+37
    %v1777 = vand.u32 %v1765, 2147483648
    %v1778 = vor.u32 1.1754944e-38, %v1777
    %v1779 = vsel %vm1776, %v1778, %v1774
    %v1780 = vmul.f32 1.0, %v1779
    %v1781 = vtanh.pop %v1760
    %v1782 = vxor.u32 %v1760, 2147483648
    %v1783 = vmul.f32 %v1782, 1.442695
    %v1784 = vpow.pop %v1783
    %v1785 = vadd.f32 %v1784, 1.0
    %v1786 = vrcp.pop %v1785
    %v1787 = vmul.f32 %v1785, %v1786
    %v1788 = vsub.f32 1.0, %v1787
    %v1789 = vmul.f32 %v1786, %v1788
    %v1790 = vadd.f32 %v1786, %v1789
    %vm1791 = vweird.f32 %v1785
    %vm1792 = vweird.f32 %v1786
    %vm1793 = vmor %vm1791, %vm1792
    %v1794 = vsel %vm1793, %v1786, %v1790
    %v1795 = vand.u32 2147483647, %v1785
    %vm1796 = vcmp.eq.f32.partialorder %v1795, 8.507059e+37
    %v1797 = vand.u32 %v1785, 2147483648
    %v1798 = vor.u32 1.1754944e-38, %v1797
    %v1799 = vsel %vm1796, %v1798, %v1794
    %v1800 = vmul.f32 1.0, %v1799
    %v1801 = vmul.f32 %v1780, %v1608
    %v1802 = vmul.f32 %v1780, %v1781
    %1804 = vrot.lane.b32.xlu0 %v1802, 64
    %v1805 = vpop.permute.xlu0 %1804
    %v1807 = vadd.f32 %v1801, %v1805
    %v1808 = vtanh.pop %v1807
    %v1809 = vmul.f32 %v1800, %v1808
    %v1810 = vsel %vm1616, %v1716, %v1605
    %v1811 = vsel %vm1616, %v1714, %v1606
    %v1812 = vsel %vm1616, %v1809, %v1607
    %v1813 = vsel %vm1616, %v1807, %v1608
    %v1814 = vsel %vm1616, %v1809, 0.0
    %1816 = vrot.lane.b32.xlu0 %v1814, 64
    %v1817 = vpop.permute.xlu0 %1816
    %s1819 = scalar_lea.vmem [#allocation3], 40
    %1820 = vst.msk [vmem:[%s1819] sm:$0xff] %vm600, %v1817
    %vm1821 = vcmp.gt.s32.totalorder %v193, 6
    %s1822 = smul.u32 6, 2
    %s1823 = smul.addr %s1822, 8
    %s1824 = scalar_lea.vmem [#allocation2], %s1823
    %v1825 = vld [vmem:[%s1824] sm:$0xff]
    %v1826 = vld [vmem:[%s1824 + $0x8] sm:$0xff]
    %1828 = vrot.lane.b32.xlu0 %v1810, 64
    %v1829 = vpop.permute.xlu0 %1828
    %v1830 = vsel %vm600, %v1829, 0
    %1832 = vmatpush.msra.mxu0 0.0
    %1833 = vmatpush.msra.mxu0 0.0
    %1834 = vmatpush.msra.mxu0 0.0
    %1835 = vmatpush.msra.mxu0 0.0
    %1836 = vmatpush.msra.mxu0 0.0
    %1837 = vmatpush.msra.mxu0 0.0
    %1838 = vmatpush.msra.mxu0 0.0
    %1839 = vmatpush.msra.mxu0 0.0
    %1840 = vmatpush.msra.mxu0 %v150
    %1841 = vmatpush.msra.mxu0 %v148
    %1842 = vmatpush.msra.mxu0 %v146
    %1843 = vmatpush.msra.mxu0 %v144
    %1844 = vmatpush.msra.mxu0 %v142
    %1845 = vmatpush.msra.mxu0 %v140
    %1846 = vmatpush.msra.mxu0 %v138
    %1847 = vmatpush.msra.mxu0 %v136
    %1848 = vmatmul.f32.gmra.mxu0 %v1830
    %v1849 = vpop.f32.mrf.mxu0
    %v1850 = vadd.f32 0.0, %v1849
    %1851 = vdwg.mxu0
    %1852 = vmatpush.msra.mxu0 0.0
    %1853 = vmatpush.msra.mxu0 0.0
    %1854 = vmatpush.msra.mxu0 0.0
    %1855 = vmatpush.msra.mxu0 0.0
    %1856 = vmatpush.msra.mxu0 0.0
    %1857 = vmatpush.msra.mxu0 0.0
    %1858 = vmatpush.msra.mxu0 0.0
    %1859 = vmatpush.msra.mxu0 0.0
    %1860 = vmatpush.msra.mxu0 %v151
    %1861 = vmatpush.msra.mxu0 %v149
    %1862 = vmatpush.msra.mxu0 %v147
    %1863 = vmatpush.msra.mxu0 %v145
    %1864 = vmatpush.msra.mxu0 %v143
    %1865 = vmatpush.msra.mxu0 %v141
    %1866 = vmatpush.msra.mxu0 %v139
    %1867 = vmatpush.msra.mxu0 %v137
    %1868 = vmatmul.f32.gmra.mxu0 %v1830
    %v1869 = vpop.f32.mrf.mxu0
    %v1870 = vadd.f32 0.0, %v1869
    %1871 = vdwg.mxu0
    %v1872 = vadd.f32 %v1825, %v1850
    %v1873 = vadd.f32 %v1826, %v1870
    %v1874 = vxor.u32 %v1872, 2147483648
    %v1875 = vmul.f32 %v1874, 1.442695
    %v1876 = vpow.pop %v1875
    %v1877 = vadd.f32 %v1876, 1.0
    %v1878 = vrcp.pop %v1877
    %v1879 = vmul.f32 %v1877, %v1878
    %v1880 = vsub.f32 1.0, %v1879
    %v1881 = vmul.f32 %v1878, %v1880
    %v1882 = vadd.f32 %v1878, %v1881
    %vm1883 = vweird.f32 %v1877
    %vm1884 = vweird.f32 %v1878
    %vm1885 = vmor %vm1883, %vm1884
    %v1886 = vsel %vm1885, %v1878, %v1882
    %v1887 = vand.u32 2147483647, %v1877
    %vm1888 = vcmp.eq.f32.partialorder %v1887, 8.507059e+37
    %v1889 = vand.u32 %v1877, 2147483648
    %v1890 = vor.u32 1.1754944e-38, %v1889
    %v1891 = vsel %vm1888, %v1890, %v1886
    %v1892 = vmul.f32 1.0, %v1891
    %v1893 = vtanh.pop %v1873
    %v1894 = vxor.u32 %v1873, 2147483648
    %v1895 = vmul.f32 %v1894, 1.442695
    %v1896 = vpow.pop %v1895
    %v1897 = vadd.f32 %v1896, 1.0
    %v1898 = vrcp.pop %v1897
    %v1899 = vmul.f32 %v1897, %v1898
    %v1900 = vsub.f32 1.0, %v1899
    %v1901 = vmul.f32 %v1898, %v1900
    %v1902 = vadd.f32 %v1898, %v1901
    %vm1903 = vweird.f32 %v1897
    %vm1904 = vweird.f32 %v1898
    %vm1905 = vmor %vm1903, %vm1904
    %v1906 = vsel %vm1905, %v1898, %v1902
    %v1907 = vand.u32 2147483647, %v1897
    %vm1908 = vcmp.eq.f32.partialorder %v1907, 8.507059e+37
    %v1909 = vand.u32 %v1897, 2147483648
    %v1910 = vor.u32 1.1754944e-38, %v1909
    %v1911 = vsel %vm1908, %v1910, %v1906
    %v1912 = vmul.f32 1.0, %v1911
    %v1913 = vmul.f32 %v1892, %v1811
    %v1914 = vmul.f32 %v1892, %v1893
    %1916 = vrot.lane.b32.xlu0 %v1914, 64
    %v1917 = vpop.permute.xlu0 %1916
    %v1919 = vadd.f32 %v1913, %v1917
    %v1920 = vtanh.pop %v1919
    %v1921 = vmul.f32 %v1912, %v1920
    %1923 = vrot.lane.b32.xlu0 %v1921, 64
    %v1924 = vpop.permute.xlu0 %1923
    %v1926 = vsel %vm600, %v1924, %v1812
    %1927 = vmatpush.msra.mxu0 %v182
    %1928 = vmatpush.msra.mxu0 %v180
    %1929 = vmatpush.msra.mxu0 %v178
    %1930 = vmatpush.msra.mxu0 %v176
    %1931 = vmatpush.msra.mxu0 %v174
    %1932 = vmatpush.msra.mxu0 %v172
    %1933 = vmatpush.msra.mxu0 %v170
    %1934 = vmatpush.msra.mxu0 %v168
    %1935 = vmatpush.msra.mxu0 %v166
    %1936 = vmatpush.msra.mxu0 %v164
    %1937 = vmatpush.msra.mxu0 %v162
    %1938 = vmatpush.msra.mxu0 %v160
    %1939 = vmatpush.msra.mxu0 %v158
    %1940 = vmatpush.msra.mxu0 %v156
    %1941 = vmatpush.msra.mxu0 %v154
    %1942 = vmatpush.msra.mxu0 %v152
    %1943 = vmatmul.f32.gmra.mxu0 %v1926
    %v1944 = vpop.f32.mrf.mxu0
    %v1945 = vadd.f32 %v186, %v1944
    %1946 = vdwg.mxu0
    %1947 = vmatpush.msra.mxu0 %v183
    %1948 = vmatpush.msra.mxu0 %v181
    %1949 = vmatpush.msra.mxu0 %v179
    %1950 = vmatpush.msra.mxu0 %v177
    %1951 = vmatpush.msra.mxu0 %v175
    %1952 = vmatpush.msra.mxu0 %v173
    %1953 = vmatpush.msra.mxu0 %v171
    %1954 = vmatpush.msra.mxu0 %v169
    %1955 = vmatpush.msra.mxu0 %v167
    %1956 = vmatpush.msra.mxu0 %v165
    %1957 = vmatpush.msra.mxu0 %v163
    %1958 = vmatpush.msra.mxu0 %v161
    %1959 = vmatpush.msra.mxu0 %v159
    %1960 = vmatpush.msra.mxu0 %v157
    %1961 = vmatpush.msra.mxu0 %v155
    %1962 = vmatpush.msra.mxu0 %v153
    %1963 = vmatmul.f32.gmra.mxu0 %v1926
    %v1964 = vpop.f32.mrf.mxu0
    %v1965 = vadd.f32 %v187, %v1964
    %1966 = vdwg.mxu0
    %v1967 = vxor.u32 %v1945, 2147483648
    %v1968 = vmul.f32 %v1967, 1.442695
    %v1969 = vpow.pop %v1968
    %v1970 = vadd.f32 %v1969, 1.0
    %v1971 = vrcp.pop %v1970
    %v1972 = vmul.f32 %v1970, %v1971
    %v1973 = vsub.f32 1.0, %v1972
    %v1974 = vmul.f32 %v1971, %v1973
    %v1975 = vadd.f32 %v1971, %v1974
    %vm1976 = vweird.f32 %v1970
    %vm1977 = vweird.f32 %v1971
    %vm1978 = vmor %vm1976, %vm1977
    %v1979 = vsel %vm1978, %v1971, %v1975
    %v1980 = vand.u32 2147483647, %v1970
    %vm1981 = vcmp.eq.f32.partialorder %v1980, 8.507059e+37
    %v1982 = vand.u32 %v1970, 2147483648
    %v1983 = vor.u32 1.1754944e-38, %v1982
    %v1984 = vsel %vm1981, %v1983, %v1979
    %v1985 = vmul.f32 1.0, %v1984
    %v1986 = vtanh.pop %v1965
    %v1987 = vxor.u32 %v1965, 2147483648
    %v1988 = vmul.f32 %v1987, 1.442695
    %v1989 = vpow.pop %v1988
    %v1990 = vadd.f32 %v1989, 1.0
    %v1991 = vrcp.pop %v1990
    %v1992 = vmul.f32 %v1990, %v1991
    %v1993 = vsub.f32 1.0, %v1992
    %v1994 = vmul.f32 %v1991, %v1993
    %v1995 = vadd.f32 %v1991, %v1994
    %vm1996 = vweird.f32 %v1990
    %vm1997 = vweird.f32 %v1991
    %vm1998 = vmor %vm1996, %vm1997
    %v1999 = vsel %vm1998, %v1991, %v1995
    %v2000 = vand.u32 2147483647, %v1990
    %vm2001 = vcmp.eq.f32.partialorder %v2000, 8.507059e+37
    %v2002 = vand.u32 %v1990, 2147483648
    %v2003 = vor.u32 1.1754944e-38, %v2002
    %v2004 = vsel %vm2001, %v2003, %v1999
    %v2005 = vmul.f32 1.0, %v2004
    %v2006 = vmul.f32 %v1985, %v1813
    %v2007 = vmul.f32 %v1985, %v1986
    %2009 = vrot.lane.b32.xlu0 %v2007, 64
    %v2010 = vpop.permute.xlu0 %2009
    %v2012 = vadd.f32 %v2006, %v2010
    %v2013 = vtanh.pop %v2012
    %v2014 = vmul.f32 %v2005, %v2013
    %v2015 = vsel %vm1821, %v1921, %v1810
    %v2016 = vsel %vm1821, %v1919, %v1811
    %v2017 = vsel %vm1821, %v2014, %v1812
    %v2018 = vsel %vm1821, %v2012, %v1813
    %v2019 = vsel %vm1821, %v2014, 0.0
    %2021 = vrot.lane.b32.xlu0 %v2019, 64
    %v2022 = vpop.permute.xlu0 %2021
    %s2024 = scalar_lea.vmem [#allocation3], 48
    %2025 = vst.msk [vmem:[%s2024] sm:$0xff] %vm600, %v2022
    %vm2026 = vcmp.gt.s32.totalorder %v193, 7
    %s2027 = smul.u32 7, 2
    %s2028 = smul.addr %s2027, 8
    %s2029 = scalar_lea.vmem [#allocation2], %s2028
    %v2030 = vld [vmem:[%s2029] sm:$0xff]
    %v2031 = vld [vmem:[%s2029 + $0x8] sm:$0xff]
    %2033 = vrot.lane.b32.xlu0 %v2015, 64
    %v2034 = vpop.permute.xlu0 %2033
    %v2035 = vsel %vm600, %v2034, 0
    %2037 = vmatpush.msra.mxu0 0.0
    %2038 = vmatpush.msra.mxu0 0.0
    %2039 = vmatpush.msra.mxu0 0.0
    %2040 = vmatpush.msra.mxu0 0.0
    %2041 = vmatpush.msra.mxu0 0.0
    %2042 = vmatpush.msra.mxu0 0.0
    %2043 = vmatpush.msra.mxu0 0.0
    %2044 = vmatpush.msra.mxu0 0.0
    %2045 = vmatpush.msra.mxu0 %v150
    %2046 = vmatpush.msra.mxu0 %v148
    %2047 = vmatpush.msra.mxu0 %v146
    %2048 = vmatpush.msra.mxu0 %v144
    %2049 = vmatpush.msra.mxu0 %v142
    %2050 = vmatpush.msra.mxu0 %v140
    %2051 = vmatpush.msra.mxu0 %v138
    %2052 = vmatpush.msra.mxu0 %v136
    %2053 = vmatmul.f32.gmra.mxu0 %v2035
    %v2054 = vpop.f32.mrf.mxu0
    %v2055 = vadd.f32 0.0, %v2054
    %2056 = vdwg.mxu0
    %2057 = vmatpush.msra.mxu0 0.0
    %2058 = vmatpush.msra.mxu0 0.0
    %2059 = vmatpush.msra.mxu0 0.0
    %2060 = vmatpush.msra.mxu0 0.0
    %2061 = vmatpush.msra.mxu0 0.0
    %2062 = vmatpush.msra.mxu0 0.0
    %2063 = vmatpush.msra.mxu0 0.0
    %2064 = vmatpush.msra.mxu0 0.0
    %2065 = vmatpush.msra.mxu0 %v151
    %2066 = vmatpush.msra.mxu0 %v149
    %2067 = vmatpush.msra.mxu0 %v147
    %2068 = vmatpush.msra.mxu0 %v145
    %2069 = vmatpush.msra.mxu0 %v143
    %2070 = vmatpush.msra.mxu0 %v141
    %2071 = vmatpush.msra.mxu0 %v139
    %2072 = vmatpush.msra.mxu0 %v137
    %2073 = vmatmul.f32.gmra.mxu0 %v2035
    %v2074 = vpop.f32.mrf.mxu0
    %v2075 = vadd.f32 0.0, %v2074
    %2076 = vdwg.mxu0
    %v2077 = vadd.f32 %v2030, %v2055
    %v2078 = vadd.f32 %v2031, %v2075
    %v2079 = vxor.u32 %v2077, 2147483648
    %v2080 = vmul.f32 %v2079, 1.442695
    %v2081 = vpow.pop %v2080
    %v2082 = vadd.f32 %v2081, 1.0
    %v2083 = vrcp.pop %v2082
    %v2084 = vmul.f32 %v2082, %v2083
    %v2085 = vsub.f32 1.0, %v2084
    %v2086 = vmul.f32 %v2083, %v2085
    %v2087 = vadd.f32 %v2083, %v2086
    %vm2088 = vweird.f32 %v2082
    %vm2089 = vweird.f32 %v2083
    %vm2090 = vmor %vm2088, %vm2089
    %v2091 = vsel %vm2090, %v2083, %v2087
    %v2092 = vand.u32 2147483647, %v2082
    %vm2093 = vcmp.eq.f32.partialorder %v2092, 8.507059e+37
    %v2094 = vand.u32 %v2082, 2147483648
    %v2095 = vor.u32 1.1754944e-38, %v2094
    %v2096 = vsel %vm2093, %v2095, %v2091
    %v2097 = vmul.f32 1.0, %v2096
    %v2098 = vtanh.pop %v2078
    %v2099 = vxor.u32 %v2078, 2147483648
    %v2100 = vmul.f32 %v2099, 1.442695
    %v2101 = vpow.pop %v2100
    %v2102 = vadd.f32 %v2101, 1.0
    %v2103 = vrcp.pop %v2102
    %v2104 = vmul.f32 %v2102, %v2103
    %v2105 = vsub.f32 1.0, %v2104
    %v2106 = vmul.f32 %v2103, %v2105
    %v2107 = vadd.f32 %v2103, %v2106
    %vm2108 = vweird.f32 %v2102
    %vm2109 = vweird.f32 %v2103
    %vm2110 = vmor %vm2108, %vm2109
    %v2111 = vsel %vm2110, %v2103, %v2107
    %v2112 = vand.u32 2147483647, %v2102
    %vm2113 = vcmp.eq.f32.partialorder %v2112, 8.507059e+37
    %v2114 = vand.u32 %v2102, 2147483648
    %v2115 = vor.u32 1.1754944e-38, %v2114
    %v2116 = vsel %vm2113, %v2115, %v2111
    %v2117 = vmul.f32 1.0, %v2116
    %v2118 = vmul.f32 %v2097, %v2016
    %v2119 = vmul.f32 %v2097, %v2098
    %2121 = vrot.lane.b32.xlu0 %v2119, 64
    %v2122 = vpop.permute.xlu0 %2121
    %v2124 = vadd.f32 %v2118, %v2122
    %v2125 = vtanh.pop %v2124
    %v2126 = vmul.f32 %v2117, %v2125
    %2128 = vrot.lane.b32.xlu0 %v2126, 64
    %v2129 = vpop.permute.xlu0 %2128
    %v2131 = vsel %vm600, %v2129, %v2017
    %2132 = vmatpush.msra.mxu0 %v182
    %2133 = vmatpush.msra.mxu0 %v180
    %2134 = vmatpush.msra.mxu0 %v178
    %2135 = vmatpush.msra.mxu0 %v176
    %2136 = vmatpush.msra.mxu0 %v174
    %2137 = vmatpush.msra.mxu0 %v172
    %2138 = vmatpush.msra.mxu0 %v170
    %2139 = vmatpush.msra.mxu0 %v168
    %2140 = vmatpush.msra.mxu0 %v166
    %2141 = vmatpush.msra.mxu0 %v164
    %2142 = vmatpush.msra.mxu0 %v162
    %2143 = vmatpush.msra.mxu0 %v160
    %2144 = vmatpush.msra.mxu0 %v158
    %2145 = vmatpush.msra.mxu0 %v156
    %2146 = vmatpush.msra.mxu0 %v154
    %2147 = vmatpush.msra.mxu0 %v152
    %2148 = vmatmul.f32.gmra.mxu0 %v2131
    %v2149 = vpop.f32.mrf.mxu0
    %v2150 = vadd.f32 %v186, %v2149
    %2151 = vdwg.mxu0
    %2152 = vmatpush.msra.mxu0 %v183
    %2153 = vmatpush.msra.mxu0 %v181
    %2154 = vmatpush.msra.mxu0 %v179
    %2155 = vmatpush.msra.mxu0 %v177
    %2156 = vmatpush.msra.mxu0 %v175
    %2157 = vmatpush.msra.mxu0 %v173
    %2158 = vmatpush.msra.mxu0 %v171
    %2159 = vmatpush.msra.mxu0 %v169
    %2160 = vmatpush.msra.mxu0 %v167
    %2161 = vmatpush.msra.mxu0 %v165
    %2162 = vmatpush.msra.mxu0 %v163
    %2163 = vmatpush.msra.mxu0 %v161
    %2164 = vmatpush.msra.mxu0 %v159
    %2165 = vmatpush.msra.mxu0 %v157
    %2166 = vmatpush.msra.mxu0 %v155
    %2167 = vmatpush.msra.mxu0 %v153
    %2168 = vmatmul.f32.gmra.mxu0 %v2131
    %v2169 = vpop.f32.mrf.mxu0
    %v2170 = vadd.f32 %v187, %v2169
    %2171 = vdwg.mxu0
    %v2172 = vxor.u32 %v2150, 2147483648
    %v2173 = vmul.f32 %v2172, 1.442695
    %v2174 = vpow.pop %v2173
    %v2175 = vadd.f32 %v2174, 1.0
    %v2176 = vrcp.pop %v2175
    %v2177 = vmul.f32 %v2175, %v2176
    %v2178 = vsub.f32 1.0, %v2177
    %v2179 = vmul.f32 %v2176, %v2178
    %v2180 = vadd.f32 %v2176, %v2179
    %vm2181 = vweird.f32 %v2175
    %vm2182 = vweird.f32 %v2176
    %vm2183 = vmor %vm2181, %vm2182
    %v2184 = vsel %vm2183, %v2176, %v2180
    %v2185 = vand.u32 2147483647, %v2175
    %vm2186 = vcmp.eq.f32.partialorder %v2185, 8.507059e+37
    %v2187 = vand.u32 %v2175, 2147483648
    %v2188 = vor.u32 1.1754944e-38, %v2187
    %v2189 = vsel %vm2186, %v2188, %v2184
    %v2190 = vmul.f32 1.0, %v2189
    %v2191 = vtanh.pop %v2170
    %v2192 = vxor.u32 %v2170, 2147483648
    %v2193 = vmul.f32 %v2192, 1.442695
    %v2194 = vpow.pop %v2193
    %v2195 = vadd.f32 %v2194, 1.0
    %v2196 = vrcp.pop %v2195
    %v2197 = vmul.f32 %v2195, %v2196
    %v2198 = vsub.f32 1.0, %v2197
    %v2199 = vmul.f32 %v2196, %v2198
    %v2200 = vadd.f32 %v2196, %v2199
    %vm2201 = vweird.f32 %v2195
    %vm2202 = vweird.f32 %v2196
    %vm2203 = vmor %vm2201, %vm2202
    %v2204 = vsel %vm2203, %v2196, %v2200
    %v2205 = vand.u32 2147483647, %v2195
    %vm2206 = vcmp.eq.f32.partialorder %v2205, 8.507059e+37
    %v2207 = vand.u32 %v2195, 2147483648
    %v2208 = vor.u32 1.1754944e-38, %v2207
    %v2209 = vsel %vm2206, %v2208, %v2204
    %v2210 = vmul.f32 1.0, %v2209
    %v2211 = vmul.f32 %v2190, %v2018
    %v2212 = vmul.f32 %v2190, %v2191
    %2214 = vrot.lane.b32.xlu0 %v2212, 64
    %v2215 = vpop.permute.xlu0 %2214
    %v2217 = vadd.f32 %v2211, %v2215
    %v2218 = vtanh.pop %v2217
    %v2219 = vmul.f32 %v2210, %v2218
    %v2220 = vsel %vm2026, %v2126, %v2015
    %v2221 = vsel %vm2026, %v2124, %v2016
    %v2222 = vsel %vm2026, %v2219, %v2017
    %v2223 = vsel %vm2026, %v2217, %v2018
    %v2224 = vsel %vm2026, %v2219, 0.0
    %2226 = vrot.lane.b32.xlu0 %v2224, 64
    %v2227 = vpop.permute.xlu0 %2226
    %s2229 = scalar_lea.vmem [#allocation3], 56
    %2230 = vst.msk [vmem:[%s2229] sm:$0xff] %vm600, %v2227
    %2232 = vrot.lane.b32.xlu0 %v2220, 64
    %v2233 = vpop.permute.xlu0 %2232
    %2235 = vst.msk [vmem:[#allocation16] sm:$0xff] %vm600, %v2233
    %2237 = vrot.lane.b32.xlu0 %v2222, 64
    %v2238 = vpop.permute.xlu0 %2237
    %2240 = vst.msk [vmem:[#allocation16 + $0x8] sm:$0xff] %vm600, %v2238
    %2242 = vrot.lane.b32.xlu0 %v2221, 64
    %v2243 = vpop.permute.xlu0 %2242
    %2245 = vst.msk [vmem:[#allocation16 + $0x10] sm:$0xff] %vm600, %v2243
    %2247 = vrot.lane.b32.xlu0 %v2223, 64
    %v2248 = vpop.permute.xlu0 %2247
    %2250 = vst.msk [vmem:[#allocation16 + $0x18] sm:$0xff] %vm600, %v2248
    %v2251 = vld [vmem:[#allocation3] sm:$0xff]
    %v2252 = vld [vmem:[#allocation3 + $0x8] sm:$0xff]
    %v2253 = vld [vmem:[#allocation3 + $0x10] sm:$0xff]
    %v2254 = vld [vmem:[#allocation3 + $0x18] sm:$0xff]
    %v2255 = vld [vmem:[#allocation3 + $0x20] sm:$0xff]
    %v2256 = vld [vmem:[#allocation3 + $0x28] sm:$0xff]
    %v2257 = vld [vmem:[#allocation3 + $0x30] sm:$0xff]
    %v2258 = vld [vmem:[#allocation3 + $0x38] sm:$0xff]
    %v2259 = vld [vmem:[#allocation12] sm:$0xff]
    %v2260 = vld [vmem:[#allocation12 + $0x8] sm:$0xff]
    %v2261 = vld [vmem:[#allocation12 + $0x10] sm:$0xff]
    %v2262 = vld [vmem:[#allocation12 + $0x18] sm:$0xff]
    %v2263 = vld [vmem:[#allocation12 + $0x20] sm:$0xff]
    %v2264 = vld [vmem:[#allocation12 + $0x28] sm:$0xff]
    %v2265 = vld [vmem:[#allocation12 + $0x30] sm:$0xff]
    %v2266 = vld [vmem:[#allocation12 + $0x38] sm:$0xff]
    %v2267 = vld [vmem:[%s8] sm:$0x1]
    %v2269 = vperm.slane %v2267, 0
    %v2272 = vsel %vm600, %v2251, 0
    %v2275 = vsel %vm600, %v2252, 0
    %v2278 = vsel %vm600, %v2253, 0
    %v2281 = vsel %vm600, %v2254, 0
    %v2284 = vsel %vm600, %v2255, 0
    %v2287 = vsel %vm600, %v2256, 0
    %v2290 = vsel %vm600, %v2257, 0
    %v2293 = vsel %vm600, %v2258, 0
    %2295 = vmatpush.msra.mxu0 0.0
    %2296 = vmatpush.msra.mxu0 0.0
    %2297 = vmatpush.msra.mxu0 0.0
    %2298 = vmatpush.msra.mxu0 0.0
    %2299 = vmatpush.msra.mxu0 0.0
    %2300 = vmatpush.msra.mxu0 0.0
    %2301 = vmatpush.msra.mxu0 0.0
    %2302 = vmatpush.msra.mxu0 0.0
    %2303 = vmatpush.msra.mxu0 %v2266
    %2304 = vmatpush.msra.mxu0 %v2265
    %2305 = vmatpush.msra.mxu0 %v2264
    %2306 = vmatpush.msra.mxu0 %v2263
    %2307 = vmatpush.msra.mxu0 %v2262
    %2308 = vmatpush.msra.mxu0 %v2261
    %2309 = vmatpush.msra.mxu0 %v2260
    %2310 = vmatpush.msra.mxu0 %v2259
    %2311 = vmatmul.f32.gmra.mxu0 %v2272
    %v2312 = vpop.f32.mrf.mxu0
    %v2313 = vadd.f32 %v2269, %v2312
    %2314 = vmatmul.f32.gmra.mxu0 %v2275
    %v2315 = vpop.f32.mrf.mxu0
    %v2316 = vadd.f32 %v2269, %v2315
    %2317 = vmatmul.f32.gmra.mxu0 %v2278
    %v2318 = vpop.f32.mrf.mxu0
    %v2319 = vadd.f32 %v2269, %v2318
    %2320 = vmatmul.f32.gmra.mxu0 %v2281
    %v2321 = vpop.f32.mrf.mxu0
    %v2322 = vadd.f32 %v2269, %v2321
    %2323 = vmatmul.f32.gmra.mxu0 %v2284
    %v2324 = vpop.f32.mrf.mxu0
    %v2325 = vadd.f32 %v2269, %v2324
    %2326 = vmatmul.f32.gmra.mxu0 %v2287
    %v2327 = vpop.f32.mrf.mxu0
    %v2328 = vadd.f32 %v2269, %v2327
    %2329 = vmatmul.f32.gmra.mxu0 %v2290
    %v2330 = vpop.f32.mrf.mxu0
    %v2331 = vadd.f32 %v2269, %v2330
    %2332 = vmatmul.f32.gmra.mxu0 %v2293
    %v2333 = vpop.f32.mrf.mxu0
    %v2334 = vadd.f32 %v2269, %v2333
    %2335 = vdwg.mxu0
    %v2336 = vtanh.pop %v2313
    %v2337 = vtanh.pop %v2316
    %v2338 = vtanh.pop %v2319
    %v2339 = vtanh.pop %v2322
    %v2340 = vtanh.pop %v2325
    %v2341 = vtanh.pop %v2328
    %v2342 = vtanh.pop %v2331
    %v2343 = vtanh.pop %v2334
    %v2344 = vld [vmem:[#allocation13] sm:$0xff]
    %v2345 = vld [vmem:[#allocation13 + $0x8] sm:$0xff]
    %v2346 = vld [vmem:[#allocation13 + $0x10] sm:$0xff]
    %v2347 = vld [vmem:[#allocation13 + $0x18] sm:$0xff]
    %v2348 = vld [vmem:[#allocation13 + $0x20] sm:$0xff]
    %v2349 = vld [vmem:[#allocation13 + $0x28] sm:$0xff]
    %v2350 = vld [vmem:[#allocation13 + $0x30] sm:$0xff]
    %v2351 = vld [vmem:[#allocation13 + $0x38] sm:$0xff]
    %v2352 = vld [vmem:[%s10] sm:$0x1]
    %v2354 = vperm.slane %v2352, 0
    %v2357 = vsel %vm600, %v2336, 0
    %v2360 = vsel %vm600, %v2337, 0
    %v2363 = vsel %vm600, %v2338, 0
    %v2366 = vsel %vm600, %v2339, 0
    %v2369 = vsel %vm600, %v2340, 0
    %v2372 = vsel %vm600, %v2341, 0
    %v2375 = vsel %vm600, %v2342, 0
    %v2378 = vsel %vm600, %v2343, 0
    %2380 = vmatpush.msra.mxu0 0.0
    %2381 = vmatpush.msra.mxu0 0.0
    %2382 = vmatpush.msra.mxu0 0.0
    %2383 = vmatpush.msra.mxu0 0.0
    %2384 = vmatpush.msra.mxu0 0.0
    %2385 = vmatpush.msra.mxu0 0.0
    %2386 = vmatpush.msra.mxu0 0.0
    %2387 = vmatpush.msra.mxu0 0.0
    %2388 = vmatpush.msra.mxu0 %v2351
    %2389 = vmatpush.msra.mxu0 %v2350
    %2390 = vmatpush.msra.mxu0 %v2349
    %2391 = vmatpush.msra.mxu0 %v2348
    %2392 = vmatpush.msra.mxu0 %v2347
    %2393 = vmatpush.msra.mxu0 %v2346
    %2394 = vmatpush.msra.mxu0 %v2345
    %2395 = vmatpush.msra.mxu0 %v2344
    %2396 = vmatmul.f32.gmra.mxu0 %v2357
    %v2397 = vpop.f32.mrf.mxu0
    %v2398 = vadd.f32 %v2354, %v2397
    %2399 = vmatmul.f32.gmra.mxu0 %v2360
    %v2400 = vpop.f32.mrf.mxu0
    %v2401 = vadd.f32 %v2354, %v2400
    %2402 = vmatmul.f32.gmra.mxu0 %v2363
    %v2403 = vpop.f32.mrf.mxu0
    %v2404 = vadd.f32 %v2354, %v2403
    %2405 = vmatmul.f32.gmra.mxu0 %v2366
    %v2406 = vpop.f32.mrf.mxu0
    %v2407 = vadd.f32 %v2354, %v2406
    %2408 = vmatmul.f32.gmra.mxu0 %v2369
    %v2409 = vpop.f32.mrf.mxu0
    %v2410 = vadd.f32 %v2354, %v2409
    %2411 = vmatmul.f32.gmra.mxu0 %v2372
    %v2412 = vpop.f32.mrf.mxu0
    %v2413 = vadd.f32 %v2354, %v2412
    %2414 = vmatmul.f32.gmra.mxu0 %v2375
    %v2415 = vpop.f32.mrf.mxu0
    %v2416 = vadd.f32 %v2354, %v2415
    %2417 = vmatmul.f32.gmra.mxu0 %v2378
    %v2418 = vpop.f32.mrf.mxu0
    %v2419 = vadd.f32 %v2354, %v2418
    %2420 = vdwg.mxu0
    %2421 = vst [vmem:[#allocation15] sm:$0xff] %v2398
    %2422 = vst [vmem:[#allocation15 + $0x8] sm:$0xff] %v2401
    %2423 = vst [vmem:[#allocation15 + $0x10] sm:$0xff] %v2404
    %2424 = vst [vmem:[#allocation15 + $0x18] sm:$0xff] %v2407
    %2425 = vst [vmem:[#allocation15 + $0x20] sm:$0xff] %v2410
    %2426 = vst [vmem:[#allocation15 + $0x28] sm:$0xff] %v2413
    %2427 = vst [vmem:[#allocation15 + $0x30] sm:$0xff] %v2416
    %2428 = vst [vmem:[#allocation15 + $0x38] sm:$0xff] %v2419
    // Predicated region
    $region70: #{tpu_custom_call.1} parent=1 // pred_check
      _
    $region71: #{tpu_custom_call.1} parent=1 // pred_check_branch
      %2430 = sbr.rel (0) target = $region73
    $region72: #{tpu_custom_call.1} parent=1 // pred_region
      %2432 = vsyncadd [#allocation6], 0
      %s2433 = sshll.u32 [#allocation15], 4
      %s2434 = int_to_ptr.vmem [resolvable:$true] %s2433
      %s2435 = sshll.u32 %s11, 4
      %s2436 = int_to_ptr.hbm [resolvable:$true] %s2435
      %2441 = dma.vmem_to_hbm [thread:$0]  %s2434, 1024, %s2436, [#allocation6], 128, 128, 8
    $region73: #{tpu_custom_call.1} parent=1 // pred_fallthru
      _
    // Predicated region
    $region74: #{tpu_custom_call.1} parent=1 // pred_check
      _
    $region75: #{tpu_custom_call.1} parent=1 // pred_check_branch
      %2443 = sbr.rel (0) target = $region77
    $region76: #{tpu_custom_call.1} parent=1 // pred_region
      %2445 = vsyncadd [#allocation17], 0
      %s2446 = sshll.u32 [#allocation16], 4
      %s2447 = int_to_ptr.vmem [resolvable:$true] %s2446
      %s2448 = sshll.u32 %s12, 4
      %s2449 = int_to_ptr.hbm [resolvable:$true] %s2448
      %2454 = dma.vmem_to_hbm [thread:$0]  %s2447, 512, %s2449, [#allocation17], 128, 128, 8
    $region77: #{tpu_custom_call.1} parent=1 // pred_fallthru
      _
    // Predicated region
    $region78: #{tpu_custom_call.1} parent=1 // pred_check
      _
    $region79: #{tpu_custom_call.1} parent=1 // pred_check_branch
      %2456 = sbr.rel (0) target = $region81
    $region80: #{tpu_custom_call.1} parent=1 // pred_region
      %2458 = dma.done [#allocation6], 1024
    $region81: #{tpu_custom_call.1} parent=1 // pred_fallthru
      _
    // Predicated region
    $region82: #{tpu_custom_call.1} parent=1 // pred_check
      _
    $region83: #{tpu_custom_call.1} parent=1 // pred_check_branch
      %2460 = sbr.rel (0) target = $region85
    $region84: #{tpu_custom_call.1} parent=1 // pred_region
      %2462 = dma.done [#allocation17], 512
    $region85: #{tpu_custom_call.1} parent=1 // pred_fallthru
      _
    %2463 = vsyncpa [#allocation5], 1
    %2464 = vsyncpa [#allocation8], 1
    %2465 = vsyncpa [#allocation11], 1
    %2466 = vsyncpa [#allocation14], 1
    %2467 = vsyncpa [#allocation6], 1
    %2468 = vsyncpa [#allocation17], 1

</llo_original>
